<compile_context>
chip_gen: v7x
topology: tpu7x:2x2x1
jax: 0.10.0
libtpu: 0.0.40
codegen_flags: <defaults>
</compile_context>

<pallas_src>
import math

import numpy as np
import jax
import jax.numpy as jnp
from jax.experimental import pallas as pl
from jax.experimental.pallas import tpu as pltpu

# ---- small synthetic DeBERTa-style config ----
VOCAB = 128
HIDDEN = 32
N_HEADS = 2
HEAD_DIM = HIDDEN // N_HEADS
N_LAYERS = 2
INTERMEDIATE = 64
MAX_REL_POS = 8          # relative-attention span k (rel embeddings have 2k rows)
MAX_POS = 64             # absolute position embeddings (position_biased_input=True)
N_LABELS = 2
LN_EPS = 1e-7
SCALE_FACTOR = 3         # 1 + len(["c2p", "p2c"])
INV_SCALE = 1.0 / math.sqrt(HEAD_DIM * SCALE_FACTOR)


# ---------------- in-kernel helpers ----------------
def _layernorm(x, g, b):
    mu = jnp.mean(x, axis=-1, keepdims=True)
    var = jnp.mean((x - mu) ** 2, axis=-1, keepdims=True)
    return (x - mu) * jax.lax.rsqrt(var + LN_EPS) * g + b


def _gelu(x):
    # exact (erf) GELU, matching torch.nn.functional.gelu default
    return 0.5 * x * (1.0 + jax.lax.erf(x * (2.0 ** -0.5)))


def _masked_softmax(scores, valid):
    # XSoftmax: mask, stable softmax, re-zero masked entries.
    scores = jnp.where(valid, scores, jnp.float32(-1e9))
    m = jnp.max(scores, axis=-1, keepdims=True)
    e = jnp.exp(scores - m)
    l = jnp.sum(e, axis=-1, keepdims=True)
    probs = e * pl.reciprocal(l, approx=True)
    return jnp.where(valid, probs, 0.0)


# ---------------- the single fused forward kernel ----------------
def _model_kernel(x_ref, mcol_ref, mrow_ref, relg_ref, pos_ref,
                  embg_ref, embb_ref,
                  wqkv_ref, bqkv_ref, wpost_ref, bposq_ref,
                  wo_ref, bo_ref, ln1g_ref, ln1b_ref,
                  wi_ref, bi_ref, wo2_ref, bo2_ref,
                  ln2g_ref, ln2b_ref,
                  poolw_ref, poolb_ref, clsw_ref, clsb_ref,
                  logits_ref):
    H, d = HIDDEN, HEAD_DIM

    relg = relg_ref[...]                      # [S, S, H] rel_emb[rel_idx[i, j]]
    mcol = mcol_ref[0]                        # [S, 1] attention mask (query side)
    mrow = mrow_ref[0]                        # [1, S] attention mask (key side)
    valid = (mcol * mrow) > 0.0               # [S, S] pairwise validity

    # embeddings: word + position, LayerNorm (no residual), attention-mask multiply
    x = _layernorm(x_ref[0] + pos_ref[...], embg_ref[...], embb_ref[...]) * mcol  # [S,H]

    for li in range(N_LAYERS):
        # fused q|k|v projection: one [S,H] @ [H,3H] matmul (key has no bias; its
        # bias slot in b_qkv is kept at zero, matching DeBERTa v1)
        qkv = jnp.dot(x, wqkv_ref[li],
                      preferred_element_type=jnp.float32) + bqkv_ref[li]    # [S, 3H]
        wpt = wpost_ref[li]                   # [2H, H]  rows = pos_proj|pos_q_proj outputs
        bpq = bposq_ref[li]                   # [1, H]   pos_q_proj bias
        wol = wo_ref[li]                      # [H, H]
        attn = jnp.zeros_like(x)

        for h in range(N_HEADS):
            lo = h * d
            qh = qkv[:, lo:lo + d] * INV_SCALE                 # [S, d]
            kh = qkv[:, H + lo:H + lo + d]                     # [S, d]
            vh = qkv[:, 2 * H + lo:2 * H + lo + d]             # [S, d]
            khT = kh.T                                         # [d, S]

            # content-to-content
            scores = jnp.dot(qh, khT, preferred_element_type=jnp.float32)   # [S, S]

            # content-to-position: q_h . pos_k(rel_emb[rel_idx[i,j]])  (pos_proj: no bias)
            uq = jnp.dot(qh, wpt[lo:lo + d, :],
                         preferred_element_type=jnp.float32)                # [S, H]
            scores = scores + jnp.sum(uq[:, None, :] * relg, axis=-1)

            # position-to-content: k_h[j] . pos_q(rel_emb[rel_idx[i,j]]) / scale
            uk = jnp.dot(kh, wpt[H + lo:H + lo + d, :],
                         preferred_element_type=jnp.float32) * INV_SCALE    # [S, H]
            scores = scores + jnp.sum(uk[None, :, :] * relg, axis=-1)
            # pos_q_proj bias contribution (independent of the relative index)
            scores = scores + jnp.dot(bpq[:, lo:lo + d], khT,
                                      preferred_element_type=jnp.float32) * INV_SCALE

            probs = _masked_softmax(scores, valid)
            ctx_h = jnp.dot(probs, vh, preferred_element_type=jnp.float32)  # [S, d]
            # head-concat folded into the output projection
            attn = attn + jnp.dot(ctx_h, wol[lo:lo + d, :],
                                  preferred_element_type=jnp.float32)       # [S, H]

        attn = attn + bo_ref[li]
        x = _layernorm(attn + x, ln1g_ref[li], ln1b_ref[li])
        ffn = _gelu(jnp.dot(x, wi_ref[li],
                            preferred_element_type=jnp.float32) + bi_ref[li])
        ffn = jnp.dot(ffn, wo2_ref[li],
                      preferred_element_type=jnp.float32) + bo2_ref[li]
        x = _layernorm(ffn + x, ln2g_ref[li], ln2b_ref[li])

    # ContextPooler (first token) + classifier
    pooled = _gelu(jnp.dot(x[0:1, :], poolw_ref[...],
                           preferred_element_type=jnp.float32) + poolb_ref[...])
    logits_ref[0] = (jnp.dot(pooled, clsw_ref[...],
                             preferred_element_type=jnp.float32) + clsb_ref[...])


def fused_forward(x0, mask_col, mask_row, relg, pos_slice, p):
    """One pallas_call for the whole network; grid over the (independent) batch."""
    B, S, _ = x0.shape

    def per_batch(shape):
        nd = len(shape)
        blk = (1,) + tuple(shape[1:])
        return pl.BlockSpec(blk, lambda b, _nd=nd: (b,) + (0,) * (_nd - 1))

    def shared(arr):
        zeros = (0,) * arr.ndim
        return pl.BlockSpec(arr.shape, lambda b, _z=zeros: _z)

    operands = [x0, mask_col, mask_row, relg, pos_slice,
                p['emb_ln_g'], p['emb_ln_b'],
                p['w_qkv'], p['b_qkv'], p['w_pos_t'], p['b_pos_q'],
                p['w_o'], p['b_o'], p['ln1_g'], p['ln1_b'],
                p['w_i'], p['b_i'], p['w_o2'], p['b_o2'],
                p['ln2_g'], p['ln2_b'],
                p['pool_w'], p['pool_b'], p['cls_w'], p['cls_b']]
    in_specs = ([per_batch(x0.shape), per_batch(mask_col.shape), per_batch(mask_row.shape)]
                + [shared(a) for a in operands[3:]])

    out = pl.pallas_call(
        _model_kernel,
        grid=(B,),
        in_specs=in_specs,
        out_specs=pl.BlockSpec((1, 1, N_LABELS), lambda b: (b, 0, 0)),
        out_shape=jax.ShapeDtypeStruct((B, 1, N_LABELS), jnp.float32),
        compiler_params=pltpu.CompilerParams(dimension_semantics=("parallel",)),
    )(*operands)
    return out[:, 0, :]


# ---------------- parameters ----------------
def init_params(key):
    def nrm(k, shape, scale=0.02):
        return scale * jax.random.normal(k, shape, jnp.float32)

    L, H, I = N_LAYERS, HIDDEN, INTERMEDIATE
    ks = jax.random.split(key, 10)
    params = {
        'word_emb': nrm(ks[0], (VOCAB, H)),
        'pos_emb': nrm(ks[1], (MAX_POS, H)),
        'rel_emb': nrm(ks[2], (2 * MAX_REL_POS, H)),
        'emb_ln_g': jnp.ones((1, H), jnp.float32),
        'emb_ln_b': jnp.zeros((1, H), jnp.float32),
        # q|k|v fused along the output dim; the key-bias third stays zero (DeBERTa v1).
        'w_qkv': nrm(ks[3], (L, H, 3 * H)),
        'b_qkv': jnp.zeros((L, 1, 3 * H), jnp.float32),
        # pos_proj|pos_q_proj fused, stored transposed ([out, in]); pos_proj has no bias.
        'w_pos_t': nrm(ks[4], (L, 2 * H, H)),
        'b_pos_q': jnp.zeros((L, 1, H), jnp.float32),
        'w_o': nrm(ks[5], (L, H, H)),
        'b_o': jnp.zeros((L, 1, H), jnp.float32),
        'ln1_g': jnp.ones((L, 1, H), jnp.float32),
        'ln1_b': jnp.zeros((L, 1, H), jnp.float32),
        'w_i': nrm(ks[6], (L, H, I)),
        'b_i': jnp.zeros((L, 1, I), jnp.float32),
        'w_o2': nrm(ks[7], (L, I, H)),
        'b_o2': jnp.zeros((L, 1, H), jnp.float32),
        'ln2_g': jnp.ones((L, 1, H), jnp.float32),
        'ln2_b': jnp.zeros((L, 1, H), jnp.float32),
        'pool_w': nrm(ks[8], (H, H)),
        'pool_b': jnp.zeros((1, H), jnp.float32),
        'cls_w': nrm(ks[9], (H, N_LABELS)),
        'cls_b': jnp.zeros((1, N_LABELS), jnp.float32),
    }
    return params


# ---------------- forward (Make_model.forward equivalent) ----------------
def _forward_impl(params, input_ids, attention_mask):
    B, S = input_ids.shape
    mask_f = attention_mask.astype(jnp.float32)

    # TODO(synk): token-id embedding gather stays as one tiny XLA op (data-dependent
    # row gather); everything downstream runs in the single fused Pallas kernel.
    x0 = jnp.take(params['word_emb'], input_ids, axis=0)     # [B, S, H]
    mask_col = mask_f[:, :, None]                             # [B, S, 1]
    mask_row = mask_f[:, None, :]                             # [B, 1, S]
    pos_slice = params['pos_emb'][:S, :]                      # [S, H]

    # relative-position table: rel_idx is a compile-time constant, so the rel-embedding
    # rows are pre-gathered ONCE into a [S, S, H] table (shared by all layers/batches);
    # the in-kernel bias then needs no one-hot tensor and no extra MXU pass.
    span = min(S, MAX_REL_POS)
    rel = np.arange(S)[:, None] - np.arange(S)[None, :]
    rel_idx = np.clip(rel + span, 0, 2 * span - 1).astype(np.int32)   # [S, S] static
    rel_emb = params['rel_emb'][MAX_REL_POS - span: MAX_REL_POS + span]
    relg = rel_emb[rel_idx]                                   # [S, S, H]

    return fused_forward(x0, mask_col, mask_row, relg, pos_slice, params)


@jax.jit
def _logits_fn(params, input_ids, attention_mask):
    return _forward_impl(params, input_ids, attention_mask)


@jax.jit
def _loss_fn(params, input_ids, attention_mask, target):
    logits = _forward_impl(params, input_ids, attention_mask)
    # CrossEntropyLoss(mean) on tiny [B, num_labels] logits (XLA glue)
    logp = jax.nn.log_softmax(logits, axis=-1)
    loss = -jnp.mean(jnp.take_along_axis(logp, target[:, None], axis=1))
    return loss, logits


def make_model_forward(params, input_ids, attention_mask, target=None):
    if target is not None:
        return _loss_fn(params, input_ids, attention_mask, target)
    return _logits_fn(params, input_ids, attention_mask)


if __name__ == "__main__":
    key = jax.random.PRNGKey(0)
    pkey, ikey = jax.random.split(key)
    params = init_params(pkey)

    B, S = 2, 8
    input_ids = jax.random.randint(ikey, (B, S), 0, VOCAB, dtype=jnp.int32)
    attention_mask = jnp.array([[1] * S, [1] * (S - 2) + [0, 0]], dtype=jnp.int32)
    target = jnp.array([0, 1], dtype=jnp.int32)

    loss, logits = make_model_forward(params, input_ids, attention_mask, target)
    logits_only = make_model_forward(params, input_ids, attention_mask, None)
    jax.block_until_ready((loss, logits, logits_only))
    assert logits.shape == (B, N_LABELS) and logits_only.shape == (B, N_LABELS)
    assert bool(jnp.isfinite(loss)) and bool(jnp.all(jnp.isfinite(logits)))
    assert bool(jnp.allclose(logits, logits_only, atol=1e-5))
    print("KERNEL_OK")
</pallas_src>

<mosaic_0001>
module attributes {stable_mosaic.version = 11 : i64} {
  func.func @_model_kernel(%arg0: i32, %arg1: memref<1x8x32xf32, #tpu.memory_space<vmem>>, %arg2: memref<1x8x1xf32, #tpu.memory_space<vmem>>, %arg3: memref<1x1x8xf32, #tpu.memory_space<vmem>>, %arg4: memref<8x8x32xf32, #tpu.memory_space<vmem>>, %arg5: memref<8x32xf32, #tpu.memory_space<vmem>>, %arg6: memref<1x32xf32, #tpu.memory_space<vmem>>, %arg7: memref<1x32xf32, #tpu.memory_space<vmem>>, %arg8: memref<2x32x96xf32, #tpu.memory_space<vmem>>, %arg9: memref<2x1x96xf32, #tpu.memory_space<vmem>>, %arg10: memref<2x64x32xf32, #tpu.memory_space<vmem>>, %arg11: memref<2x1x32xf32, #tpu.memory_space<vmem>>, %arg12: memref<2x32x32xf32, #tpu.memory_space<vmem>>, %arg13: memref<2x1x32xf32, #tpu.memory_space<vmem>>, %arg14: memref<2x1x32xf32, #tpu.memory_space<vmem>>, %arg15: memref<2x1x32xf32, #tpu.memory_space<vmem>>, %arg16: memref<2x32x64xf32, #tpu.memory_space<vmem>>, %arg17: memref<2x1x64xf32, #tpu.memory_space<vmem>>, %arg18: memref<2x64x32xf32, #tpu.memory_space<vmem>>, %arg19: memref<2x1x32xf32, #tpu.memory_space<vmem>>, %arg20: memref<2x1x32xf32, #tpu.memory_space<vmem>>, %arg21: memref<2x1x32xf32, #tpu.memory_space<vmem>>, %arg22: memref<32x32xf32, #tpu.memory_space<vmem>>, %arg23: memref<1x32xf32, #tpu.memory_space<vmem>>, %arg24: memref<32x2xf32, #tpu.memory_space<vmem>>, %arg25: memref<1x2xf32, #tpu.memory_space<vmem>>, %arg26: memref<1x1x2xf32, #tpu.memory_space<vmem>>) attributes {dimension_semantics = [#tpu.dimension_semantics<parallel>], iteration_bounds = array<i64: 2>, scalar_prefetch = 0 : i64, scratch_operands = 0 : i64, tpu.core_type = #tpu.core_type<tc>, window_params = [{transform_indices = @transform_0, window_bounds = array<i64: 1, 8, 32>}, {transform_indices = @transform_1, window_bounds = array<i64: 1, 8, 1>}, {transform_indices = @transform_2, window_bounds = array<i64: 1, 1, 8>}, {pipeline_mode = #tpu.pipeline_mode<synchronous>, transform_indices = @transform_3, window_bounds = array<i64: 8, 8, 32>}, {pipeline_mode = #tpu.pipeline_mode<synchronous>, transform_indices = @transform_4, window_bounds = array<i64: 8, 32>}, {pipeline_mode = #tpu.pipeline_mode<synchronous>, transform_indices = @transform_5, window_bounds = array<i64: 1, 32>}, {pipeline_mode = #tpu.pipeline_mode<synchronous>, transform_indices = @transform_6, window_bounds = array<i64: 1, 32>}, {pipeline_mode = #tpu.pipeline_mode<synchronous>, transform_indices = @transform_7, window_bounds = array<i64: 2, 32, 96>}, {pipeline_mode = #tpu.pipeline_mode<synchronous>, transform_indices = @transform_8, window_bounds = array<i64: 2, 1, 96>}, {pipeline_mode = #tpu.pipeline_mode<synchronous>, transform_indices = @transform_9, window_bounds = array<i64: 2, 64, 32>}, {pipeline_mode = #tpu.pipeline_mode<synchronous>, transform_indices = @transform_10, window_bounds = array<i64: 2, 1, 32>}, {pipeline_mode = #tpu.pipeline_mode<synchronous>, transform_indices = @transform_11, window_bounds = array<i64: 2, 32, 32>}, {pipeline_mode = #tpu.pipeline_mode<synchronous>, transform_indices = @transform_12, window_bounds = array<i64: 2, 1, 32>}, {pipeline_mode = #tpu.pipeline_mode<synchronous>, transform_indices = @transform_13, window_bounds = array<i64: 2, 1, 32>}, {pipeline_mode = #tpu.pipeline_mode<synchronous>, transform_indices = @transform_14, window_bounds = array<i64: 2, 1, 32>}, {pipeline_mode = #tpu.pipeline_mode<synchronous>, transform_indices = @transform_15, window_bounds = array<i64: 2, 32, 64>}, {pipeline_mode = #tpu.pipeline_mode<synchronous>, transform_indices = @transform_16, window_bounds = array<i64: 2, 1, 64>}, {pipeline_mode = #tpu.pipeline_mode<synchronous>, transform_indices = @transform_17, window_bounds = array<i64: 2, 64, 32>}, {pipeline_mode = #tpu.pipeline_mode<synchronous>, transform_indices = @transform_18, window_bounds = array<i64: 2, 1, 32>}, {pipeline_mode = #tpu.pipeline_mode<synchronous>, transform_indices = @transform_19, window_bounds = array<i64: 2, 1, 32>}, {pipeline_mode = #tpu.pipeline_mode<synchronous>, transform_indices = @transform_20, window_bounds = array<i64: 2, 1, 32>}, {pipeline_mode = #tpu.pipeline_mode<synchronous>, transform_indices = @transform_21, window_bounds = array<i64: 32, 32>}, {pipeline_mode = #tpu.pipeline_mode<synchronous>, transform_indices = @transform_22, window_bounds = array<i64: 1, 32>}, {pipeline_mode = #tpu.pipeline_mode<synchronous>, transform_indices = @transform_23, window_bounds = array<i64: 32, 2>}, {pipeline_mode = #tpu.pipeline_mode<synchronous>, transform_indices = @transform_24, window_bounds = array<i64: 1, 2>}, {transform_indices = @transform_25, window_bounds = array<i64: 1, 1, 2>}]} {
    %c0 = arith.constant 0 : index
    %c0_0 = arith.constant 0 : index
    %c0_1 = arith.constant 0 : index
    %0 = vector.load %arg4[%c0, %c0_0, %c0_1] : memref<8x8x32xf32, #tpu.memory_space<vmem>>, vector<8x8x32xf32>
    %c0_2 = arith.constant 0 : index
    %c0_3 = arith.constant 0 : index
    %c0_4 = arith.constant 0 : index
    %1 = vector.load %arg2[%c0_2, %c0_3, %c0_4] : memref<1x8x1xf32, #tpu.memory_space<vmem>>, vector<1x8x1xf32>
    %2 = vector.shape_cast %1 : vector<1x8x1xf32> to vector<8x1xf32>
    %c0_5 = arith.constant 0 : index
    %c0_6 = arith.constant 0 : index
    %c0_7 = arith.constant 0 : index
    %3 = vector.load %arg3[%c0_5, %c0_6, %c0_7] : memref<1x1x8xf32, #tpu.memory_space<vmem>>, vector<1x1x8xf32>
    %4 = vector.shape_cast %3 : vector<1x1x8xf32> to vector<1x8xf32>
    %5 = vector.broadcast %2 : vector<8x1xf32> to vector<8x8xf32>
    %6 = vector.broadcast %4 : vector<1x8xf32> to vector<8x8xf32>
    %7 = arith.mulf %5, %6 : vector<8x8xf32>
    %cst = arith.constant 0.000000e+00 : f32
    %8 = vector.broadcast %cst : f32 to vector<8x8xf32>
    %9 = arith.cmpf ogt, %7, %8 : vector<8x8xf32>
    %c0_8 = arith.constant 0 : index
    %c0_9 = arith.constant 0 : index
    %c0_10 = arith.constant 0 : index
    %10 = vector.load %arg1[%c0_8, %c0_9, %c0_10] : memref<1x8x32xf32, #tpu.memory_space<vmem>>, vector<1x8x32xf32>
    %11 = vector.shape_cast %10 : vector<1x8x32xf32> to vector<8x32xf32>
    %c0_11 = arith.constant 0 : index
    %c0_12 = arith.constant 0 : index
    %12 = vector.load %arg5[%c0_11, %c0_12] : memref<8x32xf32, #tpu.memory_space<vmem>>, vector<8x32xf32>
    %13 = arith.addf %11, %12 : vector<8x32xf32>
    %c0_13 = arith.constant 0 : index
    %c0_14 = arith.constant 0 : index
    %14 = vector.load %arg6[%c0_13, %c0_14] : memref<1x32xf32, #tpu.memory_space<vmem>>, vector<1x32xf32>
    %c0_15 = arith.constant 0 : index
    %c0_16 = arith.constant 0 : index
    %15 = vector.load %arg7[%c0_15, %c0_16] : memref<1x32xf32, #tpu.memory_space<vmem>>, vector<1x32xf32>
    %cst_17 = arith.constant dense<0.000000e+00> : vector<8xf32>
    %16 = vector.multi_reduction <add>, %13, %cst_17 [1] : vector<8x32xf32> to vector<8xf32>
    %17 = vector.shape_cast %16 : vector<8xf32> to vector<8x1xf32>
    %cst_18 = arith.constant 3.200000e+01 : f32
    %18 = vector.broadcast %cst_18 : f32 to vector<8x1xf32>
    %19 = arith.divf %17, %18 : vector<8x1xf32>
    %20 = vector.broadcast %19 : vector<8x1xf32> to vector<8x32xf32>
    %21 = arith.subf %13, %20 : vector<8x32xf32>
    %22 = arith.mulf %21, %21 : vector<8x32xf32>
    %cst_19 = arith.constant dense<0.000000e+00> : vector<8xf32>
    %23 = vector.multi_reduction <add>, %22, %cst_19 [1] : vector<8x32xf32> to vector<8xf32>
    %24 = vector.shape_cast %23 : vector<8xf32> to vector<8x1xf32>
    %cst_20 = arith.constant 3.200000e+01 : f32
    %25 = vector.broadcast %cst_20 : f32 to vector<8x1xf32>
    %26 = arith.divf %24, %25 : vector<8x1xf32>
    %27 = vector.broadcast %19 : vector<8x1xf32> to vector<8x32xf32>
    %28 = arith.subf %13, %27 : vector<8x32xf32>
    %cst_21 = arith.constant 1.000000e-07 : f32
    %29 = vector.broadcast %cst_21 : f32 to vector<8x1xf32>
    %30 = arith.addf %26, %29 : vector<8x1xf32>
    %31 = math.rsqrt %30 : vector<8x1xf32>
    %32 = vector.broadcast %31 : vector<8x1xf32> to vector<8x32xf32>
    %33 = arith.mulf %28, %32 : vector<8x32xf32>
    %34 = vector.broadcast %14 : vector<1x32xf32> to vector<8x32xf32>
    %35 = arith.mulf %33, %34 : vector<8x32xf32>
    %36 = vector.broadcast %15 : vector<1x32xf32> to vector<8x32xf32>
    %37 = arith.addf %35, %36 : vector<8x32xf32>
    %38 = vector.broadcast %2 : vector<8x1xf32> to vector<8x32xf32>
    %39 = arith.mulf %37, %38 : vector<8x32xf32>
    %c0_22 = arith.constant 0 : index
    %c0_23 = arith.constant 0 : index
    %c0_24 = arith.constant 0 : index
    %40 = vector.load %arg8[%c0_22, %c0_23, %c0_24] : memref<2x32x96xf32, #tpu.memory_space<vmem>>, vector<1x32x96xf32>
    %41 = vector.shape_cast %40 : vector<1x32x96xf32> to vector<32x96xf32>
    %cst_25 = arith.constant dense<0.000000e+00> : vector<8x96xf32>
    %42 = tpu.matmul %39, %41, %cst_25 {dimension_numbers = #tpu.dot_dimension_numbers<[1], [0], [0], [1], [0, 0, 1, 1], [], []>} : vector<8x32xf32>, vector<32x96xf32>, vector<8x96xf32> -> vector<8x96xf32>
    %c0_26 = arith.constant 0 : index
    %c0_27 = arith.constant 0 : index
    %c0_28 = arith.constant 0 : index
    %43 = vector.load %arg9[%c0_26, %c0_27, %c0_28] : memref<2x1x96xf32, #tpu.memory_space<vmem>>, vector<1x1x96xf32>
    %44 = vector.shape_cast %43 : vector<1x1x96xf32> to vector<1x96xf32>
    %45 = vector.broadcast %44 : vector<1x96xf32> to vector<8x96xf32>
    %46 = arith.addf %42, %45 : vector<8x96xf32>
    %c0_29 = arith.constant 0 : index
    %c0_30 = arith.constant 0 : index
    %c0_31 = arith.constant 0 : index
    %47 = vector.load %arg10[%c0_29, %c0_30, %c0_31] : memref<2x64x32xf32, #tpu.memory_space<vmem>>, vector<1x64x32xf32>
    %48 = vector.shape_cast %47 : vector<1x64x32xf32> to vector<64x32xf32>
    %c0_32 = arith.constant 0 : index
    %c0_33 = arith.constant 0 : index
    %c0_34 = arith.constant 0 : index
    %49 = vector.load %arg11[%c0_32, %c0_33, %c0_34] : memref<2x1x32xf32, #tpu.memory_space<vmem>>, vector<1x1x32xf32>
    %50 = vector.shape_cast %49 : vector<1x1x32xf32> to vector<1x32xf32>
    %c0_35 = arith.constant 0 : index
    %c0_36 = arith.constant 0 : index
    %c0_37 = arith.constant 0 : index
    %51 = vector.load %arg12[%c0_35, %c0_36, %c0_37] : memref<2x32x32xf32, #tpu.memory_space<vmem>>, vector<1x32x32xf32>
    %52 = vector.shape_cast %51 : vector<1x32x32xf32> to vector<32x32xf32>
    %cst_38 = arith.constant 0.000000e+00 : f32
    %53 = vector.broadcast %cst_38 : f32 to vector<8x32xf32>
    %54 = vector.extract_strided_slice %46 {offsets = [0, 0], sizes = [8, 16], strides = [1, 1]} : vector<8x96xf32> to vector<8x16xf32>
    %cst_39 = arith.constant 0.144337565 : f32
    %55 = vector.broadcast %cst_39 : f32 to vector<8x16xf32>
    %56 = arith.mulf %54, %55 : vector<8x16xf32>
    %57 = vector.extract_strided_slice %46 {offsets = [0, 32], sizes = [8, 16], strides = [1, 1]} : vector<8x96xf32> to vector<8x16xf32>
    %58 = vector.extract_strided_slice %46 {offsets = [0, 64], sizes = [8, 16], strides = [1, 1]} : vector<8x96xf32> to vector<8x16xf32>
    %59 = tpu.transpose %57, [1, 0] : vector<8x16xf32> -> vector<16x8xf32>
    %cst_40 = arith.constant dense<0.000000e+00> : vector<8x8xf32>
    %60 = tpu.matmul %56, %59, %cst_40 {dimension_numbers = #tpu.dot_dimension_numbers<[1], [0], [0], [1], [0, 0, 1, 1], [], []>} : vector<8x16xf32>, vector<16x8xf32>, vector<8x8xf32> -> vector<8x8xf32>
    %61 = vector.extract_strided_slice %48 {offsets = [0, 0], sizes = [16, 32], strides = [1, 1]} : vector<64x32xf32> to vector<16x32xf32>
    %cst_41 = arith.constant dense<0.000000e+00> : vector<8x32xf32>
    %62 = tpu.matmul %56, %61, %cst_41 {dimension_numbers = #tpu.dot_dimension_numbers<[1], [0], [0], [1], [0, 0, 1, 1], [], []>} : vector<8x16xf32>, vector<16x32xf32>, vector<8x32xf32> -> vector<8x32xf32>
    %63 = vector.shape_cast %62 : vector<8x32xf32> to vector<8x1x32xf32>
    %64 = vector.broadcast %63 : vector<8x1x32xf32> to vector<8x8x32xf32>
    %65 = arith.mulf %64, %0 : vector<8x8x32xf32>
    %cst_42 = arith.constant dense<0.000000e+00> : vector<8x8xf32>
    %66 = vector.multi_reduction <add>, %65, %cst_42 [2] : vector<8x8x32xf32> to vector<8x8xf32>
    %67 = arith.addf %60, %66 : vector<8x8xf32>
    %68 = vector.extract_strided_slice %48 {offsets = [32, 0], sizes = [16, 32], strides = [1, 1]} : vector<64x32xf32> to vector<16x32xf32>
    %cst_43 = arith.constant dense<0.000000e+00> : vector<8x32xf32>
    %69 = tpu.matmul %57, %68, %cst_43 {dimension_numbers = #tpu.dot_dimension_numbers<[1], [0], [0], [1], [0, 0, 1, 1], [], []>} : vector<8x16xf32>, vector<16x32xf32>, vector<8x32xf32> -> vector<8x32xf32>
    %cst_44 = arith.constant 0.144337565 : f32
    %70 = vector.broadcast %cst_44 : f32 to vector<8x32xf32>
    %71 = arith.mulf %69, %70 : vector<8x32xf32>
    %72 = vector.shape_cast %71 : vector<8x32xf32> to vector<1x8x32xf32>
    %73 = vector.broadcast %72 : vector<1x8x32xf32> to vector<8x8x32xf32>
    %74 = arith.mulf %73, %0 : vector<8x8x32xf32>
    %cst_45 = arith.constant dense<0.000000e+00> : vector<8x8xf32>
    %75 = vector.multi_reduction <add>, %74, %cst_45 [2] : vector<8x8x32xf32> to vector<8x8xf32>
    %76 = arith.addf %67, %75 : vector<8x8xf32>
    %77 = vector.extract_strided_slice %50 {offsets = [0, 0], sizes = [1, 16], strides = [1, 1]} : vector<1x32xf32> to vector<1x16xf32>
    %cst_46 = arith.constant dense<0.000000e+00> : vector<1x8xf32>
    %78 = tpu.matmul %77, %59, %cst_46 {dimension_numbers = #tpu.dot_dimension_numbers<[1], [0], [0], [1], [0, 0, 1, 1], [], []>} : vector<1x16xf32>, vector<16x8xf32>, vector<1x8xf32> -> vector<1x8xf32>
    %cst_47 = arith.constant 0.144337565 : f32
    %79 = vector.broadcast %cst_47 : f32 to vector<1x8xf32>
    %80 = arith.mulf %78, %79 : vector<1x8xf32>
    %81 = vector.broadcast %80 : vector<1x8xf32> to vector<8x8xf32>
    %82 = arith.addf %76, %81 : vector<8x8xf32>
    %cst_48 = arith.constant -1.000000e+09 : f32
    %83 = vector.broadcast %cst_48 : f32 to vector<8x8xf32>
    %84 = arith.select %9, %82, %83 : vector<8x8xi1>, vector<8x8xf32>
    %cst_49 = arith.constant dense<0xFF800000> : vector<8xf32>
    %85 = vector.multi_reduction <maximumf>, %84, %cst_49 [1] : vector<8x8xf32> to vector<8xf32>
    %86 = vector.shape_cast %85 : vector<8xf32> to vector<8x1xf32>
    %87 = vector.broadcast %86 : vector<8x1xf32> to vector<8x8xf32>
    %88 = arith.subf %84, %87 : vector<8x8xf32>
    %89 = math.exp %88 : vector<8x8xf32>
    %cst_50 = arith.constant dense<0.000000e+00> : vector<8xf32>
    %90 = vector.multi_reduction <add>, %89, %cst_50 [1] : vector<8x8xf32> to vector<8xf32>
    %91 = vector.shape_cast %90 : vector<8xf32> to vector<8x1xf32>
    %92 = tpu.reciprocal %91 {approx = true} : vector<8x1xf32> -> vector<8x1xf32>
    %93 = vector.broadcast %92 : vector<8x1xf32> to vector<8x8xf32>
    %94 = arith.mulf %89, %93 : vector<8x8xf32>
    %cst_51 = arith.constant 0.000000e+00 : f32
    %95 = vector.broadcast %cst_51 : f32 to vector<8x8xf32>
    %96 = arith.select %9, %94, %95 : vector<8x8xi1>, vector<8x8xf32>
    %cst_52 = arith.constant dense<0.000000e+00> : vector<8x16xf32>
    %97 = tpu.matmul %96, %58, %cst_52 {dimension_numbers = #tpu.dot_dimension_numbers<[1], [0], [0], [1], [0, 0, 1, 1], [], []>} : vector<8x8xf32>, vector<8x16xf32>, vector<8x16xf32> -> vector<8x16xf32>
    %98 = vector.extract_strided_slice %52 {offsets = [0, 0], sizes = [16, 32], strides = [1, 1]} : vector<32x32xf32> to vector<16x32xf32>
    %cst_53 = arith.constant dense<0.000000e+00> : vector<8x32xf32>
    %99 = tpu.matmul %97, %98, %cst_53 {dimension_numbers = #tpu.dot_dimension_numbers<[1], [0], [0], [1], [0, 0, 1, 1], [], []>} : vector<8x16xf32>, vector<16x32xf32>, vector<8x32xf32> -> vector<8x32xf32>
    %100 = arith.addf %53, %99 : vector<8x32xf32>
    %101 = vector.extract_strided_slice %46 {offsets = [0, 16], sizes = [8, 16], strides = [1, 1]} : vector<8x96xf32> to vector<8x16xf32>
    %cst_54 = arith.constant 0.144337565 : f32
    %102 = vector.broadcast %cst_54 : f32 to vector<8x16xf32>
    %103 = arith.mulf %101, %102 : vector<8x16xf32>
    %104 = vector.extract_strided_slice %46 {offsets = [0, 48], sizes = [8, 16], strides = [1, 1]} : vector<8x96xf32> to vector<8x16xf32>
    %105 = vector.extract_strided_slice %46 {offsets = [0, 80], sizes = [8, 16], strides = [1, 1]} : vector<8x96xf32> to vector<8x16xf32>
    %106 = tpu.transpose %104, [1, 0] : vector<8x16xf32> -> vector<16x8xf32>
    %cst_55 = arith.constant dense<0.000000e+00> : vector<8x8xf32>
    %107 = tpu.matmul %103, %106, %cst_55 {dimension_numbers = #tpu.dot_dimension_numbers<[1], [0], [0], [1], [0, 0, 1, 1], [], []>} : vector<8x16xf32>, vector<16x8xf32>, vector<8x8xf32> -> vector<8x8xf32>
    %108 = vector.extract_strided_slice %48 {offsets = [16, 0], sizes = [16, 32], strides = [1, 1]} : vector<64x32xf32> to vector<16x32xf32>
    %cst_56 = arith.constant dense<0.000000e+00> : vector<8x32xf32>
    %109 = tpu.matmul %103, %108, %cst_56 {dimension_numbers = #tpu.dot_dimension_numbers<[1], [0], [0], [1], [0, 0, 1, 1], [], []>} : vector<8x16xf32>, vector<16x32xf32>, vector<8x32xf32> -> vector<8x32xf32>
    %110 = vector.shape_cast %109 : vector<8x32xf32> to vector<8x1x32xf32>
    %111 = vector.broadcast %110 : vector<8x1x32xf32> to vector<8x8x32xf32>
    %112 = arith.mulf %111, %0 : vector<8x8x32xf32>
    %cst_57 = arith.constant dense<0.000000e+00> : vector<8x8xf32>
    %113 = vector.multi_reduction <add>, %112, %cst_57 [2] : vector<8x8x32xf32> to vector<8x8xf32>
    %114 = arith.addf %107, %113 : vector<8x8xf32>
    %115 = vector.extract_strided_slice %48 {offsets = [48, 0], sizes = [16, 32], strides = [1, 1]} : vector<64x32xf32> to vector<16x32xf32>
    %cst_58 = arith.constant dense<0.000000e+00> : vector<8x32xf32>
    %116 = tpu.matmul %104, %115, %cst_58 {dimension_numbers = #tpu.dot_dimension_numbers<[1], [0], [0], [1], [0, 0, 1, 1], [], []>} : vector<8x16xf32>, vector<16x32xf32>, vector<8x32xf32> -> vector<8x32xf32>
    %cst_59 = arith.constant 0.144337565 : f32
    %117 = vector.broadcast %cst_59 : f32 to vector<8x32xf32>
    %118 = arith.mulf %116, %117 : vector<8x32xf32>
    %119 = vector.shape_cast %118 : vector<8x32xf32> to vector<1x8x32xf32>
    %120 = vector.broadcast %119 : vector<1x8x32xf32> to vector<8x8x32xf32>
    %121 = arith.mulf %120, %0 : vector<8x8x32xf32>
    %cst_60 = arith.constant dense<0.000000e+00> : vector<8x8xf32>
    %122 = vector.multi_reduction <add>, %121, %cst_60 [2] : vector<8x8x32xf32> to vector<8x8xf32>
    %123 = arith.addf %114, %122 : vector<8x8xf32>
    %124 = vector.extract_strided_slice %50 {offsets = [0, 16], sizes = [1, 16], strides = [1, 1]} : vector<1x32xf32> to vector<1x16xf32>
    %cst_61 = arith.constant dense<0.000000e+00> : vector<1x8xf32>
    %125 = tpu.matmul %124, %106, %cst_61 {dimension_numbers = #tpu.dot_dimension_numbers<[1], [0], [0], [1], [0, 0, 1, 1], [], []>} : vector<1x16xf32>, vector<16x8xf32>, vector<1x8xf32> -> vector<1x8xf32>
    %cst_62 = arith.constant 0.144337565 : f32
    %126 = vector.broadcast %cst_62 : f32 to vector<1x8xf32>
    %127 = arith.mulf %125, %126 : vector<1x8xf32>
    %128 = vector.broadcast %127 : vector<1x8xf32> to vector<8x8xf32>
    %129 = arith.addf %123, %128 : vector<8x8xf32>
    %cst_63 = arith.constant -1.000000e+09 : f32
    %130 = vector.broadcast %cst_63 : f32 to vector<8x8xf32>
    %131 = arith.select %9, %129, %130 : vector<8x8xi1>, vector<8x8xf32>
    %cst_64 = arith.constant dense<0xFF800000> : vector<8xf32>
    %132 = vector.multi_reduction <maximumf>, %131, %cst_64 [1] : vector<8x8xf32> to vector<8xf32>
    %133 = vector.shape_cast %132 : vector<8xf32> to vector<8x1xf32>
    %134 = vector.broadcast %133 : vector<8x1xf32> to vector<8x8xf32>
    %135 = arith.subf %131, %134 : vector<8x8xf32>
    %136 = math.exp %135 : vector<8x8xf32>
    %cst_65 = arith.constant dense<0.000000e+00> : vector<8xf32>
    %137 = vector.multi_reduction <add>, %136, %cst_65 [1] : vector<8x8xf32> to vector<8xf32>
    %138 = vector.shape_cast %137 : vector<8xf32> to vector<8x1xf32>
    %139 = tpu.reciprocal %138 {approx = true} : vector<8x1xf32> -> vector<8x1xf32>
    %140 = vector.broadcast %139 : vector<8x1xf32> to vector<8x8xf32>
    %141 = arith.mulf %136, %140 : vector<8x8xf32>
    %cst_66 = arith.constant 0.000000e+00 : f32
    %142 = vector.broadcast %cst_66 : f32 to vector<8x8xf32>
    %143 = arith.select %9, %141, %142 : vector<8x8xi1>, vector<8x8xf32>
    %cst_67 = arith.constant dense<0.000000e+00> : vector<8x16xf32>
    %144 = tpu.matmul %143, %105, %cst_67 {dimension_numbers = #tpu.dot_dimension_numbers<[1], [0], [0], [1], [0, 0, 1, 1], [], []>} : vector<8x8xf32>, vector<8x16xf32>, vector<8x16xf32> -> vector<8x16xf32>
    %145 = vector.extract_strided_slice %52 {offsets = [16, 0], sizes = [16, 32], strides = [1, 1]} : vector<32x32xf32> to vector<16x32xf32>
    %cst_68 = arith.constant dense<0.000000e+00> : vector<8x32xf32>
    %146 = tpu.matmul %144, %145, %cst_68 {dimension_numbers = #tpu.dot_dimension_numbers<[1], [0], [0], [1], [0, 0, 1, 1], [], []>} : vector<8x16xf32>, vector<16x32xf32>, vector<8x32xf32> -> vector<8x32xf32>
    %147 = arith.addf %100, %146 : vector<8x32xf32>
    %c0_69 = arith.constant 0 : index
    %c0_70 = arith.constant 0 : index
    %c0_71 = arith.constant 0 : index
    %148 = vector.load %arg13[%c0_69, %c0_70, %c0_71] : memref<2x1x32xf32, #tpu.memory_space<vmem>>, vector<1x1x32xf32>
    %149 = vector.shape_cast %148 : vector<1x1x32xf32> to vector<1x32xf32>
    %150 = vector.broadcast %149 : vector<1x32xf32> to vector<8x32xf32>
    %151 = arith.addf %147, %150 : vector<8x32xf32>
    %152 = arith.addf %151, %39 : vector<8x32xf32>
    %c0_72 = arith.constant 0 : index
    %c0_73 = arith.constant 0 : index
    %c0_74 = arith.constant 0 : index
    %153 = vector.load %arg14[%c0_72, %c0_73, %c0_74] : memref<2x1x32xf32, #tpu.memory_space<vmem>>, vector<1x1x32xf32>
    %154 = vector.shape_cast %153 : vector<1x1x32xf32> to vector<1x32xf32>
    %c0_75 = arith.constant 0 : index
    %c0_76 = arith.constant 0 : index
    %c0_77 = arith.constant 0 : index
    %155 = vector.load %arg15[%c0_75, %c0_76, %c0_77] : memref<2x1x32xf32, #tpu.memory_space<vmem>>, vector<1x1x32xf32>
    %156 = vector.shape_cast %155 : vector<1x1x32xf32> to vector<1x32xf32>
    %cst_78 = arith.constant dense<0.000000e+00> : vector<8xf32>
    %157 = vector.multi_reduction <add>, %152, %cst_78 [1] : vector<8x32xf32> to vector<8xf32>
    %158 = vector.shape_cast %157 : vector<8xf32> to vector<8x1xf32>
    %cst_79 = arith.constant 3.200000e+01 : f32
    %159 = vector.broadcast %cst_79 : f32 to vector<8x1xf32>
    %160 = arith.divf %158, %159 : vector<8x1xf32>
    %161 = vector.broadcast %160 : vector<8x1xf32> to vector<8x32xf32>
    %162 = arith.subf %152, %161 : vector<8x32xf32>
    %163 = arith.mulf %162, %162 : vector<8x32xf32>
    %cst_80 = arith.constant dense<0.000000e+00> : vector<8xf32>
    %164 = vector.multi_reduction <add>, %163, %cst_80 [1] : vector<8x32xf32> to vector<8xf32>
    %165 = vector.shape_cast %164 : vector<8xf32> to vector<8x1xf32>
    %cst_81 = arith.constant 3.200000e+01 : f32
    %166 = vector.broadcast %cst_81 : f32 to vector<8x1xf32>
    %167 = arith.divf %165, %166 : vector<8x1xf32>
    %168 = vector.broadcast %160 : vector<8x1xf32> to vector<8x32xf32>
    %169 = arith.subf %152, %168 : vector<8x32xf32>
    %cst_82 = arith.constant 1.000000e-07 : f32
    %170 = vector.broadcast %cst_82 : f32 to vector<8x1xf32>
    %171 = arith.addf %167, %170 : vector<8x1xf32>
    %172 = math.rsqrt %171 : vector<8x1xf32>
    %173 = vector.broadcast %172 : vector<8x1xf32> to vector<8x32xf32>
    %174 = arith.mulf %169, %173 : vector<8x32xf32>
    %175 = vector.broadcast %154 : vector<1x32xf32> to vector<8x32xf32>
    %176 = arith.mulf %174, %175 : vector<8x32xf32>
    %177 = vector.broadcast %156 : vector<1x32xf32> to vector<8x32xf32>
    %178 = arith.addf %176, %177 : vector<8x32xf32>
    %c0_83 = arith.constant 0 : index
    %c0_84 = arith.constant 0 : index
    %c0_85 = arith.constant 0 : index
    %179 = vector.load %arg16[%c0_83, %c0_84, %c0_85] : memref<2x32x64xf32, #tpu.memory_space<vmem>>, vector<1x32x64xf32>
    %180 = vector.shape_cast %179 : vector<1x32x64xf32> to vector<32x64xf32>
    %cst_86 = arith.constant dense<0.000000e+00> : vector<8x64xf32>
    %181 = tpu.matmul %178, %180, %cst_86 {dimension_numbers = #tpu.dot_dimension_numbers<[1], [0], [0], [1], [0, 0, 1, 1], [], []>} : vector<8x32xf32>, vector<32x64xf32>, vector<8x64xf32> -> vector<8x64xf32>
    %c0_87 = arith.constant 0 : index
    %c0_88 = arith.constant 0 : index
    %c0_89 = arith.constant 0 : index
    %182 = vector.load %arg17[%c0_87, %c0_88, %c0_89] : memref<2x1x64xf32, #tpu.memory_space<vmem>>, vector<1x1x64xf32>
    %183 = vector.shape_cast %182 : vector<1x1x64xf32> to vector<1x64xf32>
    %184 = vector.broadcast %183 : vector<1x64xf32> to vector<8x64xf32>
    %185 = arith.addf %181, %184 : vector<8x64xf32>
    %cst_90 = arith.constant 5.000000e-01 : f32
    %186 = vector.broadcast %cst_90 : f32 to vector<8x64xf32>
    %187 = arith.mulf %186, %185 : vector<8x64xf32>
    %cst_91 = arith.constant 0.707106769 : f32
    %188 = vector.broadcast %cst_91 : f32 to vector<8x64xf32>
    %189 = arith.mulf %185, %188 : vector<8x64xf32>
    %190 = math.erf %189 : vector<8x64xf32>
    %cst_92 = arith.constant 1.000000e+00 : f32
    %191 = vector.broadcast %cst_92 : f32 to vector<8x64xf32>
    %192 = arith.addf %191, %190 : vector<8x64xf32>
    %193 = arith.mulf %187, %192 : vector<8x64xf32>
    %c0_93 = arith.constant 0 : index
    %c0_94 = arith.constant 0 : index
    %c0_95 = arith.constant 0 : index
    %194 = vector.load %arg18[%c0_93, %c0_94, %c0_95] : memref<2x64x32xf32, #tpu.memory_space<vmem>>, vector<1x64x32xf32>
    %195 = vector.shape_cast %194 : vector<1x64x32xf32> to vector<64x32xf32>
    %cst_96 = arith.constant dense<0.000000e+00> : vector<8x32xf32>
    %196 = tpu.matmul %193, %195, %cst_96 {dimension_numbers = #tpu.dot_dimension_numbers<[1], [0], [0], [1], [0, 0, 1, 1], [], []>} : vector<8x64xf32>, vector<64x32xf32>, vector<8x32xf32> -> vector<8x32xf32>
    %c0_97 = arith.constant 0 : index
    %c0_98 = arith.constant 0 : index
    %c0_99 = arith.constant 0 : index
    %197 = vector.load %arg19[%c0_97, %c0_98, %c0_99] : memref<2x1x32xf32, #tpu.memory_space<vmem>>, vector<1x1x32xf32>
    %198 = vector.shape_cast %197 : vector<1x1x32xf32> to vector<1x32xf32>
    %199 = vector.broadcast %198 : vector<1x32xf32> to vector<8x32xf32>
    %200 = arith.addf %196, %199 : vector<8x32xf32>
    %201 = arith.addf %200, %178 : vector<8x32xf32>
    %c0_100 = arith.constant 0 : index
    %c0_101 = arith.constant 0 : index
    %c0_102 = arith.constant 0 : index
    %202 = vector.load %arg20[%c0_100, %c0_101, %c0_102] : memref<2x1x32xf32, #tpu.memory_space<vmem>>, vector<1x1x32xf32>
    %203 = vector.shape_cast %202 : vector<1x1x32xf32> to vector<1x32xf32>
    %c0_103 = arith.constant 0 : index
    %c0_104 = arith.constant 0 : index
    %c0_105 = arith.constant 0 : index
    %204 = vector.load %arg21[%c0_103, %c0_104, %c0_105] : memref<2x1x32xf32, #tpu.memory_space<vmem>>, vector<1x1x32xf32>
    %205 = vector.shape_cast %204 : vector<1x1x32xf32> to vector<1x32xf32>
    %cst_106 = arith.constant dense<0.000000e+00> : vector<8xf32>
    %206 = vector.multi_reduction <add>, %201, %cst_106 [1] : vector<8x32xf32> to vector<8xf32>
    %207 = vector.shape_cast %206 : vector<8xf32> to vector<8x1xf32>
    %cst_107 = arith.constant 3.200000e+01 : f32
    %208 = vector.broadcast %cst_107 : f32 to vector<8x1xf32>
    %209 = arith.divf %207, %208 : vector<8x1xf32>
    %210 = vector.broadcast %209 : vector<8x1xf32> to vector<8x32xf32>
    %211 = arith.subf %201, %210 : vector<8x32xf32>
    %212 = arith.mulf %211, %211 : vector<8x32xf32>
    %cst_108 = arith.constant dense<0.000000e+00> : vector<8xf32>
    %213 = vector.multi_reduction <add>, %212, %cst_108 [1] : vector<8x32xf32> to vector<8xf32>
    %214 = vector.shape_cast %213 : vector<8xf32> to vector<8x1xf32>
    %cst_109 = arith.constant 3.200000e+01 : f32
    %215 = vector.broadcast %cst_109 : f32 to vector<8x1xf32>
    %216 = arith.divf %214, %215 : vector<8x1xf32>
    %217 = vector.broadcast %209 : vector<8x1xf32> to vector<8x32xf32>
    %218 = arith.subf %201, %217 : vector<8x32xf32>
    %cst_110 = arith.constant 1.000000e-07 : f32
    %219 = vector.broadcast %cst_110 : f32 to vector<8x1xf32>
    %220 = arith.addf %216, %219 : vector<8x1xf32>
    %221 = math.rsqrt %220 : vector<8x1xf32>
    %222 = vector.broadcast %221 : vector<8x1xf32> to vector<8x32xf32>
    %223 = arith.mulf %218, %222 : vector<8x32xf32>
    %224 = vector.broadcast %203 : vector<1x32xf32> to vector<8x32xf32>
    %225 = arith.mulf %223, %224 : vector<8x32xf32>
    %226 = vector.broadcast %205 : vector<1x32xf32> to vector<8x32xf32>
    %227 = arith.addf %225, %226 : vector<8x32xf32>
    %c1 = arith.constant 1 : index
    %c0_111 = arith.constant 0 : index
    %c0_112 = arith.constant 0 : index
    %228 = vector.load %arg8[%c1, %c0_111, %c0_112] : memref<2x32x96xf32, #tpu.memory_space<vmem>>, vector<1x32x96xf32>
    %229 = vector.shape_cast %228 : vector<1x32x96xf32> to vector<32x96xf32>
    %cst_113 = arith.constant dense<0.000000e+00> : vector<8x96xf32>
    %230 = tpu.matmul %227, %229, %cst_113 {dimension_numbers = #tpu.dot_dimension_numbers<[1], [0], [0], [1], [0, 0, 1, 1], [], []>} : vector<8x32xf32>, vector<32x96xf32>, vector<8x96xf32> -> vector<8x96xf32>
    %c1_114 = arith.constant 1 : index
    %c0_115 = arith.constant 0 : index
    %c0_116 = arith.constant 0 : index
    %231 = vector.load %arg9[%c1_114, %c0_115, %c0_116] : memref<2x1x96xf32, #tpu.memory_space<vmem>>, vector<1x1x96xf32>
    %232 = vector.shape_cast %231 : vector<1x1x96xf32> to vector<1x96xf32>
    %233 = vector.broadcast %232 : vector<1x96xf32> to vector<8x96xf32>
    %234 = arith.addf %230, %233 : vector<8x96xf32>
    %c1_117 = arith.constant 1 : index
    %c0_118 = arith.constant 0 : index
    %c0_119 = arith.constant 0 : index
    %235 = vector.load %arg10[%c1_117, %c0_118, %c0_119] : memref<2x64x32xf32, #tpu.memory_space<vmem>>, vector<1x64x32xf32>
    %236 = vector.shape_cast %235 : vector<1x64x32xf32> to vector<64x32xf32>
    %c1_120 = arith.constant 1 : index
    %c0_121 = arith.constant 0 : index
    %c0_122 = arith.constant 0 : index
    %237 = vector.load %arg11[%c1_120, %c0_121, %c0_122] : memref<2x1x32xf32, #tpu.memory_space<vmem>>, vector<1x1x32xf32>
    %238 = vector.shape_cast %237 : vector<1x1x32xf32> to vector<1x32xf32>
    %c1_123 = arith.constant 1 : index
    %c0_124 = arith.constant 0 : index
    %c0_125 = arith.constant 0 : index
    %239 = vector.load %arg12[%c1_123, %c0_124, %c0_125] : memref<2x32x32xf32, #tpu.memory_space<vmem>>, vector<1x32x32xf32>
    %240 = vector.shape_cast %239 : vector<1x32x32xf32> to vector<32x32xf32>
    %cst_126 = arith.constant 0.000000e+00 : f32
    %241 = vector.broadcast %cst_126 : f32 to vector<8x32xf32>
    %242 = vector.extract_strided_slice %234 {offsets = [0, 0], sizes = [8, 16], strides = [1, 1]} : vector<8x96xf32> to vector<8x16xf32>
    %cst_127 = arith.constant 0.144337565 : f32
    %243 = vector.broadcast %cst_127 : f32 to vector<8x16xf32>
    %244 = arith.mulf %242, %243 : vector<8x16xf32>
    %245 = vector.extract_strided_slice %234 {offsets = [0, 32], sizes = [8, 16], strides = [1, 1]} : vector<8x96xf32> to vector<8x16xf32>
    %246 = vector.extract_strided_slice %234 {offsets = [0, 64], sizes = [8, 16], strides = [1, 1]} : vector<8x96xf32> to vector<8x16xf32>
    %247 = tpu.transpose %245, [1, 0] : vector<8x16xf32> -> vector<16x8xf32>
    %cst_128 = arith.constant dense<0.000000e+00> : vector<8x8xf32>
    %248 = tpu.matmul %244, %247, %cst_128 {dimension_numbers = #tpu.dot_dimension_numbers<[1], [0], [0], [1], [0, 0, 1, 1], [], []>} : vector<8x16xf32>, vector<16x8xf32>, vector<8x8xf32> -> vector<8x8xf32>
    %249 = vector.extract_strided_slice %236 {offsets = [0, 0], sizes = [16, 32], strides = [1, 1]} : vector<64x32xf32> to vector<16x32xf32>
    %cst_129 = arith.constant dense<0.000000e+00> : vector<8x32xf32>
    %250 = tpu.matmul %244, %249, %cst_129 {dimension_numbers = #tpu.dot_dimension_numbers<[1], [0], [0], [1], [0, 0, 1, 1], [], []>} : vector<8x16xf32>, vector<16x32xf32>, vector<8x32xf32> -> vector<8x32xf32>
    %251 = vector.shape_cast %250 : vector<8x32xf32> to vector<8x1x32xf32>
    %252 = vector.broadcast %251 : vector<8x1x32xf32> to vector<8x8x32xf32>
    %253 = arith.mulf %252, %0 : vector<8x8x32xf32>
    %cst_130 = arith.constant dense<0.000000e+00> : vector<8x8xf32>
    %254 = vector.multi_reduction <add>, %253, %cst_130 [2] : vector<8x8x32xf32> to vector<8x8xf32>
    %255 = arith.addf %248, %254 : vector<8x8xf32>
    %256 = vector.extract_strided_slice %236 {offsets = [32, 0], sizes = [16, 32], strides = [1, 1]} : vector<64x32xf32> to vector<16x32xf32>
    %cst_131 = arith.constant dense<0.000000e+00> : vector<8x32xf32>
    %257 = tpu.matmul %245, %256, %cst_131 {dimension_numbers = #tpu.dot_dimension_numbers<[1], [0], [0], [1], [0, 0, 1, 1], [], []>} : vector<8x16xf32>, vector<16x32xf32>, vector<8x32xf32> -> vector<8x32xf32>
    %cst_132 = arith.constant 0.144337565 : f32
    %258 = vector.broadcast %cst_132 : f32 to vector<8x32xf32>
    %259 = arith.mulf %257, %258 : vector<8x32xf32>
    %260 = vector.shape_cast %259 : vector<8x32xf32> to vector<1x8x32xf32>
    %261 = vector.broadcast %260 : vector<1x8x32xf32> to vector<8x8x32xf32>
    %262 = arith.mulf %261, %0 : vector<8x8x32xf32>
    %cst_133 = arith.constant dense<0.000000e+00> : vector<8x8xf32>
    %263 = vector.multi_reduction <add>, %262, %cst_133 [2] : vector<8x8x32xf32> to vector<8x8xf32>
    %264 = arith.addf %255, %263 : vector<8x8xf32>
    %265 = vector.extract_strided_slice %238 {offsets = [0, 0], sizes = [1, 16], strides = [1, 1]} : vector<1x32xf32> to vector<1x16xf32>
    %cst_134 = arith.constant dense<0.000000e+00> : vector<1x8xf32>
    %266 = tpu.matmul %265, %247, %cst_134 {dimension_numbers = #tpu.dot_dimension_numbers<[1], [0], [0], [1], [0, 0, 1, 1], [], []>} : vector<1x16xf32>, vector<16x8xf32>, vector<1x8xf32> -> vector<1x8xf32>
    %cst_135 = arith.constant 0.144337565 : f32
    %267 = vector.broadcast %cst_135 : f32 to vector<1x8xf32>
    %268 = arith.mulf %266, %267 : vector<1x8xf32>
    %269 = vector.broadcast %268 : vector<1x8xf32> to vector<8x8xf32>
    %270 = arith.addf %264, %269 : vector<8x8xf32>
    %cst_136 = arith.constant -1.000000e+09 : f32
    %271 = vector.broadcast %cst_136 : f32 to vector<8x8xf32>
    %272 = arith.select %9, %270, %271 : vector<8x8xi1>, vector<8x8xf32>
    %cst_137 = arith.constant dense<0xFF800000> : vector<8xf32>
    %273 = vector.multi_reduction <maximumf>, %272, %cst_137 [1] : vector<8x8xf32> to vector<8xf32>
    %274 = vector.shape_cast %273 : vector<8xf32> to vector<8x1xf32>
    %275 = vector.broadcast %274 : vector<8x1xf32> to vector<8x8xf32>
    %276 = arith.subf %272, %275 : vector<8x8xf32>
    %277 = math.exp %276 : vector<8x8xf32>
    %cst_138 = arith.constant dense<0.000000e+00> : vector<8xf32>
    %278 = vector.multi_reduction <add>, %277, %cst_138 [1] : vector<8x8xf32> to vector<8xf32>
    %279 = vector.shape_cast %278 : vector<8xf32> to vector<8x1xf32>
    %280 = tpu.reciprocal %279 {approx = true} : vector<8x1xf32> -> vector<8x1xf32>
    %281 = vector.broadcast %280 : vector<8x1xf32> to vector<8x8xf32>
    %282 = arith.mulf %277, %281 : vector<8x8xf32>
    %cst_139 = arith.constant 0.000000e+00 : f32
    %283 = vector.broadcast %cst_139 : f32 to vector<8x8xf32>
    %284 = arith.select %9, %282, %283 : vector<8x8xi1>, vector<8x8xf32>
    %cst_140 = arith.constant dense<0.000000e+00> : vector<8x16xf32>
    %285 = tpu.matmul %284, %246, %cst_140 {dimension_numbers = #tpu.dot_dimension_numbers<[1], [0], [0], [1], [0, 0, 1, 1], [], []>} : vector<8x8xf32>, vector<8x16xf32>, vector<8x16xf32> -> vector<8x16xf32>
    %286 = vector.extract_strided_slice %240 {offsets = [0, 0], sizes = [16, 32], strides = [1, 1]} : vector<32x32xf32> to vector<16x32xf32>
    %cst_141 = arith.constant dense<0.000000e+00> : vector<8x32xf32>
    %287 = tpu.matmul %285, %286, %cst_141 {dimension_numbers = #tpu.dot_dimension_numbers<[1], [0], [0], [1], [0, 0, 1, 1], [], []>} : vector<8x16xf32>, vector<16x32xf32>, vector<8x32xf32> -> vector<8x32xf32>
    %288 = arith.addf %241, %287 : vector<8x32xf32>
    %289 = vector.extract_strided_slice %234 {offsets = [0, 16], sizes = [8, 16], strides = [1, 1]} : vector<8x96xf32> to vector<8x16xf32>
    %cst_142 = arith.constant 0.144337565 : f32
    %290 = vector.broadcast %cst_142 : f32 to vector<8x16xf32>
    %291 = arith.mulf %289, %290 : vector<8x16xf32>
    %292 = vector.extract_strided_slice %234 {offsets = [0, 48], sizes = [8, 16], strides = [1, 1]} : vector<8x96xf32> to vector<8x16xf32>
    %293 = vector.extract_strided_slice %234 {offsets = [0, 80], sizes = [8, 16], strides = [1, 1]} : vector<8x96xf32> to vector<8x16xf32>
    %294 = tpu.transpose %292, [1, 0] : vector<8x16xf32> -> vector<16x8xf32>
    %cst_143 = arith.constant dense<0.000000e+00> : vector<8x8xf32>
    %295 = tpu.matmul %291, %294, %cst_143 {dimension_numbers = #tpu.dot_dimension_numbers<[1], [0], [0], [1], [0, 0, 1, 1], [], []>} : vector<8x16xf32>, vector<16x8xf32>, vector<8x8xf32> -> vector<8x8xf32>
    %296 = vector.extract_strided_slice %236 {offsets = [16, 0], sizes = [16, 32], strides = [1, 1]} : vector<64x32xf32> to vector<16x32xf32>
    %cst_144 = arith.constant dense<0.000000e+00> : vector<8x32xf32>
    %297 = tpu.matmul %291, %296, %cst_144 {dimension_numbers = #tpu.dot_dimension_numbers<[1], [0], [0], [1], [0, 0, 1, 1], [], []>} : vector<8x16xf32>, vector<16x32xf32>, vector<8x32xf32> -> vector<8x32xf32>
    %298 = vector.shape_cast %297 : vector<8x32xf32> to vector<8x1x32xf32>
    %299 = vector.broadcast %298 : vector<8x1x32xf32> to vector<8x8x32xf32>
    %300 = arith.mulf %299, %0 : vector<8x8x32xf32>
    %cst_145 = arith.constant dense<0.000000e+00> : vector<8x8xf32>
    %301 = vector.multi_reduction <add>, %300, %cst_145 [2] : vector<8x8x32xf32> to vector<8x8xf32>
    %302 = arith.addf %295, %301 : vector<8x8xf32>
    %303 = vector.extract_strided_slice %236 {offsets = [48, 0], sizes = [16, 32], strides = [1, 1]} : vector<64x32xf32> to vector<16x32xf32>
    %cst_146 = arith.constant dense<0.000000e+00> : vector<8x32xf32>
    %304 = tpu.matmul %292, %303, %cst_146 {dimension_numbers = #tpu.dot_dimension_numbers<[1], [0], [0], [1], [0, 0, 1, 1], [], []>} : vector<8x16xf32>, vector<16x32xf32>, vector<8x32xf32> -> vector<8x32xf32>
    %cst_147 = arith.constant 0.144337565 : f32
    %305 = vector.broadcast %cst_147 : f32 to vector<8x32xf32>
    %306 = arith.mulf %304, %305 : vector<8x32xf32>
    %307 = vector.shape_cast %306 : vector<8x32xf32> to vector<1x8x32xf32>
    %308 = vector.broadcast %307 : vector<1x8x32xf32> to vector<8x8x32xf32>
    %309 = arith.mulf %308, %0 : vector<8x8x32xf32>
    %cst_148 = arith.constant dense<0.000000e+00> : vector<8x8xf32>
    %310 = vector.multi_reduction <add>, %309, %cst_148 [2] : vector<8x8x32xf32> to vector<8x8xf32>
    %311 = arith.addf %302, %310 : vector<8x8xf32>
    %312 = vector.extract_strided_slice %238 {offsets = [0, 16], sizes = [1, 16], strides = [1, 1]} : vector<1x32xf32> to vector<1x16xf32>
    %cst_149 = arith.constant dense<0.000000e+00> : vector<1x8xf32>
    %313 = tpu.matmul %312, %294, %cst_149 {dimension_numbers = #tpu.dot_dimension_numbers<[1], [0], [0], [1], [0, 0, 1, 1], [], []>} : vector<1x16xf32>, vector<16x8xf32>, vector<1x8xf32> -> vector<1x8xf32>
    %cst_150 = arith.constant 0.144337565 : f32
    %314 = vector.broadcast %cst_150 : f32 to vector<1x8xf32>
    %315 = arith.mulf %313, %314 : vector<1x8xf32>
    %316 = vector.broadcast %315 : vector<1x8xf32> to vector<8x8xf32>
    %317 = arith.addf %311, %316 : vector<8x8xf32>
    %cst_151 = arith.constant -1.000000e+09 : f32
    %318 = vector.broadcast %cst_151 : f32 to vector<8x8xf32>
    %319 = arith.select %9, %317, %318 : vector<8x8xi1>, vector<8x8xf32>
    %cst_152 = arith.constant dense<0xFF800000> : vector<8xf32>
    %320 = vector.multi_reduction <maximumf>, %319, %cst_152 [1] : vector<8x8xf32> to vector<8xf32>
    %321 = vector.shape_cast %320 : vector<8xf32> to vector<8x1xf32>
    %322 = vector.broadcast %321 : vector<8x1xf32> to vector<8x8xf32>
    %323 = arith.subf %319, %322 : vector<8x8xf32>
    %324 = math.exp %323 : vector<8x8xf32>
    %cst_153 = arith.constant dense<0.000000e+00> : vector<8xf32>
    %325 = vector.multi_reduction <add>, %324, %cst_153 [1] : vector<8x8xf32> to vector<8xf32>
    %326 = vector.shape_cast %325 : vector<8xf32> to vector<8x1xf32>
    %327 = tpu.reciprocal %326 {approx = true} : vector<8x1xf32> -> vector<8x1xf32>
    %328 = vector.broadcast %327 : vector<8x1xf32> to vector<8x8xf32>
    %329 = arith.mulf %324, %328 : vector<8x8xf32>
    %cst_154 = arith.constant 0.000000e+00 : f32
    %330 = vector.broadcast %cst_154 : f32 to vector<8x8xf32>
    %331 = arith.select %9, %329, %330 : vector<8x8xi1>, vector<8x8xf32>
    %cst_155 = arith.constant dense<0.000000e+00> : vector<8x16xf32>
    %332 = tpu.matmul %331, %293, %cst_155 {dimension_numbers = #tpu.dot_dimension_numbers<[1], [0], [0], [1], [0, 0, 1, 1], [], []>} : vector<8x8xf32>, vector<8x16xf32>, vector<8x16xf32> -> vector<8x16xf32>
    %333 = vector.extract_strided_slice %240 {offsets = [16, 0], sizes = [16, 32], strides = [1, 1]} : vector<32x32xf32> to vector<16x32xf32>
    %cst_156 = arith.constant dense<0.000000e+00> : vector<8x32xf32>
    %334 = tpu.matmul %332, %333, %cst_156 {dimension_numbers = #tpu.dot_dimension_numbers<[1], [0], [0], [1], [0, 0, 1, 1], [], []>} : vector<8x16xf32>, vector<16x32xf32>, vector<8x32xf32> -> vector<8x32xf32>
    %335 = arith.addf %288, %334 : vector<8x32xf32>
    %c1_157 = arith.constant 1 : index
    %c0_158 = arith.constant 0 : index
    %c0_159 = arith.constant 0 : index
    %336 = vector.load %arg13[%c1_157, %c0_158, %c0_159] : memref<2x1x32xf32, #tpu.memory_space<vmem>>, vector<1x1x32xf32>
    %337 = vector.shape_cast %336 : vector<1x1x32xf32> to vector<1x32xf32>
    %338 = vector.broadcast %337 : vector<1x32xf32> to vector<8x32xf32>
    %339 = arith.addf %335, %338 : vector<8x32xf32>
    %340 = arith.addf %339, %227 : vector<8x32xf32>
    %c1_160 = arith.constant 1 : index
    %c0_161 = arith.constant 0 : index
    %c0_162 = arith.constant 0 : index
    %341 = vector.load %arg14[%c1_160, %c0_161, %c0_162] : memref<2x1x32xf32, #tpu.memory_space<vmem>>, vector<1x1x32xf32>
    %342 = vector.shape_cast %341 : vector<1x1x32xf32> to vector<1x32xf32>
    %c1_163 = arith.constant 1 : index
    %c0_164 = arith.constant 0 : index
    %c0_165 = arith.constant 0 : index
    %343 = vector.load %arg15[%c1_163, %c0_164, %c0_165] : memref<2x1x32xf32, #tpu.memory_space<vmem>>, vector<1x1x32xf32>
    %344 = vector.shape_cast %343 : vector<1x1x32xf32> to vector<1x32xf32>
    %cst_166 = arith.constant dense<0.000000e+00> : vector<8xf32>
    %345 = vector.multi_reduction <add>, %340, %cst_166 [1] : vector<8x32xf32> to vector<8xf32>
    %346 = vector.shape_cast %345 : vector<8xf32> to vector<8x1xf32>
    %cst_167 = arith.constant 3.200000e+01 : f32
    %347 = vector.broadcast %cst_167 : f32 to vector<8x1xf32>
    %348 = arith.divf %346, %347 : vector<8x1xf32>
    %349 = vector.broadcast %348 : vector<8x1xf32> to vector<8x32xf32>
    %350 = arith.subf %340, %349 : vector<8x32xf32>
    %351 = arith.mulf %350, %350 : vector<8x32xf32>
    %cst_168 = arith.constant dense<0.000000e+00> : vector<8xf32>
    %352 = vector.multi_reduction <add>, %351, %cst_168 [1] : vector<8x32xf32> to vector<8xf32>
    %353 = vector.shape_cast %352 : vector<8xf32> to vector<8x1xf32>
    %cst_169 = arith.constant 3.200000e+01 : f32
    %354 = vector.broadcast %cst_169 : f32 to vector<8x1xf32>
    %355 = arith.divf %353, %354 : vector<8x1xf32>
    %356 = vector.broadcast %348 : vector<8x1xf32> to vector<8x32xf32>
    %357 = arith.subf %340, %356 : vector<8x32xf32>
    %cst_170 = arith.constant 1.000000e-07 : f32
    %358 = vector.broadcast %cst_170 : f32 to vector<8x1xf32>
    %359 = arith.addf %355, %358 : vector<8x1xf32>
    %360 = math.rsqrt %359 : vector<8x1xf32>
    %361 = vector.broadcast %360 : vector<8x1xf32> to vector<8x32xf32>
    %362 = arith.mulf %357, %361 : vector<8x32xf32>
    %363 = vector.broadcast %342 : vector<1x32xf32> to vector<8x32xf32>
    %364 = arith.mulf %362, %363 : vector<8x32xf32>
    %365 = vector.broadcast %344 : vector<1x32xf32> to vector<8x32xf32>
    %366 = arith.addf %364, %365 : vector<8x32xf32>
    %c1_171 = arith.constant 1 : index
    %c0_172 = arith.constant 0 : index
    %c0_173 = arith.constant 0 : index
    %367 = vector.load %arg16[%c1_171, %c0_172, %c0_173] : memref<2x32x64xf32, #tpu.memory_space<vmem>>, vector<1x32x64xf32>
    %368 = vector.shape_cast %367 : vector<1x32x64xf32> to vector<32x64xf32>
    %cst_174 = arith.constant dense<0.000000e+00> : vector<8x64xf32>
    %369 = tpu.matmul %366, %368, %cst_174 {dimension_numbers = #tpu.dot_dimension_numbers<[1], [0], [0], [1], [0, 0, 1, 1], [], []>} : vector<8x32xf32>, vector<32x64xf32>, vector<8x64xf32> -> vector<8x64xf32>
    %c1_175 = arith.constant 1 : index
    %c0_176 = arith.constant 0 : index
    %c0_177 = arith.constant 0 : index
    %370 = vector.load %arg17[%c1_175, %c0_176, %c0_177] : memref<2x1x64xf32, #tpu.memory_space<vmem>>, vector<1x1x64xf32>
    %371 = vector.shape_cast %370 : vector<1x1x64xf32> to vector<1x64xf32>
    %372 = vector.broadcast %371 : vector<1x64xf32> to vector<8x64xf32>
    %373 = arith.addf %369, %372 : vector<8x64xf32>
    %cst_178 = arith.constant 5.000000e-01 : f32
    %374 = vector.broadcast %cst_178 : f32 to vector<8x64xf32>
    %375 = arith.mulf %374, %373 : vector<8x64xf32>
    %cst_179 = arith.constant 0.707106769 : f32
    %376 = vector.broadcast %cst_179 : f32 to vector<8x64xf32>
    %377 = arith.mulf %373, %376 : vector<8x64xf32>
    %378 = math.erf %377 : vector<8x64xf32>
    %cst_180 = arith.constant 1.000000e+00 : f32
    %379 = vector.broadcast %cst_180 : f32 to vector<8x64xf32>
    %380 = arith.addf %379, %378 : vector<8x64xf32>
    %381 = arith.mulf %375, %380 : vector<8x64xf32>
    %c1_181 = arith.constant 1 : index
    %c0_182 = arith.constant 0 : index
    %c0_183 = arith.constant 0 : index
    %382 = vector.load %arg18[%c1_181, %c0_182, %c0_183] : memref<2x64x32xf32, #tpu.memory_space<vmem>>, vector<1x64x32xf32>
    %383 = vector.shape_cast %382 : vector<1x64x32xf32> to vector<64x32xf32>
    %cst_184 = arith.constant dense<0.000000e+00> : vector<8x32xf32>
    %384 = tpu.matmul %381, %383, %cst_184 {dimension_numbers = #tpu.dot_dimension_numbers<[1], [0], [0], [1], [0, 0, 1, 1], [], []>} : vector<8x64xf32>, vector<64x32xf32>, vector<8x32xf32> -> vector<8x32xf32>
    %c1_185 = arith.constant 1 : index
    %c0_186 = arith.constant 0 : index
    %c0_187 = arith.constant 0 : index
    %385 = vector.load %arg19[%c1_185, %c0_186, %c0_187] : memref<2x1x32xf32, #tpu.memory_space<vmem>>, vector<1x1x32xf32>
    %386 = vector.shape_cast %385 : vector<1x1x32xf32> to vector<1x32xf32>
    %387 = vector.broadcast %386 : vector<1x32xf32> to vector<8x32xf32>
    %388 = arith.addf %384, %387 : vector<8x32xf32>
    %389 = arith.addf %388, %366 : vector<8x32xf32>
    %c1_188 = arith.constant 1 : index
    %c0_189 = arith.constant 0 : index
    %c0_190 = arith.constant 0 : index
    %390 = vector.load %arg20[%c1_188, %c0_189, %c0_190] : memref<2x1x32xf32, #tpu.memory_space<vmem>>, vector<1x1x32xf32>
    %391 = vector.shape_cast %390 : vector<1x1x32xf32> to vector<1x32xf32>
    %c1_191 = arith.constant 1 : index
    %c0_192 = arith.constant 0 : index
    %c0_193 = arith.constant 0 : index
    %392 = vector.load %arg21[%c1_191, %c0_192, %c0_193] : memref<2x1x32xf32, #tpu.memory_space<vmem>>, vector<1x1x32xf32>
    %393 = vector.shape_cast %392 : vector<1x1x32xf32> to vector<1x32xf32>
    %cst_194 = arith.constant dense<0.000000e+00> : vector<8xf32>
    %394 = vector.multi_reduction <add>, %389, %cst_194 [1] : vector<8x32xf32> to vector<8xf32>
    %395 = vector.shape_cast %394 : vector<8xf32> to vector<8x1xf32>
    %cst_195 = arith.constant 3.200000e+01 : f32
    %396 = vector.broadcast %cst_195 : f32 to vector<8x1xf32>
    %397 = arith.divf %395, %396 : vector<8x1xf32>
    %398 = vector.broadcast %397 : vector<8x1xf32> to vector<8x32xf32>
    %399 = arith.subf %389, %398 : vector<8x32xf32>
    %400 = arith.mulf %399, %399 : vector<8x32xf32>
    %cst_196 = arith.constant dense<0.000000e+00> : vector<8xf32>
    %401 = vector.multi_reduction <add>, %400, %cst_196 [1] : vector<8x32xf32> to vector<8xf32>
    %402 = vector.shape_cast %401 : vector<8xf32> to vector<8x1xf32>
    %cst_197 = arith.constant 3.200000e+01 : f32
    %403 = vector.broadcast %cst_197 : f32 to vector<8x1xf32>
    %404 = arith.divf %402, %403 : vector<8x1xf32>
    %405 = vector.broadcast %397 : vector<8x1xf32> to vector<8x32xf32>
    %406 = arith.subf %389, %405 : vector<8x32xf32>
    %cst_198 = arith.constant 1.000000e-07 : f32
    %407 = vector.broadcast %cst_198 : f32 to vector<8x1xf32>
    %408 = arith.addf %404, %407 : vector<8x1xf32>
    %409 = math.rsqrt %408 : vector<8x1xf32>
    %410 = vector.broadcast %409 : vector<8x1xf32> to vector<8x32xf32>
    %411 = arith.mulf %406, %410 : vector<8x32xf32>
    %412 = vector.broadcast %391 : vector<1x32xf32> to vector<8x32xf32>
    %413 = arith.mulf %411, %412 : vector<8x32xf32>
    %414 = vector.broadcast %393 : vector<1x32xf32> to vector<8x32xf32>
    %415 = arith.addf %413, %414 : vector<8x32xf32>
    %416 = vector.extract_strided_slice %415 {offsets = [0, 0], sizes = [1, 32], strides = [1, 1]} : vector<8x32xf32> to vector<1x32xf32>
    %c0_199 = arith.constant 0 : index
    %c0_200 = arith.constant 0 : index
    %417 = vector.load %arg22[%c0_199, %c0_200] : memref<32x32xf32, #tpu.memory_space<vmem>>, vector<32x32xf32>
    %cst_201 = arith.constant dense<0.000000e+00> : vector<1x32xf32>
    %418 = tpu.matmul %416, %417, %cst_201 {dimension_numbers = #tpu.dot_dimension_numbers<[1], [0], [0], [1], [0, 0, 1, 1], [], []>} : vector<1x32xf32>, vector<32x32xf32>, vector<1x32xf32> -> vector<1x32xf32>
    %c0_202 = arith.constant 0 : index
    %c0_203 = arith.constant 0 : index
    %419 = vector.load %arg23[%c0_202, %c0_203] : memref<1x32xf32, #tpu.memory_space<vmem>>, vector<1x32xf32>
    %420 = arith.addf %418, %419 : vector<1x32xf32>
    %cst_204 = arith.constant 5.000000e-01 : f32
    %421 = vector.broadcast %cst_204 : f32 to vector<1x32xf32>
    %422 = arith.mulf %421, %420 : vector<1x32xf32>
    %cst_205 = arith.constant 0.707106769 : f32
    %423 = vector.broadcast %cst_205 : f32 to vector<1x32xf32>
    %424 = arith.mulf %420, %423 : vector<1x32xf32>
    %425 = math.erf %424 : vector<1x32xf32>
    %cst_206 = arith.constant 1.000000e+00 : f32
    %426 = vector.broadcast %cst_206 : f32 to vector<1x32xf32>
    %427 = arith.addf %426, %425 : vector<1x32xf32>
    %428 = arith.mulf %422, %427 : vector<1x32xf32>
    %c0_207 = arith.constant 0 : index
    %c0_208 = arith.constant 0 : index
    %429 = vector.load %arg24[%c0_207, %c0_208] : memref<32x2xf32, #tpu.memory_space<vmem>>, vector<32x2xf32>
    %cst_209 = arith.constant dense<0.000000e+00> : vector<1x2xf32>
    %430 = tpu.matmul %428, %429, %cst_209 {dimension_numbers = #tpu.dot_dimension_numbers<[1], [0], [0], [1], [0, 0, 1, 1], [], []>} : vector<1x32xf32>, vector<32x2xf32>, vector<1x2xf32> -> vector<1x2xf32>
    %c0_210 = arith.constant 0 : index
    %c0_211 = arith.constant 0 : index
    %431 = vector.load %arg25[%c0_210, %c0_211] : memref<1x2xf32, #tpu.memory_space<vmem>>, vector<1x2xf32>
    %432 = arith.addf %430, %431 : vector<1x2xf32>
    %c0_212 = arith.constant 0 : index
    %c0_213 = arith.constant 0 : index
    %c0_214 = arith.constant 0 : index
    %433 = vector.load %arg26[%c0_212, %c0_213, %c0_214] : memref<1x1x2xf32, #tpu.memory_space<vmem>>, vector<1x1x2xf32>
    %434 = vector.shape_cast %433 : vector<1x1x2xf32> to vector<1x2xf32>
    %435 = vector.shape_cast %432 : vector<1x2xf32> to vector<1x1x2xf32>
    tpu.vector_store %arg26[%c0_212, %c0_213, %c0_214], %435 {strides = array<i32>} : memref<1x1x2xf32, #tpu.memory_space<vmem>>, vector<1x1x2xf32>,
    return
  }
  func.func @transform_0(%arg0: i32) -> (i32, i32, i32) {
    %c0_i32 = arith.constant 0 : i32
    %c0_i32_0 = arith.constant 0 : i32
    %c0_i32_1 = arith.constant 0 : i32
    return %arg0, %c0_i32, %c0_i32_0 : i32, i32, i32
  }
  func.func @transform_1(%arg0: i32) -> (i32, i32, i32) {
    %c0_i32 = arith.constant 0 : i32
    %c0_i32_0 = arith.constant 0 : i32
    %c0_i32_1 = arith.constant 0 : i32
    return %arg0, %c0_i32, %c0_i32_0 : i32, i32, i32
  }
  func.func @transform_2(%arg0: i32) -> (i32, i32, i32) {
    %c0_i32 = arith.constant 0 : i32
    %c0_i32_0 = arith.constant 0 : i32
    %c0_i32_1 = arith.constant 0 : i32
    return %arg0, %c0_i32, %c0_i32_0 : i32, i32, i32
  }
  func.func @transform_3(%arg0: i32) -> (i32, i32, i32) {
    %c0_i32 = arith.constant 0 : i32
    %c0_i32_0 = arith.constant 0 : i32
    %c0_i32_1 = arith.constant 0 : i32
    %c0_i32_2 = arith.constant 0 : i32
    return %c0_i32, %c0_i32_0, %c0_i32_1 : i32, i32, i32
  }
  func.func @transform_4(%arg0: i32) -> (i32, i32) {
    %c0_i32 = arith.constant 0 : i32
    %c0_i32_0 = arith.constant 0 : i32
    %c0_i32_1 = arith.constant 0 : i32
    return %c0_i32, %c0_i32_0 : i32, i32
  }
  func.func @transform_5(%arg0: i32) -> (i32, i32) {
    %c0_i32 = arith.constant 0 : i32
    %c0_i32_0 = arith.constant 0 : i32
    %c0_i32_1 = arith.constant 0 : i32
    return %c0_i32, %c0_i32_0 : i32, i32
  }
  func.func @transform_6(%arg0: i32) -> (i32, i32) {
    %c0_i32 = arith.constant 0 : i32
    %c0_i32_0 = arith.constant 0 : i32
    %c0_i32_1 = arith.constant 0 : i32
    return %c0_i32, %c0_i32_0 : i32, i32
  }
  func.func @transform_7(%arg0: i32) -> (i32, i32, i32) {
    %c0_i32 = arith.constant 0 : i32
    %c0_i32_0 = arith.constant 0 : i32
    %c0_i32_1 = arith.constant 0 : i32
    %c0_i32_2 = arith.constant 0 : i32
    return %c0_i32, %c0_i32_0, %c0_i32_1 : i32, i32, i32
  }
  func.func @transform_8(%arg0: i32) -> (i32, i32, i32) {
    %c0_i32 = arith.constant 0 : i32
    %c0_i32_0 = arith.constant 0 : i32
    %c0_i32_1 = arith.constant 0 : i32
    %c0_i32_2 = arith.constant 0 : i32
    return %c0_i32, %c0_i32_0, %c0_i32_1 : i32, i32, i32
  }
  func.func @transform_9(%arg0: i32) -> (i32, i32, i32) {
    %c0_i32 = arith.constant 0 : i32
    %c0_i32_0 = arith.constant 0 : i32
    %c0_i32_1 = arith.constant 0 : i32
    %c0_i32_2 = arith.constant 0 : i32
    return %c0_i32, %c0_i32_0, %c0_i32_1 : i32, i32, i32
  }
  func.func @transform_10(%arg0: i32) -> (i32, i32, i32) {
    %c0_i32 = arith.constant 0 : i32
    %c0_i32_0 = arith.constant 0 : i32
    %c0_i32_1 = arith.constant 0 : i32
    %c0_i32_2 = arith.constant 0 : i32
    return %c0_i32, %c0_i32_0, %c0_i32_1 : i32, i32, i32
  }
  func.func @transform_11(%arg0: i32) -> (i32, i32, i32) {
    %c0_i32 = arith.constant 0 : i32
    %c0_i32_0 = arith.constant 0 : i32
    %c0_i32_1 = arith.constant 0 : i32
    %c0_i32_2 = arith.constant 0 : i32
    return %c0_i32, %c0_i32_0, %c0_i32_1 : i32, i32, i32
  }
  func.func @transform_12(%arg0: i32) -> (i32, i32, i32) {
    %c0_i32 = arith.constant 0 : i32
    %c0_i32_0 = arith.constant 0 : i32
    %c0_i32_1 = arith.constant 0 : i32
    %c0_i32_2 = arith.constant 0 : i32
    return %c0_i32, %c0_i32_0, %c0_i32_1 : i32, i32, i32
  }
  func.func @transform_13(%arg0: i32) -> (i32, i32, i32) {
    %c0_i32 = arith.constant 0 : i32
    %c0_i32_0 = arith.constant 0 : i32
    %c0_i32_1 = arith.constant 0 : i32
    %c0_i32_2 = arith.constant 0 : i32
    return %c0_i32, %c0_i32_0, %c0_i32_1 : i32, i32, i32
  }
  func.func @transform_14(%arg0: i32) -> (i32, i32, i32) {
    %c0_i32 = arith.constant 0 : i32
    %c0_i32_0 = arith.constant 0 : i32
    %c0_i32_1 = arith.constant 0 : i32
    %c0_i32_2 = arith.constant 0 : i32
    return %c0_i32, %c0_i32_0, %c0_i32_1 : i32, i32, i32
  }
  func.func @transform_15(%arg0: i32) -> (i32, i32, i32) {
    %c0_i32 = arith.constant 0 : i32
    %c0_i32_0 = arith.constant 0 : i32
    %c0_i32_1 = arith.constant 0 : i32
    %c0_i32_2 = arith.constant 0 : i32
    return %c0_i32, %c0_i32_0, %c0_i32_1 : i32, i32, i32
  }
  func.func @transform_16(%arg0: i32) -> (i32, i32, i32) {
    %c0_i32 = arith.constant 0 : i32
    %c0_i32_0 = arith.constant 0 : i32
    %c0_i32_1 = arith.constant 0 : i32
    %c0_i32_2 = arith.constant 0 : i32
    return %c0_i32, %c0_i32_0, %c0_i32_1 : i32, i32, i32
  }
  func.func @transform_17(%arg0: i32) -> (i32, i32, i32) {
    %c0_i32 = arith.constant 0 : i32
    %c0_i32_0 = arith.constant 0 : i32
    %c0_i32_1 = arith.constant 0 : i32
    %c0_i32_2 = arith.constant 0 : i32
    return %c0_i32, %c0_i32_0, %c0_i32_1 : i32, i32, i32
  }
  func.func @transform_18(%arg0: i32) -> (i32, i32, i32) {
    %c0_i32 = arith.constant 0 : i32
    %c0_i32_0 = arith.constant 0 : i32
    %c0_i32_1 = arith.constant 0 : i32
    %c0_i32_2 = arith.constant 0 : i32
    return %c0_i32, %c0_i32_0, %c0_i32_1 : i32, i32, i32
  }
  func.func @transform_19(%arg0: i32) -> (i32, i32, i32) {
    %c0_i32 = arith.constant 0 : i32
    %c0_i32_0 = arith.constant 0 : i32
    %c0_i32_1 = arith.constant 0 : i32
    %c0_i32_2 = arith.constant 0 : i32
    return %c0_i32, %c0_i32_0, %c0_i32_1 : i32, i32, i32
  }
  func.func @transform_20(%arg0: i32) -> (i32, i32, i32) {
    %c0_i32 = arith.constant 0 : i32
    %c0_i32_0 = arith.constant 0 : i32
    %c0_i32_1 = arith.constant 0 : i32
    %c0_i32_2 = arith.constant 0 : i32
    return %c0_i32, %c0_i32_0, %c0_i32_1 : i32, i32, i32
  }
  func.func @transform_21(%arg0: i32) -> (i32, i32) {
    %c0_i32 = arith.constant 0 : i32
    %c0_i32_0 = arith.constant 0 : i32
    %c0_i32_1 = arith.constant 0 : i32
    return %c0_i32, %c0_i32_0 : i32, i32
  }
  func.func @transform_22(%arg0: i32) -> (i32, i32) {
    %c0_i32 = arith.constant 0 : i32
    %c0_i32_0 = arith.constant 0 : i32
    %c0_i32_1 = arith.constant 0 : i32
    return %c0_i32, %c0_i32_0 : i32, i32
  }
  func.func @transform_23(%arg0: i32) -> (i32, i32) {
    %c0_i32 = arith.constant 0 : i32
    %c0_i32_0 = arith.constant 0 : i32
    %c0_i32_1 = arith.constant 0 : i32
    return %c0_i32, %c0_i32_0 : i32, i32
  }
  func.func @transform_24(%arg0: i32) -> (i32, i32) {
    %c0_i32 = arith.constant 0 : i32
    %c0_i32_0 = arith.constant 0 : i32
    %c0_i32_1 = arith.constant 0 : i32
    return %c0_i32, %c0_i32_0 : i32, i32
  }
  func.func @transform_25(%arg0: i32) -> (i32, i32, i32) {
    %c0_i32 = arith.constant 0 : i32
    %c0_i32_0 = arith.constant 0 : i32
    %c0_i32_1 = arith.constant 0 : i32
    return %arg0, %c0_i32, %c0_i32_0 : i32, i32, i32
  }
}

</mosaic_0001>

<llo_original>
// kernel: _loss_fn.1
$region0: #{_loss_fn.1}
  #allocation0 [shape = 'u32[]', space=smem, size = 0x4, offset = 0x4, fixed_abs, tag = 'smem constant byte address 0x4 - core index']
  #allocation1 [shape = 'u32[144,128]{1,0:T(1,128)}', space=vmem, size = 0x12000, scoped, tag = 'internal scratch']
  %s0 = inlined_call_operand.vmem [shape: f32[2,8,32], index: 0, kind: input, shape index: {}]
  %s1 = inlined_call_operand.vmem [shape: f32[2,8,1], index: 1, kind: input, shape index: {}]
  %s2 = inlined_call_operand.vmem [shape: f32[2,1,8], index: 2, kind: input, shape index: {}]
  %s3 = inlined_call_operand.vmem [shape: f32[8,8,32], index: 3, kind: input, shape index: {}]
  %s4 = inlined_call_operand.vmem [shape: f32[8,32], index: 4, kind: input, shape index: {}]
  %s5 = inlined_call_operand.vmem [shape: f32[1,32], index: 5, kind: input, shape index: {}]
  %s6 = inlined_call_operand.vmem [shape: f32[1,32], index: 6, kind: input, shape index: {}]
  %s7 = inlined_call_operand.vmem [shape: f32[2,32,96], index: 7, kind: input, shape index: {}]
  %s8 = inlined_call_operand.vmem [shape: f32[2,1,96], index: 8, kind: input, shape index: {}]
  %s9 = inlined_call_operand.vmem [shape: f32[2,64,32], index: 9, kind: input, shape index: {}]
  %s10 = inlined_call_operand.vmem [shape: f32[2,1,32], index: 10, kind: input, shape index: {}]
  %s11 = inlined_call_operand.vmem [shape: f32[2,32,32], index: 11, kind: input, shape index: {}]
  %s12 = inlined_call_operand.vmem [shape: f32[2,1,32], index: 12, kind: input, shape index: {}]
  %s13 = inlined_call_operand.vmem [shape: f32[2,1,32], index: 13, kind: input, shape index: {}]
  %s14 = inlined_call_operand.vmem [shape: f32[2,1,32], index: 14, kind: input, shape index: {}]
  %s15 = inlined_call_operand.vmem [shape: f32[2,32,64], index: 15, kind: input, shape index: {}]
  %s16 = inlined_call_operand.vmem [shape: f32[2,1,64], index: 16, kind: input, shape index: {}]
  %s17 = inlined_call_operand.vmem [shape: f32[2,64,32], index: 17, kind: input, shape index: {}]
  %s18 = inlined_call_operand.vmem [shape: f32[2,1,32], index: 18, kind: input, shape index: {}]
  %s19 = inlined_call_operand.vmem [shape: f32[2,1,32], index: 19, kind: input, shape index: {}]
  %s20 = inlined_call_operand.vmem [shape: f32[2,1,32], index: 20, kind: input, shape index: {}]
  %s21 = inlined_call_operand.vmem [shape: f32[32,32], index: 21, kind: input, shape index: {}]
  %s22 = inlined_call_operand.vmem [shape: f32[1,32], index: 22, kind: input, shape index: {}]
  %s23 = inlined_call_operand.vmem [shape: f32[32,2], index: 23, kind: input, shape index: {}]
  %s24 = inlined_call_operand.vmem [shape: f32[1,2], index: 24, kind: input, shape index: {}]
  %s25 = inlined_call_operand.vmem [shape: f32[2,1,2], index: 25, kind: output, shape index: {}]
  %s26 = sld [smem:[#allocation0]]
  $region133: #{_loss_fn.1} parent=0
    _
  %s28 = ssub.s32 1, %s26
  %s29 = scalar_select 0, %s28, %s26
  loop: start=0, step=1, limit=4
  $region2: #{_loss_fn.1} parent=0 // loop_pre_header
    _
  $region3: #{_loss_fn.1} parent=0 // loop_header
    %s31 = sphi 0, %s35
    %p32 = scmp.ge.s32.totalorder %s31, 4
    %s41 = sphi 0, %s43
    %s44 = sphi 0, %s41
    %s45 = sphi 0, %s44
    %s61 = sphi 0, %s45
    %s67 = sphi 0, %s69
    %s70 = sphi 0, %s67
    %s71 = sphi 0, %s70
    %s87 = sphi 0, %s71
    %s93 = sphi 0, %s95
    %s96 = sphi 0, %s93
    %s97 = sphi 0, %s96
    %s113 = sphi 0, %s97
    %s117 = sphi 0, %s117
    %s119 = sphi 0, %s117
    %s120 = sphi 0, %s119
    %s134 = sphi 0, %s120
    %s138 = sphi 0, %s138
    %s140 = sphi 0, %s138
    %s141 = sphi 0, %s140
    %s155 = sphi 0, %s141
    %s159 = sphi 0, %s159
    %s161 = sphi 0, %s159
    %s162 = sphi 0, %s161
    %s176 = sphi 0, %s162
    %s180 = sphi 0, %s180
    %s182 = sphi 0, %s180
    %s183 = sphi 0, %s182
    %s197 = sphi 0, %s183
    %s201 = sphi 0, %s201
    %s203 = sphi 0, %s201
    %s204 = sphi 0, %s203
    %s218 = sphi 0, %s204
    %s222 = sphi 0, %s222
    %s224 = sphi 0, %s222
    %s225 = sphi 0, %s224
    %s239 = sphi 0, %s225
    %s243 = sphi 0, %s243
    %s245 = sphi 0, %s243
    %s246 = sphi 0, %s245
    %s260 = sphi 0, %s246
    %s264 = sphi 0, %s264
    %s266 = sphi 0, %s264
    %s267 = sphi 0, %s266
    %s281 = sphi 0, %s267
    %s285 = sphi 0, %s285
    %s287 = sphi 0, %s285
    %s288 = sphi 0, %s287
    %s302 = sphi 0, %s288
    %s306 = sphi 0, %s306
    %s308 = sphi 0, %s306
    %s309 = sphi 0, %s308
    %s323 = sphi 0, %s309
    %s327 = sphi 0, %s327
    %s329 = sphi 0, %s327
    %s330 = sphi 0, %s329
    %s344 = sphi 0, %s330
    %s348 = sphi 0, %s348
    %s350 = sphi 0, %s348
    %s351 = sphi 0, %s350
    %s365 = sphi 0, %s351
    %s369 = sphi 0, %s369
    %s371 = sphi 0, %s369
    %s372 = sphi 0, %s371
    %s386 = sphi 0, %s372
    %s390 = sphi 0, %s390
    %s392 = sphi 0, %s390
    %s393 = sphi 0, %s392
    %s407 = sphi 0, %s393
    %s411 = sphi 0, %s411
    %s413 = sphi 0, %s411
    %s414 = sphi 0, %s413
    %s428 = sphi 0, %s414
    %s432 = sphi 0, %s432
    %s434 = sphi 0, %s432
    %s435 = sphi 0, %s434
    %s449 = sphi 0, %s435
    %s453 = sphi 0, %s453
    %s455 = sphi 0, %s453
    %s456 = sphi 0, %s455
    %s470 = sphi 0, %s456
    %s474 = sphi 0, %s474
    %s476 = sphi 0, %s474
    %s477 = sphi 0, %s476
    %s491 = sphi 0, %s477
    %s495 = sphi 0, %s495
    %s497 = sphi 0, %s495
    %s498 = sphi 0, %s497
    %s512 = sphi 0, %s498
    %s516 = sphi 0, %s516
    %s518 = sphi 0, %s516
    %s519 = sphi 0, %s518
    %s533 = sphi 0, %s519
    %s537 = sphi 0, %s537
    %s539 = sphi 0, %s537
    %s540 = sphi 0, %s539
    %s554 = sphi 0, %s540
    %s558 = sphi 0, %s558
    %s560 = sphi 0, %s558
    %s561 = sphi 0, %s560
    %s575 = sphi 0, %s561
    %s581 = sphi 0, %s583
    %s584 = sphi 0, %s581
    %s585 = sphi 0, %s584
    %s601 = sphi 0, %s585
  $region4: #{_loss_fn.1} parent=0 // loop_header_branch
    %34 = sbr.rel (%p32) target = $region8
  $region5: #{_loss_fn.1} parent=0 // loop_body
    %s36 = ssub.s32 %s31, 1
    %s37 = ssub.s32 %s31, 2
    %s38 = sadd.s32 %s31, 1
    %s39 = ssub.s32 %s31, %s38
    %p40 = scmp.eq.s32.totalorder %s39, 0
    %s42 = sadd.s32 %s41, 1
    %s43 = scalar_select %p40, %s41, %s42
    %p46 = pneg %p40
    %p47 = scmp.eq.s32.totalorder %s31, 1
    %p48 = por %p46, %p47
    %p49 = scmp.ne.s32.totalorder %s41, %s44
    %p50 = scmp.eq.s32.totalorder %s31, 0
    %p51 = por %p49, %p50
    %p52 = scmp.ne.s32.totalorder %s41, %s44
    %p53 = scmp.eq.s32.totalorder %s36, 1
    %p54 = por %p52, %p53
    %p55 = scmp.ne.s32.totalorder %s44, %s45
    %p56 = scmp.eq.s32.totalorder %s36, 0
    %p57 = por %p55, %p56
    %p58 = scmp.ne.s32.totalorder %s44, %s45
    %p59 = scmp.eq.s32.totalorder %s37, 1
    %p60 = por %p58, %p59
    %p62 = scmp.ne.s32.totalorder %s45, %s61
    %p63 = scmp.eq.s32.totalorder %s37, 0
    %p64 = por %p62, %p63
    %s65 = ssub.s32 %s31, %s38
    %p66 = scmp.eq.s32.totalorder %s65, 0
    %s68 = sadd.s32 %s67, 1
    %s69 = scalar_select %p66, %s67, %s68
    %p72 = pneg %p66
    %p73 = scmp.eq.s32.totalorder %s31, 1
    %p74 = por %p72, %p73
    %p75 = scmp.ne.s32.totalorder %s67, %s70
    %p76 = scmp.eq.s32.totalorder %s31, 0
    %p77 = por %p75, %p76
    %p78 = scmp.ne.s32.totalorder %s67, %s70
    %p79 = scmp.eq.s32.totalorder %s36, 1
    %p80 = por %p78, %p79
    %p81 = scmp.ne.s32.totalorder %s70, %s71
    %p82 = scmp.eq.s32.totalorder %s36, 0
    %p83 = por %p81, %p82
    %p84 = scmp.ne.s32.totalorder %s70, %s71
    %p85 = scmp.eq.s32.totalorder %s37, 1
    %p86 = por %p84, %p85
    %p88 = scmp.ne.s32.totalorder %s71, %s87
    %p89 = scmp.eq.s32.totalorder %s37, 0
    %p90 = por %p88, %p89
    %s91 = ssub.s32 %s31, %s38
    %p92 = scmp.eq.s32.totalorder %s91, 0
    %s94 = sadd.s32 %s93, 1
    %s95 = scalar_select %p92, %s93, %s94
    %p98 = pneg %p92
    %p99 = scmp.eq.s32.totalorder %s31, 1
    %p100 = por %p98, %p99
    %p101 = scmp.ne.s32.totalorder %s93, %s96
    %p102 = scmp.eq.s32.totalorder %s31, 0
    %p103 = por %p101, %p102
    %p104 = scmp.ne.s32.totalorder %s93, %s96
    %p105 = scmp.eq.s32.totalorder %s36, 1
    %p106 = por %p104, %p105
    %p107 = scmp.ne.s32.totalorder %s96, %s97
    %p108 = scmp.eq.s32.totalorder %s36, 0
    %p109 = por %p107, %p108
    %p110 = scmp.ne.s32.totalorder %s96, %s97
    %p111 = scmp.eq.s32.totalorder %s37, 1
    %p112 = por %p110, %p111
    %p114 = scmp.ne.s32.totalorder %s97, %s113
    %p115 = scmp.eq.s32.totalorder %s37, 0
    %p116 = por %p114, %p115
    %s118 = sadd.s32 %s117, 1
    %p121 = scmp.eq.s32.totalorder %s31, 1
    %p122 = scmp.ne.s32.totalorder %s117, %s119
    %p123 = scmp.eq.s32.totalorder %s31, 0
    %p124 = por %p122, %p123
    %p125 = scmp.ne.s32.totalorder %s117, %s119
    %p126 = scmp.eq.s32.totalorder %s36, 1
    %p127 = por %p125, %p126
    %p128 = scmp.ne.s32.totalorder %s119, %s120
    %p129 = scmp.eq.s32.totalorder %s36, 0
    %p130 = por %p128, %p129
    %p131 = scmp.ne.s32.totalorder %s119, %s120
    %p132 = scmp.eq.s32.totalorder %s37, 1
    %p133 = por %p131, %p132
    %p135 = scmp.ne.s32.totalorder %s120, %s134
    %p136 = scmp.eq.s32.totalorder %s37, 0
    %p137 = por %p135, %p136
    %s139 = sadd.s32 %s138, 1
    %p142 = scmp.eq.s32.totalorder %s31, 1
    %p143 = scmp.ne.s32.totalorder %s138, %s140
    %p144 = scmp.eq.s32.totalorder %s31, 0
    %p145 = por %p143, %p144
    %p146 = scmp.ne.s32.totalorder %s138, %s140
    %p147 = scmp.eq.s32.totalorder %s36, 1
    %p148 = por %p146, %p147
    %p149 = scmp.ne.s32.totalorder %s140, %s141
    %p150 = scmp.eq.s32.totalorder %s36, 0
    %p151 = por %p149, %p150
    %p152 = scmp.ne.s32.totalorder %s140, %s141
    %p153 = scmp.eq.s32.totalorder %s37, 1
    %p154 = por %p152, %p153
    %p156 = scmp.ne.s32.totalorder %s141, %s155
    %p157 = scmp.eq.s32.totalorder %s37, 0
    %p158 = por %p156, %p157
    %s160 = sadd.s32 %s159, 1
    %p163 = scmp.eq.s32.totalorder %s31, 1
    %p164 = scmp.ne.s32.totalorder %s159, %s161
    %p165 = scmp.eq.s32.totalorder %s31, 0
    %p166 = por %p164, %p165
    %p167 = scmp.ne.s32.totalorder %s159, %s161
    %p168 = scmp.eq.s32.totalorder %s36, 1
    %p169 = por %p167, %p168
    %p170 = scmp.ne.s32.totalorder %s161, %s162
    %p171 = scmp.eq.s32.totalorder %s36, 0
    %p172 = por %p170, %p171
    %p173 = scmp.ne.s32.totalorder %s161, %s162
    %p174 = scmp.eq.s32.totalorder %s37, 1
    %p175 = por %p173, %p174
    %p177 = scmp.ne.s32.totalorder %s162, %s176
    %p178 = scmp.eq.s32.totalorder %s37, 0
    %p179 = por %p177, %p178
    %s181 = sadd.s32 %s180, 1
    %p184 = scmp.eq.s32.totalorder %s31, 1
    %p185 = scmp.ne.s32.totalorder %s180, %s182
    %p186 = scmp.eq.s32.totalorder %s31, 0
    %p187 = por %p185, %p186
    %p188 = scmp.ne.s32.totalorder %s180, %s182
    %p189 = scmp.eq.s32.totalorder %s36, 1
    %p190 = por %p188, %p189
    %p191 = scmp.ne.s32.totalorder %s182, %s183
    %p192 = scmp.eq.s32.totalorder %s36, 0
    %p193 = por %p191, %p192
    %p194 = scmp.ne.s32.totalorder %s182, %s183
    %p195 = scmp.eq.s32.totalorder %s37, 1
    %p196 = por %p194, %p195
    %p198 = scmp.ne.s32.totalorder %s183, %s197
    %p199 = scmp.eq.s32.totalorder %s37, 0
    %p200 = por %p198, %p199
    %s202 = sadd.s32 %s201, 1
    %p205 = scmp.eq.s32.totalorder %s31, 1
    %p206 = scmp.ne.s32.totalorder %s201, %s203
    %p207 = scmp.eq.s32.totalorder %s31, 0
    %p208 = por %p206, %p207
    %p209 = scmp.ne.s32.totalorder %s201, %s203
    %p210 = scmp.eq.s32.totalorder %s36, 1
    %p211 = por %p209, %p210
    %p212 = scmp.ne.s32.totalorder %s203, %s204
    %p213 = scmp.eq.s32.totalorder %s36, 0
    %p214 = por %p212, %p213
    %p215 = scmp.ne.s32.totalorder %s203, %s204
    %p216 = scmp.eq.s32.totalorder %s37, 1
    %p217 = por %p215, %p216
    %p219 = scmp.ne.s32.totalorder %s204, %s218
    %p220 = scmp.eq.s32.totalorder %s37, 0
    %p221 = por %p219, %p220
    %s223 = sadd.s32 %s222, 1
    %p226 = scmp.eq.s32.totalorder %s31, 1
    %p227 = scmp.ne.s32.totalorder %s222, %s224
    %p228 = scmp.eq.s32.totalorder %s31, 0
    %p229 = por %p227, %p228
    %p230 = scmp.ne.s32.totalorder %s222, %s224
    %p231 = scmp.eq.s32.totalorder %s36, 1
    %p232 = por %p230, %p231
    %p233 = scmp.ne.s32.totalorder %s224, %s225
    %p234 = scmp.eq.s32.totalorder %s36, 0
    %p235 = por %p233, %p234
    %p236 = scmp.ne.s32.totalorder %s224, %s225
    %p237 = scmp.eq.s32.totalorder %s37, 1
    %p238 = por %p236, %p237
    %p240 = scmp.ne.s32.totalorder %s225, %s239
    %p241 = scmp.eq.s32.totalorder %s37, 0
    %p242 = por %p240, %p241
    %s244 = sadd.s32 %s243, 1
    %p247 = scmp.eq.s32.totalorder %s31, 1
    %p248 = scmp.ne.s32.totalorder %s243, %s245
    %p249 = scmp.eq.s32.totalorder %s31, 0
    %p250 = por %p248, %p249
    %p251 = scmp.ne.s32.totalorder %s243, %s245
    %p252 = scmp.eq.s32.totalorder %s36, 1
    %p253 = por %p251, %p252
    %p254 = scmp.ne.s32.totalorder %s245, %s246
    %p255 = scmp.eq.s32.totalorder %s36, 0
    %p256 = por %p254, %p255
    %p257 = scmp.ne.s32.totalorder %s245, %s246
    %p258 = scmp.eq.s32.totalorder %s37, 1
    %p259 = por %p257, %p258
    %p261 = scmp.ne.s32.totalorder %s246, %s260
    %p262 = scmp.eq.s32.totalorder %s37, 0
    %p263 = por %p261, %p262
    %s265 = sadd.s32 %s264, 1
    %p268 = scmp.eq.s32.totalorder %s31, 1
    %p269 = scmp.ne.s32.totalorder %s264, %s266
    %p270 = scmp.eq.s32.totalorder %s31, 0
    %p271 = por %p269, %p270
    %p272 = scmp.ne.s32.totalorder %s264, %s266
    %p273 = scmp.eq.s32.totalorder %s36, 1
    %p274 = por %p272, %p273
    %p275 = scmp.ne.s32.totalorder %s266, %s267
    %p276 = scmp.eq.s32.totalorder %s36, 0
    %p277 = por %p275, %p276
    %p278 = scmp.ne.s32.totalorder %s266, %s267
    %p279 = scmp.eq.s32.totalorder %s37, 1
    %p280 = por %p278, %p279
    %p282 = scmp.ne.s32.totalorder %s267, %s281
    %p283 = scmp.eq.s32.totalorder %s37, 0
    %p284 = por %p282, %p283
    %s286 = sadd.s32 %s285, 1
    %p289 = scmp.eq.s32.totalorder %s31, 1
    %p290 = scmp.ne.s32.totalorder %s285, %s287
    %p291 = scmp.eq.s32.totalorder %s31, 0
    %p292 = por %p290, %p291
    %p293 = scmp.ne.s32.totalorder %s285, %s287
    %p294 = scmp.eq.s32.totalorder %s36, 1
    %p295 = por %p293, %p294
    %p296 = scmp.ne.s32.totalorder %s287, %s288
    %p297 = scmp.eq.s32.totalorder %s36, 0
    %p298 = por %p296, %p297
    %p299 = scmp.ne.s32.totalorder %s287, %s288
    %p300 = scmp.eq.s32.totalorder %s37, 1
    %p301 = por %p299, %p300
    %p303 = scmp.ne.s32.totalorder %s288, %s302
    %p304 = scmp.eq.s32.totalorder %s37, 0
    %p305 = por %p303, %p304
    %s307 = sadd.s32 %s306, 1
    %p310 = scmp.eq.s32.totalorder %s31, 1
    %p311 = scmp.ne.s32.totalorder %s306, %s308
    %p312 = scmp.eq.s32.totalorder %s31, 0
    %p313 = por %p311, %p312
    %p314 = scmp.ne.s32.totalorder %s306, %s308
    %p315 = scmp.eq.s32.totalorder %s36, 1
    %p316 = por %p314, %p315
    %p317 = scmp.ne.s32.totalorder %s308, %s309
    %p318 = scmp.eq.s32.totalorder %s36, 0
    %p319 = por %p317, %p318
    %p320 = scmp.ne.s32.totalorder %s308, %s309
    %p321 = scmp.eq.s32.totalorder %s37, 1
    %p322 = por %p320, %p321
    %p324 = scmp.ne.s32.totalorder %s309, %s323
    %p325 = scmp.eq.s32.totalorder %s37, 0
    %p326 = por %p324, %p325
    %s328 = sadd.s32 %s327, 1
    %p331 = scmp.eq.s32.totalorder %s31, 1
    %p332 = scmp.ne.s32.totalorder %s327, %s329
    %p333 = scmp.eq.s32.totalorder %s31, 0
    %p334 = por %p332, %p333
    %p335 = scmp.ne.s32.totalorder %s327, %s329
    %p336 = scmp.eq.s32.totalorder %s36, 1
    %p337 = por %p335, %p336
    %p338 = scmp.ne.s32.totalorder %s329, %s330
    %p339 = scmp.eq.s32.totalorder %s36, 0
    %p340 = por %p338, %p339
    %p341 = scmp.ne.s32.totalorder %s329, %s330
    %p342 = scmp.eq.s32.totalorder %s37, 1
    %p343 = por %p341, %p342
    %p345 = scmp.ne.s32.totalorder %s330, %s344
    %p346 = scmp.eq.s32.totalorder %s37, 0
    %p347 = por %p345, %p346
    %s349 = sadd.s32 %s348, 1
    %p352 = scmp.eq.s32.totalorder %s31, 1
    %p353 = scmp.ne.s32.totalorder %s348, %s350
    %p354 = scmp.eq.s32.totalorder %s31, 0
    %p355 = por %p353, %p354
    %p356 = scmp.ne.s32.totalorder %s348, %s350
    %p357 = scmp.eq.s32.totalorder %s36, 1
    %p358 = por %p356, %p357
    %p359 = scmp.ne.s32.totalorder %s350, %s351
    %p360 = scmp.eq.s32.totalorder %s36, 0
    %p361 = por %p359, %p360
    %p362 = scmp.ne.s32.totalorder %s350, %s351
    %p363 = scmp.eq.s32.totalorder %s37, 1
    %p364 = por %p362, %p363
    %p366 = scmp.ne.s32.totalorder %s351, %s365
    %p367 = scmp.eq.s32.totalorder %s37, 0
    %p368 = por %p366, %p367
    %s370 = sadd.s32 %s369, 1
    %p373 = scmp.eq.s32.totalorder %s31, 1
    %p374 = scmp.ne.s32.totalorder %s369, %s371
    %p375 = scmp.eq.s32.totalorder %s31, 0
    %p376 = por %p374, %p375
    %p377 = scmp.ne.s32.totalorder %s369, %s371
    %p378 = scmp.eq.s32.totalorder %s36, 1
    %p379 = por %p377, %p378
    %p380 = scmp.ne.s32.totalorder %s371, %s372
    %p381 = scmp.eq.s32.totalorder %s36, 0
    %p382 = por %p380, %p381
    %p383 = scmp.ne.s32.totalorder %s371, %s372
    %p384 = scmp.eq.s32.totalorder %s37, 1
    %p385 = por %p383, %p384
    %p387 = scmp.ne.s32.totalorder %s372, %s386
    %p388 = scmp.eq.s32.totalorder %s37, 0
    %p389 = por %p387, %p388
    %s391 = sadd.s32 %s390, 1
    %p394 = scmp.eq.s32.totalorder %s31, 1
    %p395 = scmp.ne.s32.totalorder %s390, %s392
    %p396 = scmp.eq.s32.totalorder %s31, 0
    %p397 = por %p395, %p396
    %p398 = scmp.ne.s32.totalorder %s390, %s392
    %p399 = scmp.eq.s32.totalorder %s36, 1
    %p400 = por %p398, %p399
    %p401 = scmp.ne.s32.totalorder %s392, %s393
    %p402 = scmp.eq.s32.totalorder %s36, 0
    %p403 = por %p401, %p402
    %p404 = scmp.ne.s32.totalorder %s392, %s393
    %p405 = scmp.eq.s32.totalorder %s37, 1
    %p406 = por %p404, %p405
    %p408 = scmp.ne.s32.totalorder %s393, %s407
    %p409 = scmp.eq.s32.totalorder %s37, 0
    %p410 = por %p408, %p409
    %s412 = sadd.s32 %s411, 1
    %p415 = scmp.eq.s32.totalorder %s31, 1
    %p416 = scmp.ne.s32.totalorder %s411, %s413
    %p417 = scmp.eq.s32.totalorder %s31, 0
    %p418 = por %p416, %p417
    %p419 = scmp.ne.s32.totalorder %s411, %s413
    %p420 = scmp.eq.s32.totalorder %s36, 1
    %p421 = por %p419, %p420
    %p422 = scmp.ne.s32.totalorder %s413, %s414
    %p423 = scmp.eq.s32.totalorder %s36, 0
    %p424 = por %p422, %p423
    %p425 = scmp.ne.s32.totalorder %s413, %s414
    %p426 = scmp.eq.s32.totalorder %s37, 1
    %p427 = por %p425, %p426
    %p429 = scmp.ne.s32.totalorder %s414, %s428
    %p430 = scmp.eq.s32.totalorder %s37, 0
    %p431 = por %p429, %p430
    %s433 = sadd.s32 %s432, 1
    %p436 = scmp.eq.s32.totalorder %s31, 1
    %p437 = scmp.ne.s32.totalorder %s432, %s434
    %p438 = scmp.eq.s32.totalorder %s31, 0
    %p439 = por %p437, %p438
    %p440 = scmp.ne.s32.totalorder %s432, %s434
    %p441 = scmp.eq.s32.totalorder %s36, 1
    %p442 = por %p440, %p441
    %p443 = scmp.ne.s32.totalorder %s434, %s435
    %p444 = scmp.eq.s32.totalorder %s36, 0
    %p445 = por %p443, %p444
    %p446 = scmp.ne.s32.totalorder %s434, %s435
    %p447 = scmp.eq.s32.totalorder %s37, 1
    %p448 = por %p446, %p447
    %p450 = scmp.ne.s32.totalorder %s435, %s449
    %p451 = scmp.eq.s32.totalorder %s37, 0
    %p452 = por %p450, %p451
    %s454 = sadd.s32 %s453, 1
    %p457 = scmp.eq.s32.totalorder %s31, 1
    %p458 = scmp.ne.s32.totalorder %s453, %s455
    %p459 = scmp.eq.s32.totalorder %s31, 0
    %p460 = por %p458, %p459
    %p461 = scmp.ne.s32.totalorder %s453, %s455
    %p462 = scmp.eq.s32.totalorder %s36, 1
    %p463 = por %p461, %p462
    %p464 = scmp.ne.s32.totalorder %s455, %s456
    %p465 = scmp.eq.s32.totalorder %s36, 0
    %p466 = por %p464, %p465
    %p467 = scmp.ne.s32.totalorder %s455, %s456
    %p468 = scmp.eq.s32.totalorder %s37, 1
    %p469 = por %p467, %p468
    %p471 = scmp.ne.s32.totalorder %s456, %s470
    %p472 = scmp.eq.s32.totalorder %s37, 0
    %p473 = por %p471, %p472
    %s475 = sadd.s32 %s474, 1
    %p478 = scmp.eq.s32.totalorder %s31, 1
    %p479 = scmp.ne.s32.totalorder %s474, %s476
    %p480 = scmp.eq.s32.totalorder %s31, 0
    %p481 = por %p479, %p480
    %p482 = scmp.ne.s32.totalorder %s474, %s476
    %p483 = scmp.eq.s32.totalorder %s36, 1
    %p484 = por %p482, %p483
    %p485 = scmp.ne.s32.totalorder %s476, %s477
    %p486 = scmp.eq.s32.totalorder %s36, 0
    %p487 = por %p485, %p486
    %p488 = scmp.ne.s32.totalorder %s476, %s477
    %p489 = scmp.eq.s32.totalorder %s37, 1
    %p490 = por %p488, %p489
    %p492 = scmp.ne.s32.totalorder %s477, %s491
    %p493 = scmp.eq.s32.totalorder %s37, 0
    %p494 = por %p492, %p493
    %s496 = sadd.s32 %s495, 1
    %p499 = scmp.eq.s32.totalorder %s31, 1
    %p500 = scmp.ne.s32.totalorder %s495, %s497
    %p501 = scmp.eq.s32.totalorder %s31, 0
    %p502 = por %p500, %p501
    %p503 = scmp.ne.s32.totalorder %s495, %s497
    %p504 = scmp.eq.s32.totalorder %s36, 1
    %p505 = por %p503, %p504
    %p506 = scmp.ne.s32.totalorder %s497, %s498
    %p507 = scmp.eq.s32.totalorder %s36, 0
    %p508 = por %p506, %p507
    %p509 = scmp.ne.s32.totalorder %s497, %s498
    %p510 = scmp.eq.s32.totalorder %s37, 1
    %p511 = por %p509, %p510
    %p513 = scmp.ne.s32.totalorder %s498, %s512
    %p514 = scmp.eq.s32.totalorder %s37, 0
    %p515 = por %p513, %p514
    %s517 = sadd.s32 %s516, 1
    %p520 = scmp.eq.s32.totalorder %s31, 1
    %p521 = scmp.ne.s32.totalorder %s516, %s518
    %p522 = scmp.eq.s32.totalorder %s31, 0
    %p523 = por %p521, %p522
    %p524 = scmp.ne.s32.totalorder %s516, %s518
    %p525 = scmp.eq.s32.totalorder %s36, 1
    %p526 = por %p524, %p525
    %p527 = scmp.ne.s32.totalorder %s518, %s519
    %p528 = scmp.eq.s32.totalorder %s36, 0
    %p529 = por %p527, %p528
    %p530 = scmp.ne.s32.totalorder %s518, %s519
    %p531 = scmp.eq.s32.totalorder %s37, 1
    %p532 = por %p530, %p531
    %p534 = scmp.ne.s32.totalorder %s519, %s533
    %p535 = scmp.eq.s32.totalorder %s37, 0
    %p536 = por %p534, %p535
    %s538 = sadd.s32 %s537, 1
    %p541 = scmp.eq.s32.totalorder %s31, 1
    %p542 = scmp.ne.s32.totalorder %s537, %s539
    %p543 = scmp.eq.s32.totalorder %s31, 0
    %p544 = por %p542, %p543
    %p545 = scmp.ne.s32.totalorder %s537, %s539
    %p546 = scmp.eq.s32.totalorder %s36, 1
    %p547 = por %p545, %p546
    %p548 = scmp.ne.s32.totalorder %s539, %s540
    %p549 = scmp.eq.s32.totalorder %s36, 0
    %p550 = por %p548, %p549
    %p551 = scmp.ne.s32.totalorder %s539, %s540
    %p552 = scmp.eq.s32.totalorder %s37, 1
    %p553 = por %p551, %p552
    %p555 = scmp.ne.s32.totalorder %s540, %s554
    %p556 = scmp.eq.s32.totalorder %s37, 0
    %p557 = por %p555, %p556
    %s559 = sadd.s32 %s558, 1
    %p562 = scmp.eq.s32.totalorder %s31, 1
    %p563 = scmp.ne.s32.totalorder %s558, %s560
    %p564 = scmp.eq.s32.totalorder %s31, 0
    %p565 = por %p563, %p564
    %p566 = scmp.ne.s32.totalorder %s558, %s560
    %p567 = scmp.eq.s32.totalorder %s36, 1
    %p568 = por %p566, %p567
    %p569 = scmp.ne.s32.totalorder %s560, %s561
    %p570 = scmp.eq.s32.totalorder %s36, 0
    %p571 = por %p569, %p570
    %p572 = scmp.ne.s32.totalorder %s560, %s561
    %p573 = scmp.eq.s32.totalorder %s37, 1
    %p574 = por %p572, %p573
    %p576 = scmp.ne.s32.totalorder %s561, %s575
    %p577 = scmp.eq.s32.totalorder %s37, 0
    %p578 = por %p576, %p577
    %s579 = ssub.s32 %s31, %s38
    %p580 = scmp.eq.s32.totalorder %s579, 0
    %s582 = sadd.s32 %s581, 1
    %s583 = scalar_select %p580, %s581, %s582
    %p586 = pneg %p580
    %p587 = scmp.eq.s32.totalorder %s31, 1
    %p588 = por %p586, %p587
    %p589 = scmp.ne.s32.totalorder %s581, %s584
    %p590 = scmp.eq.s32.totalorder %s31, 0
    %p591 = por %p589, %p590
    %p592 = scmp.ne.s32.totalorder %s581, %s584
    %p593 = scmp.eq.s32.totalorder %s36, 1
    %p594 = por %p592, %p593
    %p595 = scmp.ne.s32.totalorder %s584, %s585
    %p596 = scmp.eq.s32.totalorder %s36, 0
    %p597 = por %p595, %p596
    %p598 = scmp.ne.s32.totalorder %s584, %s585
    %p599 = scmp.eq.s32.totalorder %s37, 1
    %p600 = por %p598, %p599
    %p602 = scmp.ne.s32.totalorder %s585, %s601
    %p603 = scmp.eq.s32.totalorder %s37, 0
    %p604 = por %p602, %p603
    %p605 = scmp.le.s32.totalorder 1, %s31
    %p606 = scmp.lt.s32.totalorder %s31, 3
    %p607 = pnand %p605, %p606
    %p608 = pneg %p607
    // Predicated region
    $region9: #{_loss_fn.1} parent=5 // pred_check
      _
    $region10: #{_loss_fn.1} parent=5 // pred_check_branch
      %610 = sbr.rel (%p607) target = $region12
    $region11: #{_loss_fn.1} parent=5 // pred_region
      %s611 = ssub.s32 %s31, 1
      // Predicated region
      $region13: #{_loss_fn.1} parent=11 // pred_check
        %p612 = pneg %p130
      $region14: #{_loss_fn.1} parent=11 // pred_check_branch
        %614 = sbr.rel (%p612) target = $region16
      $region15: #{_loss_fn.1} parent=11 // pred_region
        _
      $region16: #{_loss_fn.1} parent=11 // pred_fallthru
        _
      // Predicated region
      $region17: #{_loss_fn.1} parent=11 // pred_check
        %p615 = pneg %p151
      $region18: #{_loss_fn.1} parent=11 // pred_check_branch
        %617 = sbr.rel (%p615) target = $region20
      $region19: #{_loss_fn.1} parent=11 // pred_region
        _
      $region20: #{_loss_fn.1} parent=11 // pred_fallthru
        _
      // Predicated region
      $region21: #{_loss_fn.1} parent=11 // pred_check
        %p618 = pneg %p172
      $region22: #{_loss_fn.1} parent=11 // pred_check_branch
        %620 = sbr.rel (%p618) target = $region24
      $region23: #{_loss_fn.1} parent=11 // pred_region
        _
      $region24: #{_loss_fn.1} parent=11 // pred_fallthru
        _
      // Predicated region
      $region25: #{_loss_fn.1} parent=11 // pred_check
        %p621 = pneg %p193
      $region26: #{_loss_fn.1} parent=11 // pred_check_branch
        %623 = sbr.rel (%p621) target = $region28
      $region27: #{_loss_fn.1} parent=11 // pred_region
        _
      $region28: #{_loss_fn.1} parent=11 // pred_fallthru
        _
      // Predicated region
      $region29: #{_loss_fn.1} parent=11 // pred_check
        %p624 = pneg %p214
      $region30: #{_loss_fn.1} parent=11 // pred_check_branch
        %626 = sbr.rel (%p624) target = $region32
      $region31: #{_loss_fn.1} parent=11 // pred_region
        _
      $region32: #{_loss_fn.1} parent=11 // pred_fallthru
        _
      // Predicated region
      $region33: #{_loss_fn.1} parent=11 // pred_check
        %p627 = pneg %p235
      $region34: #{_loss_fn.1} parent=11 // pred_check_branch
        %629 = sbr.rel (%p627) target = $region36
      $region35: #{_loss_fn.1} parent=11 // pred_region
        _
      $region36: #{_loss_fn.1} parent=11 // pred_fallthru
        _
      // Predicated region
      $region37: #{_loss_fn.1} parent=11 // pred_check
        %p630 = pneg %p256
      $region38: #{_loss_fn.1} parent=11 // pred_check_branch
        %632 = sbr.rel (%p630) target = $region40
      $region39: #{_loss_fn.1} parent=11 // pred_region
        _
      $region40: #{_loss_fn.1} parent=11 // pred_fallthru
        _
      // Predicated region
      $region41: #{_loss_fn.1} parent=11 // pred_check
        %p633 = pneg %p277
      $region42: #{_loss_fn.1} parent=11 // pred_check_branch
        %635 = sbr.rel (%p633) target = $region44
      $region43: #{_loss_fn.1} parent=11 // pred_region
        _
      $region44: #{_loss_fn.1} parent=11 // pred_fallthru
        _
      // Predicated region
      $region45: #{_loss_fn.1} parent=11 // pred_check
        %p636 = pneg %p298
      $region46: #{_loss_fn.1} parent=11 // pred_check_branch
        %638 = sbr.rel (%p636) target = $region48
      $region47: #{_loss_fn.1} parent=11 // pred_region
        _
      $region48: #{_loss_fn.1} parent=11 // pred_fallthru
        _
      // Predicated region
      $region49: #{_loss_fn.1} parent=11 // pred_check
        %p639 = pneg %p319
      $region50: #{_loss_fn.1} parent=11 // pred_check_branch
        %641 = sbr.rel (%p639) target = $region52
      $region51: #{_loss_fn.1} parent=11 // pred_region
        _
      $region52: #{_loss_fn.1} parent=11 // pred_fallthru
        _
      // Predicated region
      $region53: #{_loss_fn.1} parent=11 // pred_check
        %p642 = pneg %p340
      $region54: #{_loss_fn.1} parent=11 // pred_check_branch
        %644 = sbr.rel (%p642) target = $region56
      $region55: #{_loss_fn.1} parent=11 // pred_region
        _
      $region56: #{_loss_fn.1} parent=11 // pred_fallthru
        _
      // Predicated region
      $region57: #{_loss_fn.1} parent=11 // pred_check
        %p645 = pneg %p361
      $region58: #{_loss_fn.1} parent=11 // pred_check_branch
        %647 = sbr.rel (%p645) target = $region60
      $region59: #{_loss_fn.1} parent=11 // pred_region
        _
      $region60: #{_loss_fn.1} parent=11 // pred_fallthru
        _
      // Predicated region
      $region61: #{_loss_fn.1} parent=11 // pred_check
        %p648 = pneg %p382
      $region62: #{_loss_fn.1} parent=11 // pred_check_branch
        %650 = sbr.rel (%p648) target = $region64
      $region63: #{_loss_fn.1} parent=11 // pred_region
        _
      $region64: #{_loss_fn.1} parent=11 // pred_fallthru
        _
      // Predicated region
      $region65: #{_loss_fn.1} parent=11 // pred_check
        %p651 = pneg %p403
      $region66: #{_loss_fn.1} parent=11 // pred_check_branch
        %653 = sbr.rel (%p651) target = $region68
      $region67: #{_loss_fn.1} parent=11 // pred_region
        _
      $region68: #{_loss_fn.1} parent=11 // pred_fallthru
        _
      // Predicated region
      $region69: #{_loss_fn.1} parent=11 // pred_check
        %p654 = pneg %p424
      $region70: #{_loss_fn.1} parent=11 // pred_check_branch
        %656 = sbr.rel (%p654) target = $region72
      $region71: #{_loss_fn.1} parent=11 // pred_region
        _
      $region72: #{_loss_fn.1} parent=11 // pred_fallthru
        _
      // Predicated region
      $region73: #{_loss_fn.1} parent=11 // pred_check
        %p657 = pneg %p445
      $region74: #{_loss_fn.1} parent=11 // pred_check_branch
        %659 = sbr.rel (%p657) target = $region76
      $region75: #{_loss_fn.1} parent=11 // pred_region
        _
      $region76: #{_loss_fn.1} parent=11 // pred_fallthru
        _
      // Predicated region
      $region77: #{_loss_fn.1} parent=11 // pred_check
        %p660 = pneg %p466
      $region78: #{_loss_fn.1} parent=11 // pred_check_branch
        %662 = sbr.rel (%p660) target = $region80
      $region79: #{_loss_fn.1} parent=11 // pred_region
        _
      $region80: #{_loss_fn.1} parent=11 // pred_fallthru
        _
      // Predicated region
      $region81: #{_loss_fn.1} parent=11 // pred_check
        %p663 = pneg %p487
      $region82: #{_loss_fn.1} parent=11 // pred_check_branch
        %665 = sbr.rel (%p663) target = $region84
      $region83: #{_loss_fn.1} parent=11 // pred_region
        _
      $region84: #{_loss_fn.1} parent=11 // pred_fallthru
        _
      // Predicated region
      $region85: #{_loss_fn.1} parent=11 // pred_check
        %p666 = pneg %p508
      $region86: #{_loss_fn.1} parent=11 // pred_check_branch
        %668 = sbr.rel (%p666) target = $region88
      $region87: #{_loss_fn.1} parent=11 // pred_region
        _
      $region88: #{_loss_fn.1} parent=11 // pred_fallthru
        _
      // Predicated region
      $region89: #{_loss_fn.1} parent=11 // pred_check
        %p669 = pneg %p529
      $region90: #{_loss_fn.1} parent=11 // pred_check_branch
        %671 = sbr.rel (%p669) target = $region92
      $region91: #{_loss_fn.1} parent=11 // pred_region
        _
      $region92: #{_loss_fn.1} parent=11 // pred_fallthru
        _
      // Predicated region
      $region93: #{_loss_fn.1} parent=11 // pred_check
        %p672 = pneg %p550
      $region94: #{_loss_fn.1} parent=11 // pred_check_branch
        %674 = sbr.rel (%p672) target = $region96
      $region95: #{_loss_fn.1} parent=11 // pred_region
        _
      $region96: #{_loss_fn.1} parent=11 // pred_fallthru
        _
      // Predicated region
      $region97: #{_loss_fn.1} parent=11 // pred_check
        %p675 = pneg %p571
      $region98: #{_loss_fn.1} parent=11 // pred_check_branch
        %677 = sbr.rel (%p675) target = $region100
      $region99: #{_loss_fn.1} parent=11 // pred_region
        _
      $region100: #{_loss_fn.1} parent=11 // pred_fallthru
        _
    $region12: #{_loss_fn.1} parent=5 // pred_fallthru
      _
    %p678 = scmp.lt.s32.totalorder %s31, 2
    // Predicated region
    $region101: #{_loss_fn.1} parent=5 // pred_check
      %p679 = pneg %p678
    $region102: #{_loss_fn.1} parent=5 // pred_check_branch
      %681 = sbr.rel (%p679) target = $region104
    $region103: #{_loss_fn.1} parent=5 // pred_region
      // Predicated region
      $region105: #{_loss_fn.1} parent=103 // pred_check
        %p682 = pneg %p51
      $region106: #{_loss_fn.1} parent=103 // pred_check_branch
        %684 = sbr.rel (%p682) target = $region108
      $region107: #{_loss_fn.1} parent=103 // pred_region
        %p685 = scmp.lt.s32.totalorder %s31, 1
        %s686 = scalar_select %p685, %s31, 1
        %s687 = smul.addr %s686, 8
        %s688 = scalar_lea.vmem %s0, %s687
      $region108: #{_loss_fn.1} parent=103 // pred_fallthru
        _
      // Predicated region
      $region109: #{_loss_fn.1} parent=103 // pred_check
        %p689 = pneg %p77
      $region110: #{_loss_fn.1} parent=103 // pred_check_branch
        %691 = sbr.rel (%p689) target = $region112
      $region111: #{_loss_fn.1} parent=103 // pred_region
        %p692 = scmp.lt.s32.totalorder %s31, 1
        %s693 = scalar_select %p692, %s31, 1
        %s694 = smul.addr %s693, 8
        %s695 = scalar_lea.vmem %s1, %s694
      $region112: #{_loss_fn.1} parent=103 // pred_fallthru
        _
      // Predicated region
      $region113: #{_loss_fn.1} parent=103 // pred_check
        %p696 = pneg %p103
      $region114: #{_loss_fn.1} parent=103 // pred_check_branch
        %698 = sbr.rel (%p696) target = $region116
      $region115: #{_loss_fn.1} parent=103 // pred_region
        %p699 = scmp.lt.s32.totalorder %s31, 1
        %s700 = scalar_select %p699, %s31, 1
        %s701 = scalar_lea.vmem %s2, %s700
      $region116: #{_loss_fn.1} parent=103 // pred_fallthru
        _
    $region104: #{_loss_fn.1} parent=5 // pred_fallthru
      _
    %p702 = scmp.le.s32.totalorder 1, %s31
    %p703 = scmp.lt.s32.totalorder %s31, 3
    %p704 = pnand %p702, %p703
    %p705 = pneg %p704
    // Predicated region
    $region117: #{_loss_fn.1} parent=5 // pred_check
      _
    $region118: #{_loss_fn.1} parent=5 // pred_check_branch
      %707 = sbr.rel (%p704) target = $region120
    $region119: #{_loss_fn.1} parent=5 // pred_region
      %s708 = ssub.s32 %s31, 1
      %p709 = scmp.lt.s32.totalorder %s36, 1
      %s710 = scalar_select %p709, %s36, 1
      %s711 = smul.addr %s710, 8
      %s712 = scalar_lea.vmem %s0, %s711
      %p713 = pneg %p57
      %p714 = pneg %p54
      %p715 = scmp.lt.s32.totalorder %s36, 1
      %s716 = scalar_select %p715, %s36, 1
      %s717 = smul.addr %s716, 8
      %s718 = scalar_lea.vmem %s1, %s717
      %p719 = pneg %p83
      %p720 = pneg %p80
      %p721 = scmp.lt.s32.totalorder %s36, 1
      %s722 = scalar_select %p721, %s36, 1
      %s723 = scalar_lea.vmem %s2, %s722
      %p724 = pneg %p109
      %p725 = pneg %p106
      %p726 = pneg %p130
      %p727 = pneg %p127
      %p728 = pneg %p151
      %p729 = pneg %p148
      %p730 = pneg %p172
      %p731 = pneg %p169
      %p732 = pneg %p193
      %p733 = pneg %p190
      %p734 = pneg %p214
      %p735 = pneg %p211
      %p736 = pneg %p235
      %p737 = pneg %p232
      %p738 = pneg %p256
      %p739 = pneg %p253
      %p740 = pneg %p277
      %p741 = pneg %p274
      %p742 = pneg %p298
      %p743 = pneg %p295
      %p744 = pneg %p319
      %p745 = pneg %p316
      %p746 = pneg %p340
      %p747 = pneg %p337
      %p748 = pneg %p361
      %p749 = pneg %p358
      %p750 = pneg %p382
      %p751 = pneg %p379
      %p752 = pneg %p403
      %p753 = pneg %p400
      %p754 = pneg %p424
      %p755 = pneg %p421
      %p756 = pneg %p445
      %p757 = pneg %p442
      %p758 = pneg %p466
      %p759 = pneg %p463
      %p760 = pneg %p487
      %p761 = pneg %p484
      %p762 = pneg %p508
      %p763 = pneg %p505
      %p764 = pneg %p529
      %p765 = pneg %p526
      %p766 = pneg %p550
      %p767 = pneg %p547
      %p768 = pneg %p571
      %p769 = pneg %p568
      %p770 = pneg %p597
      %p771 = pneg %p594
      %p772 = scmp.lt.s32.totalorder %s36, 1
      %s773 = scalar_select %p772, %s36, 1
      %s774 = scalar_lea.vmem %s25, %s773
      %p775 = scmp.lt.s32.totalorder %s36, 1
      %s776 = scalar_select %p775, %s36, 1
      %s777 = smul.addr %s776, 8
      %s778 = scalar_lea.vmem %s0, %s777
      %p779 = scmp.lt.s32.totalorder %s36, 1
      %s780 = scalar_select %p779, %s36, 1
      %s781 = smul.addr %s780, 8
      %s782 = scalar_lea.vmem %s1, %s781
      %p783 = scmp.lt.s32.totalorder %s36, 1
      %s784 = scalar_select %p783, %s36, 1
      %s785 = scalar_lea.vmem %s2, %s784
      %p786 = scmp.lt.s32.totalorder %s36, 1
      %s787 = scalar_select %p786, %s36, 1
      %s788 = scalar_lea.vmem %s25, %s787
      %v789 = vld [vmem:[%s3] sm:$0xff]
      %v790 = vld [vmem:[%s3 + $0x8] sm:$0xff]
      %v791 = vld [vmem:[%s3 + $0x10] sm:$0xff]
      %v792 = vld [vmem:[%s3 + $0x18] sm:$0xff]
      %v793 = vld [vmem:[%s3 + $0x20] sm:$0xff]
      %v794 = vld [vmem:[%s3 + $0x28] sm:$0xff]
      %v795 = vld [vmem:[%s3 + $0x30] sm:$0xff]
      %v796 = vld [vmem:[%s3 + $0x38] sm:$0xff]
      %v797 = vld [vmem:[%s782] sm:$0xff]
      %v798 = vld [vmem:[%s785] sm:$0x1]
      %800 = vset.pattern.permute.xlu0 0
      %801 = vperm.xlu0 %800, %v797
      %v802 = vpop.permute.xlu0 %801
      %v805 = vlaneseq
      %v806 = vshrl.u32 %v805, 7
      %v807 = vsub.s32 0, %v806
      %v808 = vrot.slane %v798, %v807
      %v810 = vmul.f32 %v802, %v808
      %vm811 = vcmp.gt.f32.partialorder %v810, 0.0
      %v812 = vld [vmem:[%s778] sm:$0xff]
      %v813 = vld [vmem:[%s4] sm:$0xff]
      %v814 = vadd.f32 %v812, %v813
      %v815 = vld [vmem:[%s5] sm:$0x1]
      %v816 = vld [vmem:[%s6] sm:$0x1]
      %vm817 = vcmask 261120
      %v818 = vsel %vm817, %v814, 0.0
      %819 = vadd.xlane.f32.xlu0 %v818
      %v820 = vpop.xlane.xlu0 %819
      %v821 = vrcp.pop 32.0
      %v822 = vmul.f32 %v820, %v821
      %v823 = vsub.f32 %v814, %v822
      %v824 = vmul.f32 %v823, %v823
      %v825 = vsel %vm817, %v824, 0.0
      %826 = vadd.xlane.f32.xlu0 %v825
      %v827 = vpop.xlane.xlu0 %826
      %v828 = vmul.f32 %v827, %v821
      %v829 = vadd.f32 %v828, 1e-07
      %v830 = vrsqrt.pop %v829
      %v831 = vmul.f32 %v823, %v830
      %v833 = vlaneseq
      %v834 = vshrl.u32 %v833, 7
      %v835 = vsub.s32 0, %v834
      %v836 = vrot.slane %v815, %v835
      %v838 = vmul.f32 %v831, %v836
      %v840 = vlaneseq
      %v841 = vshrl.u32 %v840, 7
      %v842 = vsub.s32 0, %v841
      %v843 = vrot.slane %v816, %v842
      %v845 = vadd.f32 %v838, %v843
      %v846 = vmul.f32 %v845, %v802
      %v847 = vld [vmem:[%s7] sm:$0xff]
      %v848 = vld [vmem:[%s7 + $0x8] sm:$0xff]
      %v849 = vld [vmem:[%s7 + $0x10] sm:$0xff]
      %v850 = vld [vmem:[%s7 + $0x18] sm:$0xff]
      %v851 = vld [vmem:[%s8] sm:$0x1]
      %v853 = vlaneseq
      %v854 = vshrl.u32 %v853, 7
      %v855 = vsub.s32 0, %v854
      %v856 = vrot.slane %v851, %v855
      %v859 = vsel %vm817, %v846, 0
      %861 = vmatprep.subr.mxu0 0.0
      %862 = vmatpush1.msra.mxu0 %v847
      %863 = vmatprep.subr.mxu0 0.0
      %864 = vmatpush1.msra.mxu0 %v848
      %865 = vmatprep.subr.mxu0 0.0
      %866 = vmatpush1.msra.mxu0 %v849
      %867 = vmatprep.subr.mxu0 0.0
      %868 = vmatpush1.msra.mxu0 %v850
      %869 = vmatprep.subr.mxu0 0.0
      %870 = vmatpush1.msra.mxu0 0.0
      %871 = vmatprep.subr.mxu0 0.0
      %872 = vmatpush1.msra.mxu0 0.0
      %873 = vmatprep.subr.mxu0 0.0
      %874 = vmatpush1.msra.mxu0 0.0
      %875 = vmatprep.subr.mxu0 0.0
      %876 = vmatpush1.msra.mxu0 0.0
      %877 = vmatprep.subr.mxu0 0.0
      %878 = vmatpush1.msra.mxu0 0.0
      %879 = vmatprep.subr.mxu0 0.0
      %880 = vmatpush1.msra.mxu0 0.0
      %881 = vmatprep.subr.mxu0 0.0
      %882 = vmatpush1.msra.mxu0 0.0
      %883 = vmatprep.subr.mxu0 0.0
      %884 = vmatpush1.msra.mxu0 0.0
      %885 = vmatprep.subr.mxu0 0.0
      %886 = vmatpush1.msra.mxu0 0.0
      %887 = vmatprep.subr.mxu0 0.0
      %888 = vmatpush1.msra.mxu0 0.0
      %889 = vmatprep.subr.mxu0 0.0
      %890 = vmatpush1.msra.mxu0 0.0
      %891 = vmatprep.subr.mxu0 0.0
      %892 = vmatpush1.msra.mxu0 0.0
      %893 = vmatprep.subr.mxu0 0.0
      %894 = vmatpush1.msra.mxu0 0.0
      %895 = vmatprep.subr.mxu0 0.0
      %896 = vmatpush1.msra.mxu0 0.0
      %897 = vmatprep.subr.mxu0 0.0
      %898 = vmatpush1.msra.mxu0 0.0
      %899 = vmatprep.subr.mxu0 0.0
      %900 = vmatpush1.msra.mxu0 0.0
      %901 = vmatprep.subr.mxu0 0.0
      %902 = vmatpush1.msra.mxu0 0.0
      %903 = vmatprep.subr.mxu0 0.0
      %904 = vmatpush1.msra.mxu0 0.0
      %905 = vmatprep.subr.mxu0 0.0
      %906 = vmatpush1.msra.mxu0 0.0
      %907 = vmatprep.subr.mxu0 0.0
      %908 = vmatpush1.msra.mxu0 0.0
      %909 = vmatprep.subr.mxu0 0.0
      %910 = vmatpush1.msra.mxu0 0.0
      %911 = vmatprep.subr.mxu0 0.0
      %912 = vmatpush1.msra.mxu0 0.0
      %913 = vmatprep.subr.mxu0 0.0
      %914 = vmatpush1.msra.mxu0 0.0
      %915 = vmatprep.subr.mxu0 0.0
      %916 = vmatpush1.msra.mxu0 0.0
      %917 = vmatprep.subr.mxu0 0.0
      %918 = vmatpush1.msra.mxu0 0.0
      %919 = vmatprep.subr.mxu0 0.0
      %920 = vmatpush1.msra.mxu0 0.0
      %921 = vmatprep.subr.mxu0 0.0
      %922 = vmatpush1.msra.mxu0 0.0
      %923 = vmatprep.subr.mxu0 0.0
      %924 = vmatpush1.msra.mxu0 0.0
      %925 = vmatprep.mubr.f32.mxu0 0.0
      %926 = vmatmul.mubr.f32.gmra.mrb[0].mxu0 %v859
      %v927 = vpop.f32.mrb[0].mxu0
      %v928 = vadd.f32 %v856, %v927
      %v929 = vpop.f32.mrb[0].mxu0
      %930 = vdwg.mxu0
      %v931 = vld [vmem:[%s9] sm:$0xff]
      %v932 = vld [vmem:[%s9 + $0x8] sm:$0xff]
      %v933 = vld [vmem:[%s9 + $0x10] sm:$0xff]
      %v934 = vld [vmem:[%s9 + $0x18] sm:$0xff]
      %v935 = vld [vmem:[%s9 + $0x20] sm:$0xff]
      %v936 = vld [vmem:[%s9 + $0x28] sm:$0xff]
      %v937 = vld [vmem:[%s9 + $0x30] sm:$0xff]
      %v938 = vld [vmem:[%s9 + $0x38] sm:$0xff]
      %v939 = vld [vmem:[%s10] sm:$0x1]
      %v940 = vld [vmem:[%s11] sm:$0xff]
      %v941 = vld [vmem:[%s11 + $0x8] sm:$0xff]
      %v942 = vld [vmem:[%s11 + $0x10] sm:$0xff]
      %v943 = vld [vmem:[%s11 + $0x18] sm:$0xff]
      %v944 = vmul.f32 %v928, 0.14433756
      %vm945 = vcmask 130048
      %v947 = vsel %vm945, %v944, 0
      %949 = vmatprep.subr.mxu0 0.0
      %950 = vmatpush1.msra.mxu0 %v931
      %951 = vmatprep.subr.mxu0 0.0
      %952 = vmatpush1.msra.mxu0 %v932
      %953 = vmatprep.subr.mxu0 0.0
      %954 = vmatpush1.msra.mxu0 0.0
      %955 = vmatprep.subr.mxu0 0.0
      %956 = vmatpush1.msra.mxu0 0.0
      %957 = vmatprep.subr.mxu0 0.0
      %958 = vmatpush1.msra.mxu0 0.0
      %959 = vmatprep.subr.mxu0 0.0
      %960 = vmatpush1.msra.mxu0 0.0
      %961 = vmatprep.subr.mxu0 0.0
      %962 = vmatpush1.msra.mxu0 0.0
      %963 = vmatprep.subr.mxu0 0.0
      %964 = vmatpush1.msra.mxu0 0.0
      %965 = vmatprep.subr.mxu0 0.0
      %966 = vmatpush1.msra.mxu0 0.0
      %967 = vmatprep.subr.mxu0 0.0
      %968 = vmatpush1.msra.mxu0 0.0
      %969 = vmatprep.subr.mxu0 0.0
      %970 = vmatpush1.msra.mxu0 0.0
      %971 = vmatprep.subr.mxu0 0.0
      %972 = vmatpush1.msra.mxu0 0.0
      %973 = vmatprep.subr.mxu0 0.0
      %974 = vmatpush1.msra.mxu0 0.0
      %975 = vmatprep.subr.mxu0 0.0
      %976 = vmatpush1.msra.mxu0 0.0
      %977 = vmatprep.subr.mxu0 0.0
      %978 = vmatpush1.msra.mxu0 0.0
      %979 = vmatprep.subr.mxu0 0.0
      %980 = vmatpush1.msra.mxu0 0.0
      %981 = vmatprep.subr.mxu0 0.0
      %982 = vmatpush1.msra.mxu0 0.0
      %983 = vmatprep.subr.mxu0 0.0
      %984 = vmatpush1.msra.mxu0 0.0
      %985 = vmatprep.subr.mxu0 0.0
      %986 = vmatpush1.msra.mxu0 0.0
      %987 = vmatprep.subr.mxu0 0.0
      %988 = vmatpush1.msra.mxu0 0.0
      %989 = vmatprep.subr.mxu0 0.0
      %990 = vmatpush1.msra.mxu0 0.0
      %991 = vmatprep.subr.mxu0 0.0
      %992 = vmatpush1.msra.mxu0 0.0
      %993 = vmatprep.subr.mxu0 0.0
      %994 = vmatpush1.msra.mxu0 0.0
      %995 = vmatprep.subr.mxu0 0.0
      %996 = vmatpush1.msra.mxu0 0.0
      %997 = vmatprep.subr.mxu0 0.0
      %998 = vmatpush1.msra.mxu0 0.0
      %999 = vmatprep.subr.mxu0 0.0
      %1000 = vmatpush1.msra.mxu0 0.0
      %1001 = vmatprep.subr.mxu0 0.0
      %1002 = vmatpush1.msra.mxu0 0.0
      %1003 = vmatprep.subr.mxu0 0.0
      %1004 = vmatpush1.msra.mxu0 0.0
      %1005 = vmatprep.subr.mxu0 0.0
      %1006 = vmatpush1.msra.mxu0 0.0
      %1007 = vmatprep.subr.mxu0 0.0
      %1008 = vmatpush1.msra.mxu0 0.0
      %1009 = vmatprep.subr.mxu0 0.0
      %1010 = vmatpush1.msra.mxu0 0.0
      %1011 = vmatprep.subr.mxu0 0.0
      %1012 = vmatpush1.msra.mxu0 0.0
      %1013 = vmatprep.mubr.f32.mxu0 0.0
      %1014 = vmatmul.mubr.f32.gmra.mrb[0].mxu0 %v947
      %v1015 = vpop.f32.mrb[0].mxu0
      %v1016 = vadd.f32 0.0, %v1015
      %v1017 = vpop.f32.mrb[0].mxu0
      %1018 = vdwg.mxu0
      %v1020 = vcombine.high %v1016, %v1016
      %v1022 = vunpack.c.l.s4 1966171168
      %v1023 = vunpack.c.0.s8 %v1022
      %v1024 = vlaneseq
      %v1025 = vshrl.u32 %v1024, 7
      %v1026 = vsub.s32 %v1023, %v1025
      %v1027 = vrot.slane %v1016, %v1026
      %v1029 = vunpack.c.l.s4 1966171168
      %v1030 = vunpack.c.0.s8 %v1029
      %v1031 = vlaneseq
      %v1032 = vshrl.u32 %v1031, 7
      %v1033 = vsub.s32 %v1030, %v1032
      %v1034 = vrot.slane %v1020, %v1033
      %v1035 = vcombine.high %v1027, %v1027
      %v1036 = vcombine.high %v1034, %v1034
      %v1038 = vunpack.c.l.s4 1966171168
      %v1039 = vunpack.c.0.s8 %v1038
      %v1040 = vlaneseq
      %v1041 = vshrl.u32 %v1040, 7
      %v1042 = vsub.s32 %v1039, %v1041
      %v1043 = vrot.slane %v1027, %v1042
      %v1045 = vunpack.c.l.s4 1966171168
      %v1046 = vunpack.c.0.s8 %v1045
      %v1047 = vlaneseq
      %v1048 = vshrl.u32 %v1047, 7
      %v1049 = vsub.s32 %v1046, %v1048
      %v1050 = vrot.slane %v1034, %v1049
      %v1052 = vunpack.c.l.s4 1966171168
      %v1053 = vunpack.c.0.s8 %v1052
      %v1054 = vlaneseq
      %v1055 = vshrl.u32 %v1054, 7
      %v1056 = vsub.s32 %v1053, %v1055
      %v1057 = vrot.slane %v1035, %v1056
      %v1059 = vunpack.c.l.s4 1966171168
      %v1060 = vunpack.c.0.s8 %v1059
      %v1061 = vlaneseq
      %v1062 = vshrl.u32 %v1061, 7
      %v1063 = vsub.s32 %v1060, %v1062
      %v1064 = vrot.slane %v1036, %v1063
      %v1065 = vcombine.high %v1043, %v1043
      %v1066 = vcombine.high %v1050, %v1050
      %v1067 = vcombine.high %v1057, %v1057
      %v1068 = vcombine.high %v1064, %v1064
      %v1069 = vlaneseq
      %v1070 = vshrl.u32 %v1069, 7
      %v1071 = vsub.s32 0, %v1070
      %v1072 = vrot.slane %v1043, %v1071
      %v1073 = vlaneseq
      %v1074 = vshrl.u32 %v1073, 7
      %v1075 = vsub.s32 0, %v1074
      %v1076 = vrot.slane %v1057, %v1075
      %v1077 = vlaneseq
      %v1078 = vshrl.u32 %v1077, 7
      %v1079 = vsub.s32 0, %v1078
      %v1080 = vrot.slane %v1065, %v1079
      %v1081 = vlaneseq
      %v1082 = vshrl.u32 %v1081, 7
      %v1083 = vsub.s32 0, %v1082
      %v1084 = vrot.slane %v1067, %v1083
      %v1085 = vlaneseq
      %v1086 = vshrl.u32 %v1085, 7
      %v1087 = vsub.s32 0, %v1086
      %v1088 = vrot.slane %v1050, %v1087
      %v1089 = vlaneseq
      %v1090 = vshrl.u32 %v1089, 7
      %v1091 = vsub.s32 0, %v1090
      %v1092 = vrot.slane %v1064, %v1091
      %v1093 = vlaneseq
      %v1094 = vshrl.u32 %v1093, 7
      %v1095 = vsub.s32 0, %v1094
      %v1096 = vrot.slane %v1066, %v1095
      %v1097 = vlaneseq
      %v1098 = vshrl.u32 %v1097, 7
      %v1099 = vsub.s32 0, %v1098
      %v1100 = vrot.slane %v1068, %v1099
      %v1109 = vmul.f32 %v1072, %v789
      %v1110 = vmul.f32 %v1076, %v790
      %v1111 = vmul.f32 %v1080, %v791
      %v1112 = vmul.f32 %v1084, %v792
      %v1113 = vmul.f32 %v1088, %v793
      %v1114 = vmul.f32 %v1092, %v794
      %v1115 = vmul.f32 %v1096, %v795
      %v1116 = vmul.f32 %v1100, %v796
      %v1117 = vsel %vm817, %v1109, 0.0
      %1118 = vadd.xlane.f32.xlu0 %v1117
      %v1119 = vpop.xlane.xlu0 %1118
      %v1120 = vsel %vm817, %v1110, 0.0
      %1121 = vadd.xlane.f32.xlu0 %v1120
      %v1122 = vpop.xlane.xlu0 %1121
      %v1123 = vsel %vm817, %v1111, 0.0
      %1124 = vadd.xlane.f32.xlu0 %v1123
      %v1125 = vpop.xlane.xlu0 %1124
      %v1126 = vsel %vm817, %v1112, 0.0
      %1127 = vadd.xlane.f32.xlu0 %v1126
      %v1128 = vpop.xlane.xlu0 %1127
      %v1129 = vsel %vm817, %v1113, 0.0
      %1130 = vadd.xlane.f32.xlu0 %v1129
      %v1131 = vpop.xlane.xlu0 %1130
      %v1132 = vsel %vm817, %v1114, 0.0
      %1133 = vadd.xlane.f32.xlu0 %v1132
      %v1134 = vpop.xlane.xlu0 %1133
      %v1135 = vsel %vm817, %v1115, 0.0
      %1136 = vadd.xlane.f32.xlu0 %v1135
      %v1137 = vpop.xlane.xlu0 %1136
      %v1138 = vsel %vm817, %v1116, 0.0
      %1139 = vadd.xlane.f32.xlu0 %v1138
      %v1140 = vpop.xlane.xlu0 %1139
      %1142 = vrot.lane.b32.xlu0 %v928, 96
      %v1143 = vpop.permute.xlu0 %1142
      %v1152 = vlaneseq
      %v1153 = vand.u32 %v1152, 127
      %v1154 = vlaneseq
      %v1155 = vshrl.u32 %v1154, 7
      %v1156 = vsub.s32 %v1153, %v1155
      %v1157 = vrot.slane %v1119, %v1156
      %v1158 = vlaneseq
      %v1159 = vshrl.u32 %v1158, 7
      %v1160 = vsub.s32 %v1153, %v1159
      %v1161 = vrot.slane %v1122, %v1160
      %v1162 = vlaneseq
      %v1163 = vshrl.u32 %v1162, 7
      %v1164 = vsub.s32 %v1153, %v1163
      %v1165 = vrot.slane %v1125, %v1164
      %v1166 = vlaneseq
      %v1167 = vshrl.u32 %v1166, 7
      %v1168 = vsub.s32 %v1153, %v1167
      %v1169 = vrot.slane %v1128, %v1168
      %v1170 = vlaneseq
      %v1171 = vshrl.u32 %v1170, 7
      %v1172 = vsub.s32 %v1153, %v1171
      %v1173 = vrot.slane %v1131, %v1172
      %v1174 = vlaneseq
      %v1175 = vshrl.u32 %v1174, 7
      %v1176 = vsub.s32 %v1153, %v1175
      %v1177 = vrot.slane %v1134, %v1176
      %v1178 = vlaneseq
      %v1179 = vshrl.u32 %v1178, 7
      %v1180 = vsub.s32 %v1153, %v1179
      %v1181 = vrot.slane %v1137, %v1180
      %v1182 = vlaneseq
      %v1183 = vshrl.u32 %v1182, 7
      %v1184 = vsub.s32 %v1153, %v1183
      %v1185 = vrot.slane %v1140, %v1184
      %vm1186 = vcmask 1041409
      %v1187 = vsel %vm1186, %v1161, %v1157
      %vm1188 = vcmask 1042434
      %v1189 = vsel %vm1188, %v1165, %v1187
      %vm1190 = vcmask 1043459
      %v1191 = vsel %vm1190, %v1169, %v1189
      %vm1192 = vcmask 1044484
      %v1193 = vsel %vm1192, %v1173, %v1191
      %vm1194 = vcmask 1045509
      %v1195 = vsel %vm1194, %v1177, %v1193
      %vm1196 = vcmask 1046534
      %v1197 = vsel %vm1196, %v1181, %v1195
      %vm1198 = vcmask 1047559
      %v1199 = vsel %vm1198, %v1185, %v1197
      %v1201 = vsel %vm945, %v1143, 0
      %1203 = vmatprep.subr.mxu0 0.0
      %1204 = vmatpush1.xpose.msra.mxu0 %v1201
      %1205 = vmatprep.subr.mxu0 0.0
      %1206 = vmatpush1.xpose.msra.mxu0 0.0
      %1207 = vmatprep.subr.mxu0 0.0
      %1208 = vmatpush1.xpose.msra.mxu0 0.0
      %1209 = vmatprep.subr.mxu0 0.0
      %1210 = vmatpush1.xpose.msra.mxu0 0.0
      %1211 = vmatprep.subr.mxu0 0.0
      %1212 = vmatpush1.xpose.msra.mxu0 0.0
      %1213 = vmatprep.subr.mxu0 0.0
      %1214 = vmatpush1.xpose.msra.mxu0 0.0
      %1215 = vmatprep.subr.mxu0 0.0
      %1216 = vmatpush1.xpose.msra.mxu0 0.0
      %1217 = vmatprep.subr.mxu0 0.0
      %1218 = vmatpush1.xpose.msra.mxu0 0.0
      %1219 = vmatprep.subr.mxu0 0.0
      %1220 = vmatpush1.xpose.msra.mxu0 0.0
      %1221 = vmatprep.subr.mxu0 0.0
      %1222 = vmatpush1.xpose.msra.mxu0 0.0
      %1223 = vmatprep.subr.mxu0 0.0
      %1224 = vmatpush1.xpose.msra.mxu0 0.0
      %1225 = vmatprep.subr.mxu0 0.0
      %1226 = vmatpush1.xpose.msra.mxu0 0.0
      %1227 = vmatprep.subr.mxu0 0.0
      %1228 = vmatpush1.xpose.msra.mxu0 0.0
      %1229 = vmatprep.subr.mxu0 0.0
      %1230 = vmatpush1.xpose.msra.mxu0 0.0
      %1231 = vmatprep.subr.mxu0 0.0
      %1232 = vmatpush1.xpose.msra.mxu0 0.0
      %1233 = vmatprep.subr.mxu0 0.0
      %1234 = vmatpush1.xpose.msra.mxu0 0.0
      %1235 = vmatprep.subr.mxu0 0.0
      %1236 = vmatpush1.xpose.msra.mxu0 0.0
      %1237 = vmatprep.subr.mxu0 0.0
      %1238 = vmatpush1.xpose.msra.mxu0 0.0
      %1239 = vmatprep.subr.mxu0 0.0
      %1240 = vmatpush1.xpose.msra.mxu0 0.0
      %1241 = vmatprep.subr.mxu0 0.0
      %1242 = vmatpush1.xpose.msra.mxu0 0.0
      %1243 = vmatprep.subr.mxu0 0.0
      %1244 = vmatpush1.xpose.msra.mxu0 0.0
      %1245 = vmatprep.subr.mxu0 0.0
      %1246 = vmatpush1.xpose.msra.mxu0 0.0
      %1247 = vmatprep.subr.mxu0 0.0
      %1248 = vmatpush1.xpose.msra.mxu0 0.0
      %1249 = vmatprep.subr.mxu0 0.0
      %1250 = vmatpush1.xpose.msra.mxu0 0.0
      %1251 = vmatprep.subr.mxu0 0.0
      %1252 = vmatpush1.xpose.msra.mxu0 0.0
      %1253 = vmatprep.subr.mxu0 0.0
      %1254 = vmatpush1.xpose.msra.mxu0 0.0
      %1255 = vmatprep.subr.mxu0 0.0
      %1256 = vmatpush1.xpose.msra.mxu0 0.0
      %1257 = vmatprep.subr.mxu0 0.0
      %1258 = vmatpush1.xpose.msra.mxu0 0.0
      %1259 = vmatprep.subr.mxu0 0.0
      %1260 = vmatpush1.xpose.msra.mxu0 0.0
      %1261 = vmatprep.subr.mxu0 0.0
      %1262 = vmatpush1.xpose.msra.mxu0 0.0
      %1263 = vmatprep.subr.mxu0 0.0
      %1264 = vmatpush1.xpose.msra.mxu0 0.0
      %1265 = vmatprep.subr.mxu0 0.0
      %1266 = vmatpush1.xpose.msra.mxu0 0.0
      %1267 = vmatprep.mubr.f32.mxu0 0.0
      %1268 = vmatmul.mubr.f32.gmra.mrb[0].mxu0 %v947
      %v1269 = vpop.f32.mrb[0].mxu0
      %v1270 = vadd.f32 %v1199, %v1269
      %v1271 = vpop.f32.mrb[0].mxu0
      %1272 = vdwg.mxu0
      %1273 = vmatprep.subr.mxu0 0.0
      %1274 = vmatpush1.msra.mxu0 %v935
      %1275 = vmatprep.subr.mxu0 0.0
      %1276 = vmatpush1.msra.mxu0 %v936
      %1277 = vmatprep.subr.mxu0 0.0
      %1278 = vmatpush1.msra.mxu0 0.0
      %1279 = vmatprep.subr.mxu0 0.0
      %1280 = vmatpush1.msra.mxu0 0.0
      %1281 = vmatprep.subr.mxu0 0.0
      %1282 = vmatpush1.msra.mxu0 0.0
      %1283 = vmatprep.subr.mxu0 0.0
      %1284 = vmatpush1.msra.mxu0 0.0
      %1285 = vmatprep.subr.mxu0 0.0
      %1286 = vmatpush1.msra.mxu0 0.0
      %1287 = vmatprep.subr.mxu0 0.0
      %1288 = vmatpush1.msra.mxu0 0.0
      %1289 = vmatprep.subr.mxu0 0.0
      %1290 = vmatpush1.msra.mxu0 0.0
      %1291 = vmatprep.subr.mxu0 0.0
      %1292 = vmatpush1.msra.mxu0 0.0
      %1293 = vmatprep.subr.mxu0 0.0
      %1294 = vmatpush1.msra.mxu0 0.0
      %1295 = vmatprep.subr.mxu0 0.0
      %1296 = vmatpush1.msra.mxu0 0.0
      %1297 = vmatprep.subr.mxu0 0.0
      %1298 = vmatpush1.msra.mxu0 0.0
      %1299 = vmatprep.subr.mxu0 0.0
      %1300 = vmatpush1.msra.mxu0 0.0
      %1301 = vmatprep.subr.mxu0 0.0
      %1302 = vmatpush1.msra.mxu0 0.0
      %1303 = vmatprep.subr.mxu0 0.0
      %1304 = vmatpush1.msra.mxu0 0.0
      %1305 = vmatprep.subr.mxu0 0.0
      %1306 = vmatpush1.msra.mxu0 0.0
      %1307 = vmatprep.subr.mxu0 0.0
      %1308 = vmatpush1.msra.mxu0 0.0
      %1309 = vmatprep.subr.mxu0 0.0
      %1310 = vmatpush1.msra.mxu0 0.0
      %1311 = vmatprep.subr.mxu0 0.0
      %1312 = vmatpush1.msra.mxu0 0.0
      %1313 = vmatprep.subr.mxu0 0.0
      %1314 = vmatpush1.msra.mxu0 0.0
      %1315 = vmatprep.subr.mxu0 0.0
      %1316 = vmatpush1.msra.mxu0 0.0
      %1317 = vmatprep.subr.mxu0 0.0
      %1318 = vmatpush1.msra.mxu0 0.0
      %1319 = vmatprep.subr.mxu0 0.0
      %1320 = vmatpush1.msra.mxu0 0.0
      %1321 = vmatprep.subr.mxu0 0.0
      %1322 = vmatpush1.msra.mxu0 0.0
      %1323 = vmatprep.subr.mxu0 0.0
      %1324 = vmatpush1.msra.mxu0 0.0
      %1325 = vmatprep.subr.mxu0 0.0
      %1326 = vmatpush1.msra.mxu0 0.0
      %1327 = vmatprep.subr.mxu0 0.0
      %1328 = vmatpush1.msra.mxu0 0.0
      %1329 = vmatprep.subr.mxu0 0.0
      %1330 = vmatpush1.msra.mxu0 0.0
      %1331 = vmatprep.subr.mxu0 0.0
      %1332 = vmatpush1.msra.mxu0 0.0
      %1333 = vmatprep.subr.mxu0 0.0
      %1334 = vmatpush1.msra.mxu0 0.0
      %1335 = vmatprep.subr.mxu0 0.0
      %1336 = vmatpush1.msra.mxu0 0.0
      %1337 = vmatprep.mubr.f32.mxu0 0.0
      %1338 = vmatmul.mubr.f32.gmra.mrb[0].mxu0 %v1201
      %v1339 = vpop.f32.mrb[0].mxu0
      %v1340 = vadd.f32 0.0, %v1339
      %v1341 = vpop.f32.mrb[0].mxu0
      %1342 = vdwg.mxu0
      %v1343 = vmul.f32 %v1340, 0.14433756
      %v1344 = vmul.f32 %v1343, %v789
      %v1345 = vmul.f32 %v1343, %v790
      %v1346 = vmul.f32 %v1343, %v791
      %v1347 = vmul.f32 %v1343, %v792
      %v1348 = vmul.f32 %v1343, %v793
      %v1349 = vmul.f32 %v1343, %v794
      %v1350 = vmul.f32 %v1343, %v795
      %v1351 = vmul.f32 %v1343, %v796
      %v1352 = vsel %vm817, %v1344, 0.0
      %1353 = vadd.xlane.f32.xlu0 %v1352
      %v1354 = vpop.xlane.xlu0 %1353
      %v1355 = vsel %vm817, %v1345, 0.0
      %1356 = vadd.xlane.f32.xlu0 %v1355
      %v1357 = vpop.xlane.xlu0 %1356
      %v1358 = vsel %vm817, %v1346, 0.0
      %1359 = vadd.xlane.f32.xlu0 %v1358
      %v1360 = vpop.xlane.xlu0 %1359
      %v1361 = vsel %vm817, %v1347, 0.0
      %1362 = vadd.xlane.f32.xlu0 %v1361
      %v1363 = vpop.xlane.xlu0 %1362
      %v1364 = vsel %vm817, %v1348, 0.0
      %1365 = vadd.xlane.f32.xlu0 %v1364
      %v1366 = vpop.xlane.xlu0 %1365
      %v1367 = vsel %vm817, %v1349, 0.0
      %1368 = vadd.xlane.f32.xlu0 %v1367
      %v1369 = vpop.xlane.xlu0 %1368
      %v1370 = vsel %vm817, %v1350, 0.0
      %1371 = vadd.xlane.f32.xlu0 %v1370
      %v1372 = vpop.xlane.xlu0 %1371
      %v1373 = vsel %vm817, %v1351, 0.0
      %1374 = vadd.xlane.f32.xlu0 %v1373
      %v1375 = vpop.xlane.xlu0 %1374
      %v1384 = vlaneseq
      %v1385 = vshrl.u32 %v1384, 7
      %v1386 = vsub.s32 %v1153, %v1385
      %v1387 = vrot.slane %v1354, %v1386
      %v1388 = vlaneseq
      %v1389 = vshrl.u32 %v1388, 7
      %v1390 = vsub.s32 %v1153, %v1389
      %v1391 = vrot.slane %v1357, %v1390
      %v1392 = vlaneseq
      %v1393 = vshrl.u32 %v1392, 7
      %v1394 = vsub.s32 %v1153, %v1393
      %v1395 = vrot.slane %v1360, %v1394
      %v1396 = vlaneseq
      %v1397 = vshrl.u32 %v1396, 7
      %v1398 = vsub.s32 %v1153, %v1397
      %v1399 = vrot.slane %v1363, %v1398
      %v1400 = vlaneseq
      %v1401 = vshrl.u32 %v1400, 7
      %v1402 = vsub.s32 %v1153, %v1401
      %v1403 = vrot.slane %v1366, %v1402
      %v1404 = vlaneseq
      %v1405 = vshrl.u32 %v1404, 7
      %v1406 = vsub.s32 %v1153, %v1405
      %v1407 = vrot.slane %v1369, %v1406
      %v1408 = vlaneseq
      %v1409 = vshrl.u32 %v1408, 7
      %v1410 = vsub.s32 %v1153, %v1409
      %v1411 = vrot.slane %v1372, %v1410
      %v1412 = vlaneseq
      %v1413 = vshrl.u32 %v1412, 7
      %v1414 = vsub.s32 %v1153, %v1413
      %v1415 = vrot.slane %v1375, %v1414
      %v1416 = vsel %vm1186, %v1391, %v1387
      %v1417 = vsel %vm1188, %v1395, %v1416
      %v1418 = vsel %vm1190, %v1399, %v1417
      %v1419 = vsel %vm1192, %v1403, %v1418
      %v1420 = vsel %vm1194, %v1407, %v1419
      %v1421 = vsel %vm1196, %v1411, %v1420
      %v1422 = vsel %vm1198, %v1415, %v1421
      %v1424 = vadd.f32 %v1270, %v1422
      %v1426 = vsel %vm945, %v939, 0
      %1428 = vmatprep.subr.mxu0 0.0
      %1429 = vmatpush1.xpose.msra.mxu0 %v1201
      %1430 = vmatprep.subr.mxu0 0.0
      %1431 = vmatpush1.xpose.msra.mxu0 0.0
      %1432 = vmatprep.subr.mxu0 0.0
      %1433 = vmatpush1.xpose.msra.mxu0 0.0
      %1434 = vmatprep.subr.mxu0 0.0
      %1435 = vmatpush1.xpose.msra.mxu0 0.0
      %1436 = vmatprep.subr.mxu0 0.0
      %1437 = vmatpush1.xpose.msra.mxu0 0.0
      %1438 = vmatprep.subr.mxu0 0.0
      %1439 = vmatpush1.xpose.msra.mxu0 0.0
      %1440 = vmatprep.subr.mxu0 0.0
      %1441 = vmatpush1.xpose.msra.mxu0 0.0
      %1442 = vmatprep.subr.mxu0 0.0
      %1443 = vmatpush1.xpose.msra.mxu0 0.0
      %1444 = vmatprep.subr.mxu0 0.0
      %1445 = vmatpush1.xpose.msra.mxu0 0.0
      %1446 = vmatprep.subr.mxu0 0.0
      %1447 = vmatpush1.xpose.msra.mxu0 0.0
      %1448 = vmatprep.subr.mxu0 0.0
      %1449 = vmatpush1.xpose.msra.mxu0 0.0
      %1450 = vmatprep.subr.mxu0 0.0
      %1451 = vmatpush1.xpose.msra.mxu0 0.0
      %1452 = vmatprep.subr.mxu0 0.0
      %1453 = vmatpush1.xpose.msra.mxu0 0.0
      %1454 = vmatprep.subr.mxu0 0.0
      %1455 = vmatpush1.xpose.msra.mxu0 0.0
      %1456 = vmatprep.subr.mxu0 0.0
      %1457 = vmatpush1.xpose.msra.mxu0 0.0
      %1458 = vmatprep.subr.mxu0 0.0
      %1459 = vmatpush1.xpose.msra.mxu0 0.0
      %1460 = vmatprep.subr.mxu0 0.0
      %1461 = vmatpush1.xpose.msra.mxu0 0.0
      %1462 = vmatprep.subr.mxu0 0.0
      %1463 = vmatpush1.xpose.msra.mxu0 0.0
      %1464 = vmatprep.subr.mxu0 0.0
      %1465 = vmatpush1.xpose.msra.mxu0 0.0
      %1466 = vmatprep.subr.mxu0 0.0
      %1467 = vmatpush1.xpose.msra.mxu0 0.0
      %1468 = vmatprep.subr.mxu0 0.0
      %1469 = vmatpush1.xpose.msra.mxu0 0.0
      %1470 = vmatprep.subr.mxu0 0.0
      %1471 = vmatpush1.xpose.msra.mxu0 0.0
      %1472 = vmatprep.subr.mxu0 0.0
      %1473 = vmatpush1.xpose.msra.mxu0 0.0
      %1474 = vmatprep.subr.mxu0 0.0
      %1475 = vmatpush1.xpose.msra.mxu0 0.0
      %1476 = vmatprep.subr.mxu0 0.0
      %1477 = vmatpush1.xpose.msra.mxu0 0.0
      %1478 = vmatprep.subr.mxu0 0.0
      %1479 = vmatpush1.xpose.msra.mxu0 0.0
      %1480 = vmatprep.subr.mxu0 0.0
      %1481 = vmatpush1.xpose.msra.mxu0 0.0
      %1482 = vmatprep.subr.mxu0 0.0
      %1483 = vmatpush1.xpose.msra.mxu0 0.0
      %1484 = vmatprep.subr.mxu0 0.0
      %1485 = vmatpush1.xpose.msra.mxu0 0.0
      %1486 = vmatprep.subr.mxu0 0.0
      %1487 = vmatpush1.xpose.msra.mxu0 0.0
      %1488 = vmatprep.subr.mxu0 0.0
      %1489 = vmatpush1.xpose.msra.mxu0 0.0
      %1490 = vmatprep.subr.mxu0 0.0
      %1491 = vmatpush1.xpose.msra.mxu0 0.0
      %1492 = vmatprep.mubr.f32.mxu0 0.0
      %1493 = vmatmul.mubr.f32.gmra.mrb[0].mxu0 %v1426
      %v1494 = vpop.f32.mrb[0].mxu0
      %v1495 = vadd.f32 0.0, %v1494
      %v1496 = vpop.f32.mrb[0].mxu0
      %1497 = vdwg.mxu0
      %v1498 = vmul.f32 %v1495, 0.14433756
      %v1499 = vlaneseq
      %v1500 = vshrl.u32 %v1499, 7
      %v1501 = vsub.s32 0, %v1500
      %v1502 = vrot.slane %v1498, %v1501
      %v1503 = vadd.f32 %v1424, %v1502
      %v1504 = vsel %vm811, %v1503, -1e+09
      %vm1505 = vcmask 64512
      %v1506 = vsel %vm1505, %v1504, -inf
      %1507 = vmax.xlane.f32.xlu0 %v1506
      %v1508 = vpop.xlane.xlu0 %1507
      %v1509 = vsub.f32 %v1504, %v1508
      %v1510 = vmul.f32 %v1509, 1.442695
      %v1511 = vpow.pop %v1510
      %v1512 = vsel %vm1505, %v1511, 0.0
      %1513 = vadd.xlane.f32.xlu0 %v1512
      %v1514 = vpop.xlane.xlu0 %1513
      %v1515 = vrcp.pop %v1514
      %v1516 = vmul.f32 %v1511, %v1515
      %v1517 = vsel %vm811, %v1516, 0.0
      %1518 = vrot.lane.b32.xlu0 %v928, 64
      %v1519 = vpop.permute.xlu0 %1518
      %v1522 = vsel %vm1505, %v1517, 0
      %1524 = vmatprep.subr.mxu0 0.0
      %1525 = vmatpush1.msra.mxu0 %v1519
      %1526 = vmatprep.subr.mxu0 0.0
      %1527 = vmatpush1.msra.mxu0 0.0
      %1528 = vmatprep.subr.mxu0 0.0
      %1529 = vmatpush1.msra.mxu0 0.0
      %1530 = vmatprep.subr.mxu0 0.0
      %1531 = vmatpush1.msra.mxu0 0.0
      %1532 = vmatprep.subr.mxu0 0.0
      %1533 = vmatpush1.msra.mxu0 0.0
      %1534 = vmatprep.subr.mxu0 0.0
      %1535 = vmatpush1.msra.mxu0 0.0
      %1536 = vmatprep.subr.mxu0 0.0
      %1537 = vmatpush1.msra.mxu0 0.0
      %1538 = vmatprep.subr.mxu0 0.0
      %1539 = vmatpush1.msra.mxu0 0.0
      %1540 = vmatprep.subr.mxu0 0.0
      %1541 = vmatpush1.msra.mxu0 0.0
      %1542 = vmatprep.subr.mxu0 0.0
      %1543 = vmatpush1.msra.mxu0 0.0
      %1544 = vmatprep.subr.mxu0 0.0
      %1545 = vmatpush1.msra.mxu0 0.0
      %1546 = vmatprep.subr.mxu0 0.0
      %1547 = vmatpush1.msra.mxu0 0.0
      %1548 = vmatprep.subr.mxu0 0.0
      %1549 = vmatpush1.msra.mxu0 0.0
      %1550 = vmatprep.subr.mxu0 0.0
      %1551 = vmatpush1.msra.mxu0 0.0
      %1552 = vmatprep.subr.mxu0 0.0
      %1553 = vmatpush1.msra.mxu0 0.0
      %1554 = vmatprep.subr.mxu0 0.0
      %1555 = vmatpush1.msra.mxu0 0.0
      %1556 = vmatprep.subr.mxu0 0.0
      %1557 = vmatpush1.msra.mxu0 0.0
      %1558 = vmatprep.subr.mxu0 0.0
      %1559 = vmatpush1.msra.mxu0 0.0
      %1560 = vmatprep.subr.mxu0 0.0
      %1561 = vmatpush1.msra.mxu0 0.0
      %1562 = vmatprep.subr.mxu0 0.0
      %1563 = vmatpush1.msra.mxu0 0.0
      %1564 = vmatprep.subr.mxu0 0.0
      %1565 = vmatpush1.msra.mxu0 0.0
      %1566 = vmatprep.subr.mxu0 0.0
      %1567 = vmatpush1.msra.mxu0 0.0
      %1568 = vmatprep.subr.mxu0 0.0
      %1569 = vmatpush1.msra.mxu0 0.0
      %1570 = vmatprep.subr.mxu0 0.0
      %1571 = vmatpush1.msra.mxu0 0.0
      %1572 = vmatprep.subr.mxu0 0.0
      %1573 = vmatpush1.msra.mxu0 0.0
      %1574 = vmatprep.subr.mxu0 0.0
      %1575 = vmatpush1.msra.mxu0 0.0
      %1576 = vmatprep.subr.mxu0 0.0
      %1577 = vmatpush1.msra.mxu0 0.0
      %1578 = vmatprep.subr.mxu0 0.0
      %1579 = vmatpush1.msra.mxu0 0.0
      %1580 = vmatprep.subr.mxu0 0.0
      %1581 = vmatpush1.msra.mxu0 0.0
      %1582 = vmatprep.subr.mxu0 0.0
      %1583 = vmatpush1.msra.mxu0 0.0
      %1584 = vmatprep.subr.mxu0 0.0
      %1585 = vmatpush1.msra.mxu0 0.0
      %1586 = vmatprep.subr.mxu0 0.0
      %1587 = vmatpush1.msra.mxu0 0.0
      %1588 = vmatprep.mubr.f32.mxu0 0.0
      %1589 = vmatmul.mubr.f32.gmra.mrb[0].mxu0 %v1522
      %v1590 = vpop.f32.mrb[0].mxu0
      %v1591 = vadd.f32 0.0, %v1590
      %v1592 = vpop.f32.mrb[0].mxu0
      %1593 = vdwg.mxu0
      %1594 = vrot.lane.b32.xlu0 %v944, 112
      %v1595 = vpop.permute.xlu0 %1594
      %v1596 = vsel %vm945, %v1595, 0
      %1598 = vmatprep.subr.mxu0 0.0
      %1599 = vmatpush1.msra.mxu0 %v933
      %1600 = vmatprep.subr.mxu0 0.0
      %1601 = vmatpush1.msra.mxu0 %v934
      %1602 = vmatprep.subr.mxu0 0.0
      %1603 = vmatpush1.msra.mxu0 0.0
      %1604 = vmatprep.subr.mxu0 0.0
      %1605 = vmatpush1.msra.mxu0 0.0
      %1606 = vmatprep.subr.mxu0 0.0
      %1607 = vmatpush1.msra.mxu0 0.0
      %1608 = vmatprep.subr.mxu0 0.0
      %1609 = vmatpush1.msra.mxu0 0.0
      %1610 = vmatprep.subr.mxu0 0.0
      %1611 = vmatpush1.msra.mxu0 0.0
      %1612 = vmatprep.subr.mxu0 0.0
      %1613 = vmatpush1.msra.mxu0 0.0
      %1614 = vmatprep.subr.mxu0 0.0
      %1615 = vmatpush1.msra.mxu0 0.0
      %1616 = vmatprep.subr.mxu0 0.0
      %1617 = vmatpush1.msra.mxu0 0.0
      %1618 = vmatprep.subr.mxu0 0.0
      %1619 = vmatpush1.msra.mxu0 0.0
      %1620 = vmatprep.subr.mxu0 0.0
      %1621 = vmatpush1.msra.mxu0 0.0
      %1622 = vmatprep.subr.mxu0 0.0
      %1623 = vmatpush1.msra.mxu0 0.0
      %1624 = vmatprep.subr.mxu0 0.0
      %1625 = vmatpush1.msra.mxu0 0.0
      %1626 = vmatprep.subr.mxu0 0.0
      %1627 = vmatpush1.msra.mxu0 0.0
      %1628 = vmatprep.subr.mxu0 0.0
      %1629 = vmatpush1.msra.mxu0 0.0
      %1630 = vmatprep.subr.mxu0 0.0
      %1631 = vmatpush1.msra.mxu0 0.0
      %1632 = vmatprep.subr.mxu0 0.0
      %1633 = vmatpush1.msra.mxu0 0.0
      %1634 = vmatprep.subr.mxu0 0.0
      %1635 = vmatpush1.msra.mxu0 0.0
      %1636 = vmatprep.subr.mxu0 0.0
      %1637 = vmatpush1.msra.mxu0 0.0
      %1638 = vmatprep.subr.mxu0 0.0
      %1639 = vmatpush1.msra.mxu0 0.0
      %1640 = vmatprep.subr.mxu0 0.0
      %1641 = vmatpush1.msra.mxu0 0.0
      %1642 = vmatprep.subr.mxu0 0.0
      %1643 = vmatpush1.msra.mxu0 0.0
      %1644 = vmatprep.subr.mxu0 0.0
      %1645 = vmatpush1.msra.mxu0 0.0
      %1646 = vmatprep.subr.mxu0 0.0
      %1647 = vmatpush1.msra.mxu0 0.0
      %1648 = vmatprep.subr.mxu0 0.0
      %1649 = vmatpush1.msra.mxu0 0.0
      %1650 = vmatprep.subr.mxu0 0.0
      %1651 = vmatpush1.msra.mxu0 0.0
      %1652 = vmatprep.subr.mxu0 0.0
      %1653 = vmatpush1.msra.mxu0 0.0
      %1654 = vmatprep.subr.mxu0 0.0
      %1655 = vmatpush1.msra.mxu0 0.0
      %1656 = vmatprep.subr.mxu0 0.0
      %1657 = vmatpush1.msra.mxu0 0.0
      %1658 = vmatprep.subr.mxu0 0.0
      %1659 = vmatpush1.msra.mxu0 0.0
      %1660 = vmatprep.subr.mxu0 0.0
      %1661 = vmatpush1.msra.mxu0 0.0
      %1662 = vmatprep.mubr.f32.mxu0 0.0
      %1663 = vmatmul.mubr.f32.gmra.mrb[0].mxu0 %v1596
      %v1664 = vpop.f32.mrb[0].mxu0
      %v1665 = vadd.f32 0.0, %v1664
      %v1666 = vpop.f32.mrb[0].mxu0
      %1667 = vdwg.mxu0
      %v1669 = vcombine.high %v1665, %v1665
      %v1671 = vunpack.c.l.s4 1966171168
      %v1672 = vunpack.c.0.s8 %v1671
      %v1673 = vlaneseq
      %v1674 = vshrl.u32 %v1673, 7
      %v1675 = vsub.s32 %v1672, %v1674
      %v1676 = vrot.slane %v1665, %v1675
      %v1678 = vunpack.c.l.s4 1966171168
      %v1679 = vunpack.c.0.s8 %v1678
      %v1680 = vlaneseq
      %v1681 = vshrl.u32 %v1680, 7
      %v1682 = vsub.s32 %v1679, %v1681
      %v1683 = vrot.slane %v1669, %v1682
      %v1684 = vcombine.high %v1676, %v1676
      %v1685 = vcombine.high %v1683, %v1683
      %v1687 = vunpack.c.l.s4 1966171168
      %v1688 = vunpack.c.0.s8 %v1687
      %v1689 = vlaneseq
      %v1690 = vshrl.u32 %v1689, 7
      %v1691 = vsub.s32 %v1688, %v1690
      %v1692 = vrot.slane %v1676, %v1691
      %v1694 = vunpack.c.l.s4 1966171168
      %v1695 = vunpack.c.0.s8 %v1694
      %v1696 = vlaneseq
      %v1697 = vshrl.u32 %v1696, 7
      %v1698 = vsub.s32 %v1695, %v1697
      %v1699 = vrot.slane %v1683, %v1698
      %v1701 = vunpack.c.l.s4 1966171168
      %v1702 = vunpack.c.0.s8 %v1701
      %v1703 = vlaneseq
      %v1704 = vshrl.u32 %v1703, 7
      %v1705 = vsub.s32 %v1702, %v1704
      %v1706 = vrot.slane %v1684, %v1705
      %v1708 = vunpack.c.l.s4 1966171168
      %v1709 = vunpack.c.0.s8 %v1708
      %v1710 = vlaneseq
      %v1711 = vshrl.u32 %v1710, 7
      %v1712 = vsub.s32 %v1709, %v1711
      %v1713 = vrot.slane %v1685, %v1712
      %v1714 = vcombine.high %v1692, %v1692
      %v1715 = vcombine.high %v1699, %v1699
      %v1716 = vcombine.high %v1706, %v1706
      %v1717 = vcombine.high %v1713, %v1713
      %v1718 = vlaneseq
      %v1719 = vshrl.u32 %v1718, 7
      %v1720 = vsub.s32 0, %v1719
      %v1721 = vrot.slane %v1692, %v1720
      %v1722 = vlaneseq
      %v1723 = vshrl.u32 %v1722, 7
      %v1724 = vsub.s32 0, %v1723
      %v1725 = vrot.slane %v1706, %v1724
      %v1726 = vlaneseq
      %v1727 = vshrl.u32 %v1726, 7
      %v1728 = vsub.s32 0, %v1727
      %v1729 = vrot.slane %v1714, %v1728
      %v1730 = vlaneseq
      %v1731 = vshrl.u32 %v1730, 7
      %v1732 = vsub.s32 0, %v1731
      %v1733 = vrot.slane %v1716, %v1732
      %v1734 = vlaneseq
      %v1735 = vshrl.u32 %v1734, 7
      %v1736 = vsub.s32 0, %v1735
      %v1737 = vrot.slane %v1699, %v1736
      %v1738 = vlaneseq
      %v1739 = vshrl.u32 %v1738, 7
      %v1740 = vsub.s32 0, %v1739
      %v1741 = vrot.slane %v1713, %v1740
      %v1742 = vlaneseq
      %v1743 = vshrl.u32 %v1742, 7
      %v1744 = vsub.s32 0, %v1743
      %v1745 = vrot.slane %v1715, %v1744
      %v1746 = vlaneseq
      %v1747 = vshrl.u32 %v1746, 7
      %v1748 = vsub.s32 0, %v1747
      %v1749 = vrot.slane %v1717, %v1748
      %v1758 = vmul.f32 %v1721, %v789
      %v1759 = vmul.f32 %v1725, %v790
      %v1760 = vmul.f32 %v1729, %v791
      %v1761 = vmul.f32 %v1733, %v792
      %v1762 = vmul.f32 %v1737, %v793
      %v1763 = vmul.f32 %v1741, %v794
      %v1764 = vmul.f32 %v1745, %v795
      %v1765 = vmul.f32 %v1749, %v796
      %v1766 = vsel %vm817, %v1758, 0.0
      %1767 = vadd.xlane.f32.xlu0 %v1766
      %v1768 = vpop.xlane.xlu0 %1767
      %v1769 = vsel %vm817, %v1759, 0.0
      %1770 = vadd.xlane.f32.xlu0 %v1769
      %v1771 = vpop.xlane.xlu0 %1770
      %v1772 = vsel %vm817, %v1760, 0.0
      %1773 = vadd.xlane.f32.xlu0 %v1772
      %v1774 = vpop.xlane.xlu0 %1773
      %v1775 = vsel %vm817, %v1761, 0.0
      %1776 = vadd.xlane.f32.xlu0 %v1775
      %v1777 = vpop.xlane.xlu0 %1776
      %v1778 = vsel %vm817, %v1762, 0.0
      %1779 = vadd.xlane.f32.xlu0 %v1778
      %v1780 = vpop.xlane.xlu0 %1779
      %v1781 = vsel %vm817, %v1763, 0.0
      %1782 = vadd.xlane.f32.xlu0 %v1781
      %v1783 = vpop.xlane.xlu0 %1782
      %v1784 = vsel %vm817, %v1764, 0.0
      %1785 = vadd.xlane.f32.xlu0 %v1784
      %v1786 = vpop.xlane.xlu0 %1785
      %v1787 = vsel %vm817, %v1765, 0.0
      %1788 = vadd.xlane.f32.xlu0 %v1787
      %v1789 = vpop.xlane.xlu0 %1788
      %1790 = vrot.lane.b32.xlu0 %v928, 80
      %v1791 = vpop.permute.xlu0 %1790
      %v1800 = vlaneseq
      %v1801 = vshrl.u32 %v1800, 7
      %v1802 = vsub.s32 %v1153, %v1801
      %v1803 = vrot.slane %v1768, %v1802
      %v1804 = vlaneseq
      %v1805 = vshrl.u32 %v1804, 7
      %v1806 = vsub.s32 %v1153, %v1805
      %v1807 = vrot.slane %v1771, %v1806
      %v1808 = vlaneseq
      %v1809 = vshrl.u32 %v1808, 7
      %v1810 = vsub.s32 %v1153, %v1809
      %v1811 = vrot.slane %v1774, %v1810
      %v1812 = vlaneseq
      %v1813 = vshrl.u32 %v1812, 7
      %v1814 = vsub.s32 %v1153, %v1813
      %v1815 = vrot.slane %v1777, %v1814
      %v1816 = vlaneseq
      %v1817 = vshrl.u32 %v1816, 7
      %v1818 = vsub.s32 %v1153, %v1817
      %v1819 = vrot.slane %v1780, %v1818
      %v1820 = vlaneseq
      %v1821 = vshrl.u32 %v1820, 7
      %v1822 = vsub.s32 %v1153, %v1821
      %v1823 = vrot.slane %v1783, %v1822
      %v1824 = vlaneseq
      %v1825 = vshrl.u32 %v1824, 7
      %v1826 = vsub.s32 %v1153, %v1825
      %v1827 = vrot.slane %v1786, %v1826
      %v1828 = vlaneseq
      %v1829 = vshrl.u32 %v1828, 7
      %v1830 = vsub.s32 %v1153, %v1829
      %v1831 = vrot.slane %v1789, %v1830
      %v1832 = vsel %vm1186, %v1807, %v1803
      %v1833 = vsel %vm1188, %v1811, %v1832
      %v1834 = vsel %vm1190, %v1815, %v1833
      %v1835 = vsel %vm1192, %v1819, %v1834
      %v1836 = vsel %vm1194, %v1823, %v1835
      %v1837 = vsel %vm1196, %v1827, %v1836
      %v1838 = vsel %vm1198, %v1831, %v1837
      %v1840 = vsel %vm945, %v1791, 0
      %1842 = vmatprep.subr.mxu0 0.0
      %1843 = vmatpush1.xpose.msra.mxu0 %v1840
      %1844 = vmatprep.subr.mxu0 0.0
      %1845 = vmatpush1.xpose.msra.mxu0 0.0
      %1846 = vmatprep.subr.mxu0 0.0
      %1847 = vmatpush1.xpose.msra.mxu0 0.0
      %1848 = vmatprep.subr.mxu0 0.0
      %1849 = vmatpush1.xpose.msra.mxu0 0.0
      %1850 = vmatprep.subr.mxu0 0.0
      %1851 = vmatpush1.xpose.msra.mxu0 0.0
      %1852 = vmatprep.subr.mxu0 0.0
      %1853 = vmatpush1.xpose.msra.mxu0 0.0
      %1854 = vmatprep.subr.mxu0 0.0
      %1855 = vmatpush1.xpose.msra.mxu0 0.0
      %1856 = vmatprep.subr.mxu0 0.0
      %1857 = vmatpush1.xpose.msra.mxu0 0.0
      %1858 = vmatprep.subr.mxu0 0.0
      %1859 = vmatpush1.xpose.msra.mxu0 0.0
      %1860 = vmatprep.subr.mxu0 0.0
      %1861 = vmatpush1.xpose.msra.mxu0 0.0
      %1862 = vmatprep.subr.mxu0 0.0
      %1863 = vmatpush1.xpose.msra.mxu0 0.0
      %1864 = vmatprep.subr.mxu0 0.0
      %1865 = vmatpush1.xpose.msra.mxu0 0.0
      %1866 = vmatprep.subr.mxu0 0.0
      %1867 = vmatpush1.xpose.msra.mxu0 0.0
      %1868 = vmatprep.subr.mxu0 0.0
      %1869 = vmatpush1.xpose.msra.mxu0 0.0
      %1870 = vmatprep.subr.mxu0 0.0
      %1871 = vmatpush1.xpose.msra.mxu0 0.0
      %1872 = vmatprep.subr.mxu0 0.0
      %1873 = vmatpush1.xpose.msra.mxu0 0.0
      %1874 = vmatprep.subr.mxu0 0.0
      %1875 = vmatpush1.xpose.msra.mxu0 0.0
      %1876 = vmatprep.subr.mxu0 0.0
      %1877 = vmatpush1.xpose.msra.mxu0 0.0
      %1878 = vmatprep.subr.mxu0 0.0
      %1879 = vmatpush1.xpose.msra.mxu0 0.0
      %1880 = vmatprep.subr.mxu0 0.0
      %1881 = vmatpush1.xpose.msra.mxu0 0.0
      %1882 = vmatprep.subr.mxu0 0.0
      %1883 = vmatpush1.xpose.msra.mxu0 0.0
      %1884 = vmatprep.subr.mxu0 0.0
      %1885 = vmatpush1.xpose.msra.mxu0 0.0
      %1886 = vmatprep.subr.mxu0 0.0
      %1887 = vmatpush1.xpose.msra.mxu0 0.0
      %1888 = vmatprep.subr.mxu0 0.0
      %1889 = vmatpush1.xpose.msra.mxu0 0.0
      %1890 = vmatprep.subr.mxu0 0.0
      %1891 = vmatpush1.xpose.msra.mxu0 0.0
      %1892 = vmatprep.subr.mxu0 0.0
      %1893 = vmatpush1.xpose.msra.mxu0 0.0
      %1894 = vmatprep.subr.mxu0 0.0
      %1895 = vmatpush1.xpose.msra.mxu0 0.0
      %1896 = vmatprep.subr.mxu0 0.0
      %1897 = vmatpush1.xpose.msra.mxu0 0.0
      %1898 = vmatprep.subr.mxu0 0.0
      %1899 = vmatpush1.xpose.msra.mxu0 0.0
      %1900 = vmatprep.subr.mxu0 0.0
      %1901 = vmatpush1.xpose.msra.mxu0 0.0
      %1902 = vmatprep.subr.mxu0 0.0
      %1903 = vmatpush1.xpose.msra.mxu0 0.0
      %1904 = vmatprep.subr.mxu0 0.0
      %1905 = vmatpush1.xpose.msra.mxu0 0.0
      %1906 = vmatprep.mubr.f32.mxu0 0.0
      %1907 = vmatmul.mubr.f32.gmra.mrb[0].mxu0 %v1596
      %v1908 = vpop.f32.mrb[0].mxu0
      %v1909 = vadd.f32 %v1838, %v1908
      %v1910 = vpop.f32.mrb[0].mxu0
      %1911 = vdwg.mxu0
      %1912 = vmatprep.subr.mxu0 0.0
      %1913 = vmatpush1.msra.mxu0 %v937
      %1914 = vmatprep.subr.mxu0 0.0
      %1915 = vmatpush1.msra.mxu0 %v938
      %1916 = vmatprep.subr.mxu0 0.0
      %1917 = vmatpush1.msra.mxu0 0.0
      %1918 = vmatprep.subr.mxu0 0.0
      %1919 = vmatpush1.msra.mxu0 0.0
      %1920 = vmatprep.subr.mxu0 0.0
      %1921 = vmatpush1.msra.mxu0 0.0
      %1922 = vmatprep.subr.mxu0 0.0
      %1923 = vmatpush1.msra.mxu0 0.0
      %1924 = vmatprep.subr.mxu0 0.0
      %1925 = vmatpush1.msra.mxu0 0.0
      %1926 = vmatprep.subr.mxu0 0.0
      %1927 = vmatpush1.msra.mxu0 0.0
      %1928 = vmatprep.subr.mxu0 0.0
      %1929 = vmatpush1.msra.mxu0 0.0
      %1930 = vmatprep.subr.mxu0 0.0
      %1931 = vmatpush1.msra.mxu0 0.0
      %1932 = vmatprep.subr.mxu0 0.0
      %1933 = vmatpush1.msra.mxu0 0.0
      %1934 = vmatprep.subr.mxu0 0.0
      %1935 = vmatpush1.msra.mxu0 0.0
      %1936 = vmatprep.subr.mxu0 0.0
      %1937 = vmatpush1.msra.mxu0 0.0
      %1938 = vmatprep.subr.mxu0 0.0
      %1939 = vmatpush1.msra.mxu0 0.0
      %1940 = vmatprep.subr.mxu0 0.0
      %1941 = vmatpush1.msra.mxu0 0.0
      %1942 = vmatprep.subr.mxu0 0.0
      %1943 = vmatpush1.msra.mxu0 0.0
      %1944 = vmatprep.subr.mxu0 0.0
      %1945 = vmatpush1.msra.mxu0 0.0
      %1946 = vmatprep.subr.mxu0 0.0
      %1947 = vmatpush1.msra.mxu0 0.0
      %1948 = vmatprep.subr.mxu0 0.0
      %1949 = vmatpush1.msra.mxu0 0.0
      %1950 = vmatprep.subr.mxu0 0.0
      %1951 = vmatpush1.msra.mxu0 0.0
      %1952 = vmatprep.subr.mxu0 0.0
      %1953 = vmatpush1.msra.mxu0 0.0
      %1954 = vmatprep.subr.mxu0 0.0
      %1955 = vmatpush1.msra.mxu0 0.0
      %1956 = vmatprep.subr.mxu0 0.0
      %1957 = vmatpush1.msra.mxu0 0.0
      %1958 = vmatprep.subr.mxu0 0.0
      %1959 = vmatpush1.msra.mxu0 0.0
      %1960 = vmatprep.subr.mxu0 0.0
      %1961 = vmatpush1.msra.mxu0 0.0
      %1962 = vmatprep.subr.mxu0 0.0
      %1963 = vmatpush1.msra.mxu0 0.0
      %1964 = vmatprep.subr.mxu0 0.0
      %1965 = vmatpush1.msra.mxu0 0.0
      %1966 = vmatprep.subr.mxu0 0.0
      %1967 = vmatpush1.msra.mxu0 0.0
      %1968 = vmatprep.subr.mxu0 0.0
      %1969 = vmatpush1.msra.mxu0 0.0
      %1970 = vmatprep.subr.mxu0 0.0
      %1971 = vmatpush1.msra.mxu0 0.0
      %1972 = vmatprep.subr.mxu0 0.0
      %1973 = vmatpush1.msra.mxu0 0.0
      %1974 = vmatprep.subr.mxu0 0.0
      %1975 = vmatpush1.msra.mxu0 0.0
      %1976 = vmatprep.mubr.f32.mxu0 0.0
      %1977 = vmatmul.mubr.f32.gmra.mrb[0].mxu0 %v1840
      %v1978 = vpop.f32.mrb[0].mxu0
      %v1979 = vadd.f32 0.0, %v1978
      %v1980 = vpop.f32.mrb[0].mxu0
      %1981 = vdwg.mxu0
      %v1982 = vmul.f32 %v1979, 0.14433756
      %v1983 = vmul.f32 %v1982, %v789
      %v1984 = vmul.f32 %v1982, %v790
      %v1985 = vmul.f32 %v1982, %v791
      %v1986 = vmul.f32 %v1982, %v792
      %v1987 = vmul.f32 %v1982, %v793
      %v1988 = vmul.f32 %v1982, %v794
      %v1989 = vmul.f32 %v1982, %v795
      %v1990 = vmul.f32 %v1982, %v796
      %v1991 = vsel %vm817, %v1983, 0.0
      %1992 = vadd.xlane.f32.xlu0 %v1991
      %v1993 = vpop.xlane.xlu0 %1992
      %v1994 = vsel %vm817, %v1984, 0.0
      %1995 = vadd.xlane.f32.xlu0 %v1994
      %v1996 = vpop.xlane.xlu0 %1995
      %v1997 = vsel %vm817, %v1985, 0.0
      %1998 = vadd.xlane.f32.xlu0 %v1997
      %v1999 = vpop.xlane.xlu0 %1998
      %v2000 = vsel %vm817, %v1986, 0.0
      %2001 = vadd.xlane.f32.xlu0 %v2000
      %v2002 = vpop.xlane.xlu0 %2001
      %v2003 = vsel %vm817, %v1987, 0.0
      %2004 = vadd.xlane.f32.xlu0 %v2003
      %v2005 = vpop.xlane.xlu0 %2004
      %v2006 = vsel %vm817, %v1988, 0.0
      %2007 = vadd.xlane.f32.xlu0 %v2006
      %v2008 = vpop.xlane.xlu0 %2007
      %v2009 = vsel %vm817, %v1989, 0.0
      %2010 = vadd.xlane.f32.xlu0 %v2009
      %v2011 = vpop.xlane.xlu0 %2010
      %v2012 = vsel %vm817, %v1990, 0.0
      %2013 = vadd.xlane.f32.xlu0 %v2012
      %v2014 = vpop.xlane.xlu0 %2013
      %v2023 = vlaneseq
      %v2024 = vshrl.u32 %v2023, 7
      %v2025 = vsub.s32 %v1153, %v2024
      %v2026 = vrot.slane %v1993, %v2025
      %v2027 = vlaneseq
      %v2028 = vshrl.u32 %v2027, 7
      %v2029 = vsub.s32 %v1153, %v2028
      %v2030 = vrot.slane %v1996, %v2029
      %v2031 = vlaneseq
      %v2032 = vshrl.u32 %v2031, 7
      %v2033 = vsub.s32 %v1153, %v2032
      %v2034 = vrot.slane %v1999, %v2033
      %v2035 = vlaneseq
      %v2036 = vshrl.u32 %v2035, 7
      %v2037 = vsub.s32 %v1153, %v2036
      %v2038 = vrot.slane %v2002, %v2037
      %v2039 = vlaneseq
      %v2040 = vshrl.u32 %v2039, 7
      %v2041 = vsub.s32 %v1153, %v2040
      %v2042 = vrot.slane %v2005, %v2041
      %v2043 = vlaneseq
      %v2044 = vshrl.u32 %v2043, 7
      %v2045 = vsub.s32 %v1153, %v2044
      %v2046 = vrot.slane %v2008, %v2045
      %v2047 = vlaneseq
      %v2048 = vshrl.u32 %v2047, 7
      %v2049 = vsub.s32 %v1153, %v2048
      %v2050 = vrot.slane %v2011, %v2049
      %v2051 = vlaneseq
      %v2052 = vshrl.u32 %v2051, 7
      %v2053 = vsub.s32 %v1153, %v2052
      %v2054 = vrot.slane %v2014, %v2053
      %v2055 = vsel %vm1186, %v2030, %v2026
      %v2056 = vsel %vm1188, %v2034, %v2055
      %v2057 = vsel %vm1190, %v2038, %v2056
      %v2058 = vsel %vm1192, %v2042, %v2057
      %v2059 = vsel %vm1194, %v2046, %v2058
      %v2060 = vsel %vm1196, %v2050, %v2059
      %v2061 = vsel %vm1198, %v2054, %v2060
      %v2063 = vadd.f32 %v1909, %v2061
      %v2064 = vlaneseq
      %v2065 = vshrl.u32 %v2064, 7
      %v2066 = vsub.s32 0, %v2065
      %v2067 = vrot.slane %v939, %v2066
      %2068 = vrot.lane.b32.xlu0 %v2067, 112
      %v2069 = vpop.permute.xlu0 %2068
      %v2070 = vsel %vm945, %v2069, 0
      %2072 = vmatprep.subr.mxu0 0.0
      %2073 = vmatpush1.xpose.msra.mxu0 %v1840
      %2074 = vmatprep.subr.mxu0 0.0
      %2075 = vmatpush1.xpose.msra.mxu0 0.0
      %2076 = vmatprep.subr.mxu0 0.0
      %2077 = vmatpush1.xpose.msra.mxu0 0.0
      %2078 = vmatprep.subr.mxu0 0.0
      %2079 = vmatpush1.xpose.msra.mxu0 0.0
      %2080 = vmatprep.subr.mxu0 0.0
      %2081 = vmatpush1.xpose.msra.mxu0 0.0
      %2082 = vmatprep.subr.mxu0 0.0
      %2083 = vmatpush1.xpose.msra.mxu0 0.0
      %2084 = vmatprep.subr.mxu0 0.0
      %2085 = vmatpush1.xpose.msra.mxu0 0.0
      %2086 = vmatprep.subr.mxu0 0.0
      %2087 = vmatpush1.xpose.msra.mxu0 0.0
      %2088 = vmatprep.subr.mxu0 0.0
      %2089 = vmatpush1.xpose.msra.mxu0 0.0
      %2090 = vmatprep.subr.mxu0 0.0
      %2091 = vmatpush1.xpose.msra.mxu0 0.0
      %2092 = vmatprep.subr.mxu0 0.0
      %2093 = vmatpush1.xpose.msra.mxu0 0.0
      %2094 = vmatprep.subr.mxu0 0.0
      %2095 = vmatpush1.xpose.msra.mxu0 0.0
      %2096 = vmatprep.subr.mxu0 0.0
      %2097 = vmatpush1.xpose.msra.mxu0 0.0
      %2098 = vmatprep.subr.mxu0 0.0
      %2099 = vmatpush1.xpose.msra.mxu0 0.0
      %2100 = vmatprep.subr.mxu0 0.0
      %2101 = vmatpush1.xpose.msra.mxu0 0.0
      %2102 = vmatprep.subr.mxu0 0.0
      %2103 = vmatpush1.xpose.msra.mxu0 0.0
      %2104 = vmatprep.subr.mxu0 0.0
      %2105 = vmatpush1.xpose.msra.mxu0 0.0
      %2106 = vmatprep.subr.mxu0 0.0
      %2107 = vmatpush1.xpose.msra.mxu0 0.0
      %2108 = vmatprep.subr.mxu0 0.0
      %2109 = vmatpush1.xpose.msra.mxu0 0.0
      %2110 = vmatprep.subr.mxu0 0.0
      %2111 = vmatpush1.xpose.msra.mxu0 0.0
      %2112 = vmatprep.subr.mxu0 0.0
      %2113 = vmatpush1.xpose.msra.mxu0 0.0
      %2114 = vmatprep.subr.mxu0 0.0
      %2115 = vmatpush1.xpose.msra.mxu0 0.0
      %2116 = vmatprep.subr.mxu0 0.0
      %2117 = vmatpush1.xpose.msra.mxu0 0.0
      %2118 = vmatprep.subr.mxu0 0.0
      %2119 = vmatpush1.xpose.msra.mxu0 0.0
      %2120 = vmatprep.subr.mxu0 0.0
      %2121 = vmatpush1.xpose.msra.mxu0 0.0
      %2122 = vmatprep.subr.mxu0 0.0
      %2123 = vmatpush1.xpose.msra.mxu0 0.0
      %2124 = vmatprep.subr.mxu0 0.0
      %2125 = vmatpush1.xpose.msra.mxu0 0.0
      %2126 = vmatprep.subr.mxu0 0.0
      %2127 = vmatpush1.xpose.msra.mxu0 0.0
      %2128 = vmatprep.subr.mxu0 0.0
      %2129 = vmatpush1.xpose.msra.mxu0 0.0
      %2130 = vmatprep.subr.mxu0 0.0
      %2131 = vmatpush1.xpose.msra.mxu0 0.0
      %2132 = vmatprep.subr.mxu0 0.0
      %2133 = vmatpush1.xpose.msra.mxu0 0.0
      %2134 = vmatprep.subr.mxu0 0.0
      %2135 = vmatpush1.xpose.msra.mxu0 0.0
      %2136 = vmatprep.mubr.f32.mxu0 0.0
      %2137 = vmatmul.mubr.f32.gmra.mrb[0].mxu0 %v2070
      %v2138 = vpop.f32.mrb[0].mxu0
      %v2139 = vadd.f32 0.0, %v2138
      %v2140 = vpop.f32.mrb[0].mxu0
      %2141 = vdwg.mxu0
      %v2142 = vmul.f32 %v2139, 0.14433756
      %v2143 = vlaneseq
      %v2144 = vshrl.u32 %v2143, 7
      %v2145 = vsub.s32 0, %v2144
      %v2146 = vrot.slane %v2142, %v2145
      %v2147 = vadd.f32 %v2063, %v2146
      %v2148 = vsel %vm811, %v2147, -1e+09
      %v2149 = vsel %vm1505, %v2148, -inf
      %2150 = vmax.xlane.f32.xlu0 %v2149
      %v2151 = vpop.xlane.xlu0 %2150
      %v2152 = vsub.f32 %v2148, %v2151
      %v2153 = vmul.f32 %v2152, 1.442695
      %v2154 = vpow.pop %v2153
      %v2155 = vsel %vm1505, %v2154, 0.0
      %2156 = vadd.xlane.f32.xlu0 %v2155
      %v2157 = vpop.xlane.xlu0 %2156
      %v2158 = vrcp.pop %v2157
      %v2159 = vmul.f32 %v2154, %v2158
      %v2160 = vsel %vm811, %v2159, 0.0
      %2161 = vrot.lane.b32.xlu0 %v928, 48
      %v2162 = vpop.permute.xlu0 %2161
      %v2165 = vsel %vm1505, %v2160, 0
      %2167 = vmatprep.subr.mxu0 0.0
      %2168 = vmatpush1.msra.mxu0 %v2162
      %2169 = vmatprep.subr.mxu0 0.0
      %2170 = vmatpush1.msra.mxu0 0.0
      %2171 = vmatprep.subr.mxu0 0.0
      %2172 = vmatpush1.msra.mxu0 0.0
      %2173 = vmatprep.subr.mxu0 0.0
      %2174 = vmatpush1.msra.mxu0 0.0
      %2175 = vmatprep.subr.mxu0 0.0
      %2176 = vmatpush1.msra.mxu0 0.0
      %2177 = vmatprep.subr.mxu0 0.0
      %2178 = vmatpush1.msra.mxu0 0.0
      %2179 = vmatprep.subr.mxu0 0.0
      %2180 = vmatpush1.msra.mxu0 0.0
      %2181 = vmatprep.subr.mxu0 0.0
      %2182 = vmatpush1.msra.mxu0 0.0
      %2183 = vmatprep.subr.mxu0 0.0
      %2184 = vmatpush1.msra.mxu0 0.0
      %2185 = vmatprep.subr.mxu0 0.0
      %2186 = vmatpush1.msra.mxu0 0.0
      %2187 = vmatprep.subr.mxu0 0.0
      %2188 = vmatpush1.msra.mxu0 0.0
      %2189 = vmatprep.subr.mxu0 0.0
      %2190 = vmatpush1.msra.mxu0 0.0
      %2191 = vmatprep.subr.mxu0 0.0
      %2192 = vmatpush1.msra.mxu0 0.0
      %2193 = vmatprep.subr.mxu0 0.0
      %2194 = vmatpush1.msra.mxu0 0.0
      %2195 = vmatprep.subr.mxu0 0.0
      %2196 = vmatpush1.msra.mxu0 0.0
      %2197 = vmatprep.subr.mxu0 0.0
      %2198 = vmatpush1.msra.mxu0 0.0
      %2199 = vmatprep.subr.mxu0 0.0
      %2200 = vmatpush1.msra.mxu0 0.0
      %2201 = vmatprep.subr.mxu0 0.0
      %2202 = vmatpush1.msra.mxu0 0.0
      %2203 = vmatprep.subr.mxu0 0.0
      %2204 = vmatpush1.msra.mxu0 0.0
      %2205 = vmatprep.subr.mxu0 0.0
      %2206 = vmatpush1.msra.mxu0 0.0
      %2207 = vmatprep.subr.mxu0 0.0
      %2208 = vmatpush1.msra.mxu0 0.0
      %2209 = vmatprep.subr.mxu0 0.0
      %2210 = vmatpush1.msra.mxu0 0.0
      %2211 = vmatprep.subr.mxu0 0.0
      %2212 = vmatpush1.msra.mxu0 0.0
      %2213 = vmatprep.subr.mxu0 0.0
      %2214 = vmatpush1.msra.mxu0 0.0
      %2215 = vmatprep.subr.mxu0 0.0
      %2216 = vmatpush1.msra.mxu0 0.0
      %2217 = vmatprep.subr.mxu0 0.0
      %2218 = vmatpush1.msra.mxu0 0.0
      %2219 = vmatprep.subr.mxu0 0.0
      %2220 = vmatpush1.msra.mxu0 0.0
      %2221 = vmatprep.subr.mxu0 0.0
      %2222 = vmatpush1.msra.mxu0 0.0
      %2223 = vmatprep.subr.mxu0 0.0
      %2224 = vmatpush1.msra.mxu0 0.0
      %2225 = vmatprep.subr.mxu0 0.0
      %2226 = vmatpush1.msra.mxu0 0.0
      %2227 = vmatprep.subr.mxu0 0.0
      %2228 = vmatpush1.msra.mxu0 0.0
      %2229 = vmatprep.subr.mxu0 0.0
      %2230 = vmatpush1.msra.mxu0 0.0
      %2231 = vmatprep.mubr.f32.mxu0 0.0
      %2232 = vmatmul.mubr.f32.gmra.mrb[0].mxu0 %v2165
      %v2233 = vpop.f32.mrb[0].mxu0
      %v2234 = vadd.f32 0.0, %v2233
      %v2235 = vpop.f32.mrb[0].mxu0
      %2236 = vdwg.mxu0
      %v2238 = vsel %vm945, %v2234, 0
      %2240 = vmatprep.subr.mxu0 0.0
      %2241 = vmatpush1.msra.mxu0 %v942
      %2242 = vmatprep.subr.mxu0 0.0
      %2243 = vmatpush1.msra.mxu0 %v943
      %2244 = vmatprep.subr.mxu0 0.0
      %2245 = vmatpush1.msra.mxu0 0.0
      %2246 = vmatprep.subr.mxu0 0.0
      %2247 = vmatpush1.msra.mxu0 0.0
      %2248 = vmatprep.subr.mxu0 0.0
      %2249 = vmatpush1.msra.mxu0 0.0
      %2250 = vmatprep.subr.mxu0 0.0
      %2251 = vmatpush1.msra.mxu0 0.0
      %2252 = vmatprep.subr.mxu0 0.0
      %2253 = vmatpush1.msra.mxu0 0.0
      %2254 = vmatprep.subr.mxu0 0.0
      %2255 = vmatpush1.msra.mxu0 0.0
      %2256 = vmatprep.subr.mxu0 0.0
      %2257 = vmatpush1.msra.mxu0 0.0
      %2258 = vmatprep.subr.mxu0 0.0
      %2259 = vmatpush1.msra.mxu0 0.0
      %2260 = vmatprep.subr.mxu0 0.0
      %2261 = vmatpush1.msra.mxu0 0.0
      %2262 = vmatprep.subr.mxu0 0.0
      %2263 = vmatpush1.msra.mxu0 0.0
      %2264 = vmatprep.subr.mxu0 0.0
      %2265 = vmatpush1.msra.mxu0 0.0
      %2266 = vmatprep.subr.mxu0 0.0
      %2267 = vmatpush1.msra.mxu0 0.0
      %2268 = vmatprep.subr.mxu0 0.0
      %2269 = vmatpush1.msra.mxu0 0.0
      %2270 = vmatprep.subr.mxu0 0.0
      %2271 = vmatpush1.msra.mxu0 0.0
      %2272 = vmatprep.subr.mxu0 0.0
      %2273 = vmatpush1.msra.mxu0 0.0
      %2274 = vmatprep.subr.mxu0 0.0
      %2275 = vmatpush1.msra.mxu0 0.0
      %2276 = vmatprep.subr.mxu0 0.0
      %2277 = vmatpush1.msra.mxu0 0.0
      %2278 = vmatprep.subr.mxu0 0.0
      %2279 = vmatpush1.msra.mxu0 0.0
      %2280 = vmatprep.subr.mxu0 0.0
      %2281 = vmatpush1.msra.mxu0 0.0
      %2282 = vmatprep.subr.mxu0 0.0
      %2283 = vmatpush1.msra.mxu0 0.0
      %2284 = vmatprep.subr.mxu0 0.0
      %2285 = vmatpush1.msra.mxu0 0.0
      %2286 = vmatprep.subr.mxu0 0.0
      %2287 = vmatpush1.msra.mxu0 0.0
      %2288 = vmatprep.subr.mxu0 0.0
      %2289 = vmatpush1.msra.mxu0 0.0
      %2290 = vmatprep.subr.mxu0 0.0
      %2291 = vmatpush1.msra.mxu0 0.0
      %2292 = vmatprep.subr.mxu0 0.0
      %2293 = vmatpush1.msra.mxu0 0.0
      %2294 = vmatprep.subr.mxu0 0.0
      %2295 = vmatpush1.msra.mxu0 0.0
      %2296 = vmatprep.subr.mxu0 0.0
      %2297 = vmatpush1.msra.mxu0 0.0
      %2298 = vmatprep.subr.mxu0 0.0
      %2299 = vmatpush1.msra.mxu0 0.0
      %2300 = vmatprep.subr.mxu0 0.0
      %2301 = vmatpush1.msra.mxu0 0.0
      %2302 = vmatprep.subr.mxu0 0.0
      %2303 = vmatpush1.msra.mxu0 0.0
      %2304 = vmatprep.mubr.f32.mxu0 0.0
      %2305 = vmatmul.mubr.f32.gmra.mrb[0].mxu0 %v2238
      %v2306 = vpop.f32.mrb[0].mxu0
      %v2307 = vadd.f32 0.0, %v2306
      %v2308 = vpop.f32.mrb[0].mxu0
      %2309 = vdwg.mxu0
      %v2311 = vsel %vm945, %v1591, 0
      %2313 = vmatprep.subr.mxu0 0.0
      %2314 = vmatpush1.msra.mxu0 %v940
      %2315 = vmatprep.subr.mxu0 0.0
      %2316 = vmatpush1.msra.mxu0 %v941
      %2317 = vmatprep.subr.mxu0 0.0
      %2318 = vmatpush1.msra.mxu0 0.0
      %2319 = vmatprep.subr.mxu0 0.0
      %2320 = vmatpush1.msra.mxu0 0.0
      %2321 = vmatprep.subr.mxu0 0.0
      %2322 = vmatpush1.msra.mxu0 0.0
      %2323 = vmatprep.subr.mxu0 0.0
      %2324 = vmatpush1.msra.mxu0 0.0
      %2325 = vmatprep.subr.mxu0 0.0
      %2326 = vmatpush1.msra.mxu0 0.0
      %2327 = vmatprep.subr.mxu0 0.0
      %2328 = vmatpush1.msra.mxu0 0.0
      %2329 = vmatprep.subr.mxu0 0.0
      %2330 = vmatpush1.msra.mxu0 0.0
      %2331 = vmatprep.subr.mxu0 0.0
      %2332 = vmatpush1.msra.mxu0 0.0
      %2333 = vmatprep.subr.mxu0 0.0
      %2334 = vmatpush1.msra.mxu0 0.0
      %2335 = vmatprep.subr.mxu0 0.0
      %2336 = vmatpush1.msra.mxu0 0.0
      %2337 = vmatprep.subr.mxu0 0.0
      %2338 = vmatpush1.msra.mxu0 0.0
      %2339 = vmatprep.subr.mxu0 0.0
      %2340 = vmatpush1.msra.mxu0 0.0
      %2341 = vmatprep.subr.mxu0 0.0
      %2342 = vmatpush1.msra.mxu0 0.0
      %2343 = vmatprep.subr.mxu0 0.0
      %2344 = vmatpush1.msra.mxu0 0.0
      %2345 = vmatprep.subr.mxu0 0.0
      %2346 = vmatpush1.msra.mxu0 0.0
      %2347 = vmatprep.subr.mxu0 0.0
      %2348 = vmatpush1.msra.mxu0 0.0
      %2349 = vmatprep.subr.mxu0 0.0
      %2350 = vmatpush1.msra.mxu0 0.0
      %2351 = vmatprep.subr.mxu0 0.0
      %2352 = vmatpush1.msra.mxu0 0.0
      %2353 = vmatprep.subr.mxu0 0.0
      %2354 = vmatpush1.msra.mxu0 0.0
      %2355 = vmatprep.subr.mxu0 0.0
      %2356 = vmatpush1.msra.mxu0 0.0
      %2357 = vmatprep.subr.mxu0 0.0
      %2358 = vmatpush1.msra.mxu0 0.0
      %2359 = vmatprep.subr.mxu0 0.0
      %2360 = vmatpush1.msra.mxu0 0.0
      %2361 = vmatprep.subr.mxu0 0.0
      %2362 = vmatpush1.msra.mxu0 0.0
      %2363 = vmatprep.subr.mxu0 0.0
      %2364 = vmatpush1.msra.mxu0 0.0
      %2365 = vmatprep.subr.mxu0 0.0
      %2366 = vmatpush1.msra.mxu0 0.0
      %2367 = vmatprep.subr.mxu0 0.0
      %2368 = vmatpush1.msra.mxu0 0.0
      %2369 = vmatprep.subr.mxu0 0.0
      %2370 = vmatpush1.msra.mxu0 0.0
      %2371 = vmatprep.subr.mxu0 0.0
      %2372 = vmatpush1.msra.mxu0 0.0
      %2373 = vmatprep.subr.mxu0 0.0
      %2374 = vmatpush1.msra.mxu0 0.0
      %2375 = vmatprep.subr.mxu0 0.0
      %2376 = vmatpush1.msra.mxu0 0.0
      %2377 = vmatprep.mubr.f32.mxu0 0.0
      %2378 = vmatmul.mubr.f32.gmra.mrb[0].mxu0 %v2311
      %v2379 = vpop.f32.mrb[0].mxu0
      %v2380 = vadd.f32 %v2307, %v2379
      %v2381 = vpop.f32.mrb[0].mxu0
      %2382 = vdwg.mxu0
      %v2383 = vld [vmem:[%s12] sm:$0x1]
      %v2385 = vlaneseq
      %v2386 = vshrl.u32 %v2385, 7
      %v2387 = vsub.s32 0, %v2386
      %v2388 = vrot.slane %v2383, %v2387
      %v2390 = vadd.f32 %v2380, %v2388
      %v2391 = vadd.f32 %v2390, %v846
      %v2392 = vld [vmem:[%s13] sm:$0x1]
      %v2393 = vld [vmem:[%s14] sm:$0x1]
      %v2394 = vsel %vm817, %v2391, 0.0
      %2395 = vadd.xlane.f32.xlu0 %v2394
      %v2396 = vpop.xlane.xlu0 %2395
      %v2397 = vmul.f32 %v2396, %v821
      %v2398 = vsub.f32 %v2391, %v2397
      %v2399 = vmul.f32 %v2398, %v2398
      %v2400 = vsel %vm817, %v2399, 0.0
      %2401 = vadd.xlane.f32.xlu0 %v2400
      %v2402 = vpop.xlane.xlu0 %2401
      %v2403 = vmul.f32 %v2402, %v821
      %v2404 = vadd.f32 %v2403, 1e-07
      %v2405 = vrsqrt.pop %v2404
      %v2406 = vmul.f32 %v2398, %v2405
      %v2408 = vlaneseq
      %v2409 = vshrl.u32 %v2408, 7
      %v2410 = vsub.s32 0, %v2409
      %v2411 = vrot.slane %v2392, %v2410
      %v2413 = vmul.f32 %v2406, %v2411
      %v2415 = vlaneseq
      %v2416 = vshrl.u32 %v2415, 7
      %v2417 = vsub.s32 0, %v2416
      %v2418 = vrot.slane %v2393, %v2417
      %v2420 = vadd.f32 %v2413, %v2418
      %v2421 = vld [vmem:[%s15] sm:$0xff]
      %v2422 = vld [vmem:[%s15 + $0x8] sm:$0xff]
      %v2423 = vld [vmem:[%s15 + $0x10] sm:$0xff]
      %v2424 = vld [vmem:[%s15 + $0x18] sm:$0xff]
      %v2425 = vld [vmem:[%s16] sm:$0x1]
      %v2427 = vlaneseq
      %v2428 = vshrl.u32 %v2427, 7
      %v2429 = vsub.s32 0, %v2428
      %v2430 = vrot.slane %v2425, %v2429
      %v2433 = vsel %vm817, %v2420, 0
      %2435 = vmatprep.subr.mxu0 0.0
      %2436 = vmatpush1.msra.mxu0 %v2421
      %2437 = vmatprep.subr.mxu0 0.0
      %2438 = vmatpush1.msra.mxu0 %v2422
      %2439 = vmatprep.subr.mxu0 0.0
      %2440 = vmatpush1.msra.mxu0 %v2423
      %2441 = vmatprep.subr.mxu0 0.0
      %2442 = vmatpush1.msra.mxu0 %v2424
      %2443 = vmatprep.subr.mxu0 0.0
      %2444 = vmatpush1.msra.mxu0 0.0
      %2445 = vmatprep.subr.mxu0 0.0
      %2446 = vmatpush1.msra.mxu0 0.0
      %2447 = vmatprep.subr.mxu0 0.0
      %2448 = vmatpush1.msra.mxu0 0.0
      %2449 = vmatprep.subr.mxu0 0.0
      %2450 = vmatpush1.msra.mxu0 0.0
      %2451 = vmatprep.subr.mxu0 0.0
      %2452 = vmatpush1.msra.mxu0 0.0
      %2453 = vmatprep.subr.mxu0 0.0
      %2454 = vmatpush1.msra.mxu0 0.0
      %2455 = vmatprep.subr.mxu0 0.0
      %2456 = vmatpush1.msra.mxu0 0.0
      %2457 = vmatprep.subr.mxu0 0.0
      %2458 = vmatpush1.msra.mxu0 0.0
      %2459 = vmatprep.subr.mxu0 0.0
      %2460 = vmatpush1.msra.mxu0 0.0
      %2461 = vmatprep.subr.mxu0 0.0
      %2462 = vmatpush1.msra.mxu0 0.0
      %2463 = vmatprep.subr.mxu0 0.0
      %2464 = vmatpush1.msra.mxu0 0.0
      %2465 = vmatprep.subr.mxu0 0.0
      %2466 = vmatpush1.msra.mxu0 0.0
      %2467 = vmatprep.subr.mxu0 0.0
      %2468 = vmatpush1.msra.mxu0 0.0
      %2469 = vmatprep.subr.mxu0 0.0
      %2470 = vmatpush1.msra.mxu0 0.0
      %2471 = vmatprep.subr.mxu0 0.0
      %2472 = vmatpush1.msra.mxu0 0.0
      %2473 = vmatprep.subr.mxu0 0.0
      %2474 = vmatpush1.msra.mxu0 0.0
      %2475 = vmatprep.subr.mxu0 0.0
      %2476 = vmatpush1.msra.mxu0 0.0
      %2477 = vmatprep.subr.mxu0 0.0
      %2478 = vmatpush1.msra.mxu0 0.0
      %2479 = vmatprep.subr.mxu0 0.0
      %2480 = vmatpush1.msra.mxu0 0.0
      %2481 = vmatprep.subr.mxu0 0.0
      %2482 = vmatpush1.msra.mxu0 0.0
      %2483 = vmatprep.subr.mxu0 0.0
      %2484 = vmatpush1.msra.mxu0 0.0
      %2485 = vmatprep.subr.mxu0 0.0
      %2486 = vmatpush1.msra.mxu0 0.0
      %2487 = vmatprep.subr.mxu0 0.0
      %2488 = vmatpush1.msra.mxu0 0.0
      %2489 = vmatprep.subr.mxu0 0.0
      %2490 = vmatpush1.msra.mxu0 0.0
      %2491 = vmatprep.subr.mxu0 0.0
      %2492 = vmatpush1.msra.mxu0 0.0
      %2493 = vmatprep.subr.mxu0 0.0
      %2494 = vmatpush1.msra.mxu0 0.0
      %2495 = vmatprep.subr.mxu0 0.0
      %2496 = vmatpush1.msra.mxu0 0.0
      %2497 = vmatprep.subr.mxu0 0.0
      %2498 = vmatpush1.msra.mxu0 0.0
      %2499 = vmatprep.mubr.f32.mxu0 0.0
      %2500 = vmatmul.mubr.f32.gmra.mrb[0].mxu0 %v2433
      %v2501 = vpop.f32.mrb[0].mxu0
      %v2502 = vadd.f32 %v2430, %v2501
      %v2503 = vpop.f32.mrb[0].mxu0
      %2504 = vdwg.mxu0
      %v2505 = vmul.f32 %v2502, 0.5
      %v2506 = vmul.f32 %v2502, 0.70710677
      %v2507 = verf.f32.pop %v2506
      %v2508 = vadd.f32 %v2507, 1.0
      %v2509 = vmul.f32 %v2505, %v2508
      %v2510 = vld [vmem:[%s17] sm:$0xff]
      %v2511 = vld [vmem:[%s17 + $0x8] sm:$0xff]
      %v2512 = vld [vmem:[%s17 + $0x10] sm:$0xff]
      %v2513 = vld [vmem:[%s17 + $0x18] sm:$0xff]
      %v2514 = vld [vmem:[%s17 + $0x20] sm:$0xff]
      %v2515 = vld [vmem:[%s17 + $0x28] sm:$0xff]
      %v2516 = vld [vmem:[%s17 + $0x30] sm:$0xff]
      %v2517 = vld [vmem:[%s17 + $0x38] sm:$0xff]
      %v2518 = vld [vmem:[%s18] sm:$0x1]
      %v2520 = vlaneseq
      %v2521 = vshrl.u32 %v2520, 7
      %v2522 = vsub.s32 0, %v2521
      %v2523 = vrot.slane %v2518, %v2522
      %vm2525 = vcmask 523264
      %v2527 = vsel %vm2525, %v2509, 0
      %2529 = vmatprep.subr.mxu0 0.0
      %2530 = vmatpush1.msra.mxu0 %v2510
      %2531 = vmatprep.subr.mxu0 0.0
      %2532 = vmatpush1.msra.mxu0 %v2511
      %2533 = vmatprep.subr.mxu0 0.0
      %2534 = vmatpush1.msra.mxu0 %v2512
      %2535 = vmatprep.subr.mxu0 0.0
      %2536 = vmatpush1.msra.mxu0 %v2513
      %2537 = vmatprep.subr.mxu0 0.0
      %2538 = vmatpush1.msra.mxu0 %v2514
      %2539 = vmatprep.subr.mxu0 0.0
      %2540 = vmatpush1.msra.mxu0 %v2515
      %2541 = vmatprep.subr.mxu0 0.0
      %2542 = vmatpush1.msra.mxu0 %v2516
      %2543 = vmatprep.subr.mxu0 0.0
      %2544 = vmatpush1.msra.mxu0 %v2517
      %2545 = vmatprep.subr.mxu0 0.0
      %2546 = vmatpush1.msra.mxu0 0.0
      %2547 = vmatprep.subr.mxu0 0.0
      %2548 = vmatpush1.msra.mxu0 0.0
      %2549 = vmatprep.subr.mxu0 0.0
      %2550 = vmatpush1.msra.mxu0 0.0
      %2551 = vmatprep.subr.mxu0 0.0
      %2552 = vmatpush1.msra.mxu0 0.0
      %2553 = vmatprep.subr.mxu0 0.0
      %2554 = vmatpush1.msra.mxu0 0.0
      %2555 = vmatprep.subr.mxu0 0.0
      %2556 = vmatpush1.msra.mxu0 0.0
      %2557 = vmatprep.subr.mxu0 0.0
      %2558 = vmatpush1.msra.mxu0 0.0
      %2559 = vmatprep.subr.mxu0 0.0
      %2560 = vmatpush1.msra.mxu0 0.0
      %2561 = vmatprep.subr.mxu0 0.0
      %2562 = vmatpush1.msra.mxu0 0.0
      %2563 = vmatprep.subr.mxu0 0.0
      %2564 = vmatpush1.msra.mxu0 0.0
      %2565 = vmatprep.subr.mxu0 0.0
      %2566 = vmatpush1.msra.mxu0 0.0
      %2567 = vmatprep.subr.mxu0 0.0
      %2568 = vmatpush1.msra.mxu0 0.0
      %2569 = vmatprep.subr.mxu0 0.0
      %2570 = vmatpush1.msra.mxu0 0.0
      %2571 = vmatprep.subr.mxu0 0.0
      %2572 = vmatpush1.msra.mxu0 0.0
      %2573 = vmatprep.subr.mxu0 0.0
      %2574 = vmatpush1.msra.mxu0 0.0
      %2575 = vmatprep.subr.mxu0 0.0
      %2576 = vmatpush1.msra.mxu0 0.0
      %2577 = vmatprep.subr.mxu0 0.0
      %2578 = vmatpush1.msra.mxu0 0.0
      %2579 = vmatprep.subr.mxu0 0.0
      %2580 = vmatpush1.msra.mxu0 0.0
      %2581 = vmatprep.subr.mxu0 0.0
      %2582 = vmatpush1.msra.mxu0 0.0
      %2583 = vmatprep.subr.mxu0 0.0
      %2584 = vmatpush1.msra.mxu0 0.0
      %2585 = vmatprep.subr.mxu0 0.0
      %2586 = vmatpush1.msra.mxu0 0.0
      %2587 = vmatprep.subr.mxu0 0.0
      %2588 = vmatpush1.msra.mxu0 0.0
      %2589 = vmatprep.subr.mxu0 0.0
      %2590 = vmatpush1.msra.mxu0 0.0
      %2591 = vmatprep.subr.mxu0 0.0
      %2592 = vmatpush1.msra.mxu0 0.0
      %2593 = vmatprep.mubr.f32.mxu0 0.0
      %2594 = vmatmul.mubr.f32.gmra.mrb[0].mxu0 %v2527
      %v2595 = vpop.f32.mrb[0].mxu0
      %v2596 = vadd.f32 %v2523, %v2595
      %v2597 = vpop.f32.mrb[0].mxu0
      %2598 = vdwg.mxu0
      %v2599 = vadd.f32 %v2596, %v2420
      %v2600 = vld [vmem:[%s19] sm:$0x1]
      %v2601 = vld [vmem:[%s20] sm:$0x1]
      %v2602 = vsel %vm817, %v2599, 0.0
      %2603 = vadd.xlane.f32.xlu0 %v2602
      %v2604 = vpop.xlane.xlu0 %2603
      %v2605 = vmul.f32 %v2604, %v821
      %v2606 = vsub.f32 %v2599, %v2605
      %v2607 = vmul.f32 %v2606, %v2606
      %v2608 = vsel %vm817, %v2607, 0.0
      %2609 = vadd.xlane.f32.xlu0 %v2608
      %v2610 = vpop.xlane.xlu0 %2609
      %v2611 = vmul.f32 %v2610, %v821
      %v2612 = vadd.f32 %v2611, 1e-07
      %v2613 = vrsqrt.pop %v2612
      %v2614 = vmul.f32 %v2606, %v2613
      %v2616 = vlaneseq
      %v2617 = vshrl.u32 %v2616, 7
      %v2618 = vsub.s32 0, %v2617
      %v2619 = vrot.slane %v2600, %v2618
      %v2621 = vmul.f32 %v2614, %v2619
      %v2623 = vlaneseq
      %v2624 = vshrl.u32 %v2623, 7
      %v2625 = vsub.s32 0, %v2624
      %v2626 = vrot.slane %v2601, %v2625
      %v2628 = vadd.f32 %v2621, %v2626
      %s2629 = scalar_lea.vmem %s7, 32
      %v2630 = vld [vmem:[%s2629] sm:$0xff]
      %v2631 = vld [vmem:[%s2629 + $0x8] sm:$0xff]
      %v2632 = vld [vmem:[%s2629 + $0x10] sm:$0xff]
      %v2633 = vld [vmem:[%s2629 + $0x18] sm:$0xff]
      %s2634 = scalar_lea.vmem %s8, 1
      %v2635 = vld [vmem:[%s2634] sm:$0x1]
      %v2637 = vlaneseq
      %v2638 = vshrl.u32 %v2637, 7
      %v2639 = vsub.s32 0, %v2638
      %v2640 = vrot.slane %v2635, %v2639
      %v2643 = vsel %vm817, %v2628, 0
      %2645 = vmatprep.subr.mxu0 0.0
      %2646 = vmatpush1.msra.mxu0 %v2630
      %2647 = vmatprep.subr.mxu0 0.0
      %2648 = vmatpush1.msra.mxu0 %v2631
      %2649 = vmatprep.subr.mxu0 0.0
      %2650 = vmatpush1.msra.mxu0 %v2632
      %2651 = vmatprep.subr.mxu0 0.0
      %2652 = vmatpush1.msra.mxu0 %v2633
      %2653 = vmatprep.subr.mxu0 0.0
      %2654 = vmatpush1.msra.mxu0 0.0
      %2655 = vmatprep.subr.mxu0 0.0
      %2656 = vmatpush1.msra.mxu0 0.0
      %2657 = vmatprep.subr.mxu0 0.0
      %2658 = vmatpush1.msra.mxu0 0.0
      %2659 = vmatprep.subr.mxu0 0.0
      %2660 = vmatpush1.msra.mxu0 0.0
      %2661 = vmatprep.subr.mxu0 0.0
      %2662 = vmatpush1.msra.mxu0 0.0
      %2663 = vmatprep.subr.mxu0 0.0
      %2664 = vmatpush1.msra.mxu0 0.0
      %2665 = vmatprep.subr.mxu0 0.0
      %2666 = vmatpush1.msra.mxu0 0.0
      %2667 = vmatprep.subr.mxu0 0.0
      %2668 = vmatpush1.msra.mxu0 0.0
      %2669 = vmatprep.subr.mxu0 0.0
      %2670 = vmatpush1.msra.mxu0 0.0
      %2671 = vmatprep.subr.mxu0 0.0
      %2672 = vmatpush1.msra.mxu0 0.0
      %2673 = vmatprep.subr.mxu0 0.0
      %2674 = vmatpush1.msra.mxu0 0.0
      %2675 = vmatprep.subr.mxu0 0.0
      %2676 = vmatpush1.msra.mxu0 0.0
      %2677 = vmatprep.subr.mxu0 0.0
      %2678 = vmatpush1.msra.mxu0 0.0
      %2679 = vmatprep.subr.mxu0 0.0
      %2680 = vmatpush1.msra.mxu0 0.0
      %2681 = vmatprep.subr.mxu0 0.0
      %2682 = vmatpush1.msra.mxu0 0.0
      %2683 = vmatprep.subr.mxu0 0.0
      %2684 = vmatpush1.msra.mxu0 0.0
      %2685 = vmatprep.subr.mxu0 0.0
      %2686 = vmatpush1.msra.mxu0 0.0
      %2687 = vmatprep.subr.mxu0 0.0
      %2688 = vmatpush1.msra.mxu0 0.0
      %2689 = vmatprep.subr.mxu0 0.0
      %2690 = vmatpush1.msra.mxu0 0.0
      %2691 = vmatprep.subr.mxu0 0.0
      %2692 = vmatpush1.msra.mxu0 0.0
      %2693 = vmatprep.subr.mxu0 0.0
      %2694 = vmatpush1.msra.mxu0 0.0
      %2695 = vmatprep.subr.mxu0 0.0
      %2696 = vmatpush1.msra.mxu0 0.0
      %2697 = vmatprep.subr.mxu0 0.0
      %2698 = vmatpush1.msra.mxu0 0.0
      %2699 = vmatprep.subr.mxu0 0.0
      %2700 = vmatpush1.msra.mxu0 0.0
      %2701 = vmatprep.subr.mxu0 0.0
      %2702 = vmatpush1.msra.mxu0 0.0
      %2703 = vmatprep.subr.mxu0 0.0
      %2704 = vmatpush1.msra.mxu0 0.0
      %2705 = vmatprep.subr.mxu0 0.0
      %2706 = vmatpush1.msra.mxu0 0.0
      %2707 = vmatprep.subr.mxu0 0.0
      %2708 = vmatpush1.msra.mxu0 0.0
      %2709 = vmatprep.mubr.f32.mxu0 0.0
      %2710 = vmatmul.mubr.f32.gmra.mrb[0].mxu0 %v2643
      %v2711 = vpop.f32.mrb[0].mxu0
      %v2712 = vadd.f32 %v2640, %v2711
      %v2713 = vpop.f32.mrb[0].mxu0
      %2714 = vdwg.mxu0
      %s2715 = scalar_lea.vmem %s9, 64
      %v2716 = vld [vmem:[%s2715] sm:$0xff]
      %v2717 = vld [vmem:[%s2715 + $0x8] sm:$0xff]
      %v2718 = vld [vmem:[%s2715 + $0x10] sm:$0xff]
      %v2719 = vld [vmem:[%s2715 + $0x18] sm:$0xff]
      %v2720 = vld [vmem:[%s2715 + $0x20] sm:$0xff]
      %v2721 = vld [vmem:[%s2715 + $0x28] sm:$0xff]
      %v2722 = vld [vmem:[%s2715 + $0x30] sm:$0xff]
      %v2723 = vld [vmem:[%s2715 + $0x38] sm:$0xff]
      %s2724 = scalar_lea.vmem %s10, 1
      %v2725 = vld [vmem:[%s2724] sm:$0x1]
      %s2726 = scalar_lea.vmem %s11, 32
      %v2727 = vld [vmem:[%s2726] sm:$0xff]
      %v2728 = vld [vmem:[%s2726 + $0x8] sm:$0xff]
      %v2729 = vld [vmem:[%s2726 + $0x10] sm:$0xff]
      %v2730 = vld [vmem:[%s2726 + $0x18] sm:$0xff]
      %v2731 = vmul.f32 %v2712, 0.14433756
      %v2733 = vsel %vm945, %v2731, 0
      %2735 = vmatprep.subr.mxu0 0.0
      %2736 = vmatpush1.msra.mxu0 %v2716
      %2737 = vmatprep.subr.mxu0 0.0
      %2738 = vmatpush1.msra.mxu0 %v2717
      %2739 = vmatprep.subr.mxu0 0.0
      %2740 = vmatpush1.msra.mxu0 0.0
      %2741 = vmatprep.subr.mxu0 0.0
      %2742 = vmatpush1.msra.mxu0 0.0
      %2743 = vmatprep.subr.mxu0 0.0
      %2744 = vmatpush1.msra.mxu0 0.0
      %2745 = vmatprep.subr.mxu0 0.0
      %2746 = vmatpush1.msra.mxu0 0.0
      %2747 = vmatprep.subr.mxu0 0.0
      %2748 = vmatpush1.msra.mxu0 0.0
      %2749 = vmatprep.subr.mxu0 0.0
      %2750 = vmatpush1.msra.mxu0 0.0
      %2751 = vmatprep.subr.mxu0 0.0
      %2752 = vmatpush1.msra.mxu0 0.0
      %2753 = vmatprep.subr.mxu0 0.0
      %2754 = vmatpush1.msra.mxu0 0.0
      %2755 = vmatprep.subr.mxu0 0.0
      %2756 = vmatpush1.msra.mxu0 0.0
      %2757 = vmatprep.subr.mxu0 0.0
      %2758 = vmatpush1.msra.mxu0 0.0
      %2759 = vmatprep.subr.mxu0 0.0
      %2760 = vmatpush1.msra.mxu0 0.0
      %2761 = vmatprep.subr.mxu0 0.0
      %2762 = vmatpush1.msra.mxu0 0.0
      %2763 = vmatprep.subr.mxu0 0.0
      %2764 = vmatpush1.msra.mxu0 0.0
      %2765 = vmatprep.subr.mxu0 0.0
      %2766 = vmatpush1.msra.mxu0 0.0
      %2767 = vmatprep.subr.mxu0 0.0
      %2768 = vmatpush1.msra.mxu0 0.0
      %2769 = vmatprep.subr.mxu0 0.0
      %2770 = vmatpush1.msra.mxu0 0.0
      %2771 = vmatprep.subr.mxu0 0.0
      %2772 = vmatpush1.msra.mxu0 0.0
      %2773 = vmatprep.subr.mxu0 0.0
      %2774 = vmatpush1.msra.mxu0 0.0
      %2775 = vmatprep.subr.mxu0 0.0
      %2776 = vmatpush1.msra.mxu0 0.0
      %2777 = vmatprep.subr.mxu0 0.0
      %2778 = vmatpush1.msra.mxu0 0.0
      %2779 = vmatprep.subr.mxu0 0.0
      %2780 = vmatpush1.msra.mxu0 0.0
      %2781 = vmatprep.subr.mxu0 0.0
      %2782 = vmatpush1.msra.mxu0 0.0
      %2783 = vmatprep.subr.mxu0 0.0
      %2784 = vmatpush1.msra.mxu0 0.0
      %2785 = vmatprep.subr.mxu0 0.0
      %2786 = vmatpush1.msra.mxu0 0.0
      %2787 = vmatprep.subr.mxu0 0.0
      %2788 = vmatpush1.msra.mxu0 0.0
      %2789 = vmatprep.subr.mxu0 0.0
      %2790 = vmatpush1.msra.mxu0 0.0
      %2791 = vmatprep.subr.mxu0 0.0
      %2792 = vmatpush1.msra.mxu0 0.0
      %2793 = vmatprep.subr.mxu0 0.0
      %2794 = vmatpush1.msra.mxu0 0.0
      %2795 = vmatprep.subr.mxu0 0.0
      %2796 = vmatpush1.msra.mxu0 0.0
      %2797 = vmatprep.subr.mxu0 0.0
      %2798 = vmatpush1.msra.mxu0 0.0
      %2799 = vmatprep.mubr.f32.mxu0 0.0
      %2800 = vmatmul.mubr.f32.gmra.mrb[0].mxu0 %v2733
      %v2801 = vpop.f32.mrb[0].mxu0
      %v2802 = vadd.f32 0.0, %v2801
      %v2803 = vpop.f32.mrb[0].mxu0
      %2804 = vdwg.mxu0
      %v2806 = vcombine.high %v2802, %v2802
      %v2808 = vunpack.c.l.s4 1966171168
      %v2809 = vunpack.c.0.s8 %v2808
      %v2810 = vlaneseq
      %v2811 = vshrl.u32 %v2810, 7
      %v2812 = vsub.s32 %v2809, %v2811
      %v2813 = vrot.slane %v2802, %v2812
      %v2815 = vunpack.c.l.s4 1966171168
      %v2816 = vunpack.c.0.s8 %v2815
      %v2817 = vlaneseq
      %v2818 = vshrl.u32 %v2817, 7
      %v2819 = vsub.s32 %v2816, %v2818
      %v2820 = vrot.slane %v2806, %v2819
      %v2821 = vcombine.high %v2813, %v2813
      %v2822 = vcombine.high %v2820, %v2820
      %v2824 = vunpack.c.l.s4 1966171168
      %v2825 = vunpack.c.0.s8 %v2824
      %v2826 = vlaneseq
      %v2827 = vshrl.u32 %v2826, 7
      %v2828 = vsub.s32 %v2825, %v2827
      %v2829 = vrot.slane %v2813, %v2828
      %v2831 = vunpack.c.l.s4 1966171168
      %v2832 = vunpack.c.0.s8 %v2831
      %v2833 = vlaneseq
      %v2834 = vshrl.u32 %v2833, 7
      %v2835 = vsub.s32 %v2832, %v2834
      %v2836 = vrot.slane %v2820, %v2835
      %v2838 = vunpack.c.l.s4 1966171168
      %v2839 = vunpack.c.0.s8 %v2838
      %v2840 = vlaneseq
      %v2841 = vshrl.u32 %v2840, 7
      %v2842 = vsub.s32 %v2839, %v2841
      %v2843 = vrot.slane %v2821, %v2842
      %v2845 = vunpack.c.l.s4 1966171168
      %v2846 = vunpack.c.0.s8 %v2845
      %v2847 = vlaneseq
      %v2848 = vshrl.u32 %v2847, 7
      %v2849 = vsub.s32 %v2846, %v2848
      %v2850 = vrot.slane %v2822, %v2849
      %v2851 = vcombine.high %v2829, %v2829
      %v2852 = vcombine.high %v2836, %v2836
      %v2853 = vcombine.high %v2843, %v2843
      %v2854 = vcombine.high %v2850, %v2850
      %v2855 = vlaneseq
      %v2856 = vshrl.u32 %v2855, 7
      %v2857 = vsub.s32 0, %v2856
      %v2858 = vrot.slane %v2829, %v2857
      %v2859 = vlaneseq
      %v2860 = vshrl.u32 %v2859, 7
      %v2861 = vsub.s32 0, %v2860
      %v2862 = vrot.slane %v2843, %v2861
      %v2863 = vlaneseq
      %v2864 = vshrl.u32 %v2863, 7
      %v2865 = vsub.s32 0, %v2864
      %v2866 = vrot.slane %v2851, %v2865
      %v2867 = vlaneseq
      %v2868 = vshrl.u32 %v2867, 7
      %v2869 = vsub.s32 0, %v2868
      %v2870 = vrot.slane %v2853, %v2869
      %v2871 = vlaneseq
      %v2872 = vshrl.u32 %v2871, 7
      %v2873 = vsub.s32 0, %v2872
      %v2874 = vrot.slane %v2836, %v2873
      %v2875 = vlaneseq
      %v2876 = vshrl.u32 %v2875, 7
      %v2877 = vsub.s32 0, %v2876
      %v2878 = vrot.slane %v2850, %v2877
      %v2879 = vlaneseq
      %v2880 = vshrl.u32 %v2879, 7
      %v2881 = vsub.s32 0, %v2880
      %v2882 = vrot.slane %v2852, %v2881
      %v2883 = vlaneseq
      %v2884 = vshrl.u32 %v2883, 7
      %v2885 = vsub.s32 0, %v2884
      %v2886 = vrot.slane %v2854, %v2885
      %v2895 = vmul.f32 %v2858, %v789
      %v2896 = vmul.f32 %v2862, %v790
      %v2897 = vmul.f32 %v2866, %v791
      %v2898 = vmul.f32 %v2870, %v792
      %v2899 = vmul.f32 %v2874, %v793
      %v2900 = vmul.f32 %v2878, %v794
      %v2901 = vmul.f32 %v2882, %v795
      %v2902 = vmul.f32 %v2886, %v796
      %v2903 = vsel %vm817, %v2895, 0.0
      %2904 = vadd.xlane.f32.xlu0 %v2903
      %v2905 = vpop.xlane.xlu0 %2904
      %v2906 = vsel %vm817, %v2896, 0.0
      %2907 = vadd.xlane.f32.xlu0 %v2906
      %v2908 = vpop.xlane.xlu0 %2907
      %v2909 = vsel %vm817, %v2897, 0.0
      %2910 = vadd.xlane.f32.xlu0 %v2909
      %v2911 = vpop.xlane.xlu0 %2910
      %v2912 = vsel %vm817, %v2898, 0.0
      %2913 = vadd.xlane.f32.xlu0 %v2912
      %v2914 = vpop.xlane.xlu0 %2913
      %v2915 = vsel %vm817, %v2899, 0.0
      %2916 = vadd.xlane.f32.xlu0 %v2915
      %v2917 = vpop.xlane.xlu0 %2916
      %v2918 = vsel %vm817, %v2900, 0.0
      %2919 = vadd.xlane.f32.xlu0 %v2918
      %v2920 = vpop.xlane.xlu0 %2919
      %v2921 = vsel %vm817, %v2901, 0.0
      %2922 = vadd.xlane.f32.xlu0 %v2921
      %v2923 = vpop.xlane.xlu0 %2922
      %v2924 = vsel %vm817, %v2902, 0.0
      %2925 = vadd.xlane.f32.xlu0 %v2924
      %v2926 = vpop.xlane.xlu0 %2925
      %2928 = vrot.lane.b32.xlu0 %v2712, 96
      %v2929 = vpop.permute.xlu0 %2928
      %v2938 = vlaneseq
      %v2939 = vshrl.u32 %v2938, 7
      %v2940 = vsub.s32 %v1153, %v2939
      %v2941 = vrot.slane %v2905, %v2940
      %v2942 = vlaneseq
      %v2943 = vshrl.u32 %v2942, 7
      %v2944 = vsub.s32 %v1153, %v2943
      %v2945 = vrot.slane %v2908, %v2944
      %v2946 = vlaneseq
      %v2947 = vshrl.u32 %v2946, 7
      %v2948 = vsub.s32 %v1153, %v2947
      %v2949 = vrot.slane %v2911, %v2948
      %v2950 = vlaneseq
      %v2951 = vshrl.u32 %v2950, 7
      %v2952 = vsub.s32 %v1153, %v2951
      %v2953 = vrot.slane %v2914, %v2952
      %v2954 = vlaneseq
      %v2955 = vshrl.u32 %v2954, 7
      %v2956 = vsub.s32 %v1153, %v2955
      %v2957 = vrot.slane %v2917, %v2956
      %v2958 = vlaneseq
      %v2959 = vshrl.u32 %v2958, 7
      %v2960 = vsub.s32 %v1153, %v2959
      %v2961 = vrot.slane %v2920, %v2960
      %v2962 = vlaneseq
      %v2963 = vshrl.u32 %v2962, 7
      %v2964 = vsub.s32 %v1153, %v2963
      %v2965 = vrot.slane %v2923, %v2964
      %v2966 = vlaneseq
      %v2967 = vshrl.u32 %v2966, 7
      %v2968 = vsub.s32 %v1153, %v2967
      %v2969 = vrot.slane %v2926, %v2968
      %v2970 = vsel %vm1186, %v2945, %v2941
      %v2971 = vsel %vm1188, %v2949, %v2970
      %v2972 = vsel %vm1190, %v2953, %v2971
      %v2973 = vsel %vm1192, %v2957, %v2972
      %v2974 = vsel %vm1194, %v2961, %v2973
      %v2975 = vsel %vm1196, %v2965, %v2974
      %v2976 = vsel %vm1198, %v2969, %v2975
      %v2978 = vsel %vm945, %v2929, 0
      %2980 = vmatprep.subr.mxu0 0.0
      %2981 = vmatpush1.xpose.msra.mxu0 %v2978
      %2982 = vmatprep.subr.mxu0 0.0
      %2983 = vmatpush1.xpose.msra.mxu0 0.0
      %2984 = vmatprep.subr.mxu0 0.0
      %2985 = vmatpush1.xpose.msra.mxu0 0.0
      %2986 = vmatprep.subr.mxu0 0.0
      %2987 = vmatpush1.xpose.msra.mxu0 0.0
      %2988 = vmatprep.subr.mxu0 0.0
      %2989 = vmatpush1.xpose.msra.mxu0 0.0
      %2990 = vmatprep.subr.mxu0 0.0
      %2991 = vmatpush1.xpose.msra.mxu0 0.0
      %2992 = vmatprep.subr.mxu0 0.0
      %2993 = vmatpush1.xpose.msra.mxu0 0.0
      %2994 = vmatprep.subr.mxu0 0.0
      %2995 = vmatpush1.xpose.msra.mxu0 0.0
      %2996 = vmatprep.subr.mxu0 0.0
      %2997 = vmatpush1.xpose.msra.mxu0 0.0
      %2998 = vmatprep.subr.mxu0 0.0
      %2999 = vmatpush1.xpose.msra.mxu0 0.0
      %3000 = vmatprep.subr.mxu0 0.0
      %3001 = vmatpush1.xpose.msra.mxu0 0.0
      %3002 = vmatprep.subr.mxu0 0.0
      %3003 = vmatpush1.xpose.msra.mxu0 0.0
      %3004 = vmatprep.subr.mxu0 0.0
      %3005 = vmatpush1.xpose.msra.mxu0 0.0
      %3006 = vmatprep.subr.mxu0 0.0
      %3007 = vmatpush1.xpose.msra.mxu0 0.0
      %3008 = vmatprep.subr.mxu0 0.0
      %3009 = vmatpush1.xpose.msra.mxu0 0.0
      %3010 = vmatprep.subr.mxu0 0.0
      %3011 = vmatpush1.xpose.msra.mxu0 0.0
      %3012 = vmatprep.subr.mxu0 0.0
      %3013 = vmatpush1.xpose.msra.mxu0 0.0
      %3014 = vmatprep.subr.mxu0 0.0
      %3015 = vmatpush1.xpose.msra.mxu0 0.0
      %3016 = vmatprep.subr.mxu0 0.0
      %3017 = vmatpush1.xpose.msra.mxu0 0.0
      %3018 = vmatprep.subr.mxu0 0.0
      %3019 = vmatpush1.xpose.msra.mxu0 0.0
      %3020 = vmatprep.subr.mxu0 0.0
      %3021 = vmatpush1.xpose.msra.mxu0 0.0
      %3022 = vmatprep.subr.mxu0 0.0
      %3023 = vmatpush1.xpose.msra.mxu0 0.0
      %3024 = vmatprep.subr.mxu0 0.0
      %3025 = vmatpush1.xpose.msra.mxu0 0.0
      %3026 = vmatprep.subr.mxu0 0.0
      %3027 = vmatpush1.xpose.msra.mxu0 0.0
      %3028 = vmatprep.subr.mxu0 0.0
      %3029 = vmatpush1.xpose.msra.mxu0 0.0
      %3030 = vmatprep.subr.mxu0 0.0
      %3031 = vmatpush1.xpose.msra.mxu0 0.0
      %3032 = vmatprep.subr.mxu0 0.0
      %3033 = vmatpush1.xpose.msra.mxu0 0.0
      %3034 = vmatprep.subr.mxu0 0.0
      %3035 = vmatpush1.xpose.msra.mxu0 0.0
      %3036 = vmatprep.subr.mxu0 0.0
      %3037 = vmatpush1.xpose.msra.mxu0 0.0
      %3038 = vmatprep.subr.mxu0 0.0
      %3039 = vmatpush1.xpose.msra.mxu0 0.0
      %3040 = vmatprep.subr.mxu0 0.0
      %3041 = vmatpush1.xpose.msra.mxu0 0.0
      %3042 = vmatprep.subr.mxu0 0.0
      %3043 = vmatpush1.xpose.msra.mxu0 0.0
      %3044 = vmatprep.mubr.f32.mxu0 0.0
      %3045 = vmatmul.mubr.f32.gmra.mrb[0].mxu0 %v2733
      %v3046 = vpop.f32.mrb[0].mxu0
      %v3047 = vadd.f32 %v2976, %v3046
      %v3048 = vpop.f32.mrb[0].mxu0
      %3049 = vdwg.mxu0
      %3050 = vmatprep.subr.mxu0 0.0
      %3051 = vmatpush1.msra.mxu0 %v2720
      %3052 = vmatprep.subr.mxu0 0.0
      %3053 = vmatpush1.msra.mxu0 %v2721
      %3054 = vmatprep.subr.mxu0 0.0
      %3055 = vmatpush1.msra.mxu0 0.0
      %3056 = vmatprep.subr.mxu0 0.0
      %3057 = vmatpush1.msra.mxu0 0.0
      %3058 = vmatprep.subr.mxu0 0.0
      %3059 = vmatpush1.msra.mxu0 0.0
      %3060 = vmatprep.subr.mxu0 0.0
      %3061 = vmatpush1.msra.mxu0 0.0
      %3062 = vmatprep.subr.mxu0 0.0
      %3063 = vmatpush1.msra.mxu0 0.0
      %3064 = vmatprep.subr.mxu0 0.0
      %3065 = vmatpush1.msra.mxu0 0.0
      %3066 = vmatprep.subr.mxu0 0.0
      %3067 = vmatpush1.msra.mxu0 0.0
      %3068 = vmatprep.subr.mxu0 0.0
      %3069 = vmatpush1.msra.mxu0 0.0
      %3070 = vmatprep.subr.mxu0 0.0
      %3071 = vmatpush1.msra.mxu0 0.0
      %3072 = vmatprep.subr.mxu0 0.0
      %3073 = vmatpush1.msra.mxu0 0.0
      %3074 = vmatprep.subr.mxu0 0.0
      %3075 = vmatpush1.msra.mxu0 0.0
      %3076 = vmatprep.subr.mxu0 0.0
      %3077 = vmatpush1.msra.mxu0 0.0
      %3078 = vmatprep.subr.mxu0 0.0
      %3079 = vmatpush1.msra.mxu0 0.0
      %3080 = vmatprep.subr.mxu0 0.0
      %3081 = vmatpush1.msra.mxu0 0.0
      %3082 = vmatprep.subr.mxu0 0.0
      %3083 = vmatpush1.msra.mxu0 0.0
      %3084 = vmatprep.subr.mxu0 0.0
      %3085 = vmatpush1.msra.mxu0 0.0
      %3086 = vmatprep.subr.mxu0 0.0
      %3087 = vmatpush1.msra.mxu0 0.0
      %3088 = vmatprep.subr.mxu0 0.0
      %3089 = vmatpush1.msra.mxu0 0.0
      %3090 = vmatprep.subr.mxu0 0.0
      %3091 = vmatpush1.msra.mxu0 0.0
      %3092 = vmatprep.subr.mxu0 0.0
      %3093 = vmatpush1.msra.mxu0 0.0
      %3094 = vmatprep.subr.mxu0 0.0
      %3095 = vmatpush1.msra.mxu0 0.0
      %3096 = vmatprep.subr.mxu0 0.0
      %3097 = vmatpush1.msra.mxu0 0.0
      %3098 = vmatprep.subr.mxu0 0.0
      %3099 = vmatpush1.msra.mxu0 0.0
      %3100 = vmatprep.subr.mxu0 0.0
      %3101 = vmatpush1.msra.mxu0 0.0
      %3102 = vmatprep.subr.mxu0 0.0
      %3103 = vmatpush1.msra.mxu0 0.0
      %3104 = vmatprep.subr.mxu0 0.0
      %3105 = vmatpush1.msra.mxu0 0.0
      %3106 = vmatprep.subr.mxu0 0.0
      %3107 = vmatpush1.msra.mxu0 0.0
      %3108 = vmatprep.subr.mxu0 0.0
      %3109 = vmatpush1.msra.mxu0 0.0
      %3110 = vmatprep.subr.mxu0 0.0
      %3111 = vmatpush1.msra.mxu0 0.0
      %3112 = vmatprep.subr.mxu0 0.0
      %3113 = vmatpush1.msra.mxu0 0.0
      %3114 = vmatprep.mubr.f32.mxu0 0.0
      %3115 = vmatmul.mubr.f32.gmra.mrb[0].mxu0 %v2978
      %v3116 = vpop.f32.mrb[0].mxu0
      %v3117 = vadd.f32 0.0, %v3116
      %v3118 = vpop.f32.mrb[0].mxu0
      %3119 = vdwg.mxu0
      %v3120 = vmul.f32 %v3117, 0.14433756
      %v3121 = vmul.f32 %v3120, %v789
      %v3122 = vmul.f32 %v3120, %v790
      %v3123 = vmul.f32 %v3120, %v791
      %v3124 = vmul.f32 %v3120, %v792
      %v3125 = vmul.f32 %v3120, %v793
      %v3126 = vmul.f32 %v3120, %v794
      %v3127 = vmul.f32 %v3120, %v795
      %v3128 = vmul.f32 %v3120, %v796
      %v3129 = vsel %vm817, %v3121, 0.0
      %3130 = vadd.xlane.f32.xlu0 %v3129
      %v3131 = vpop.xlane.xlu0 %3130
      %v3132 = vsel %vm817, %v3122, 0.0
      %3133 = vadd.xlane.f32.xlu0 %v3132
      %v3134 = vpop.xlane.xlu0 %3133
      %v3135 = vsel %vm817, %v3123, 0.0
      %3136 = vadd.xlane.f32.xlu0 %v3135
      %v3137 = vpop.xlane.xlu0 %3136
      %v3138 = vsel %vm817, %v3124, 0.0
      %3139 = vadd.xlane.f32.xlu0 %v3138
      %v3140 = vpop.xlane.xlu0 %3139
      %v3141 = vsel %vm817, %v3125, 0.0
      %3142 = vadd.xlane.f32.xlu0 %v3141
      %v3143 = vpop.xlane.xlu0 %3142
      %v3144 = vsel %vm817, %v3126, 0.0
      %3145 = vadd.xlane.f32.xlu0 %v3144
      %v3146 = vpop.xlane.xlu0 %3145
      %v3147 = vsel %vm817, %v3127, 0.0
      %3148 = vadd.xlane.f32.xlu0 %v3147
      %v3149 = vpop.xlane.xlu0 %3148
      %v3150 = vsel %vm817, %v3128, 0.0
      %3151 = vadd.xlane.f32.xlu0 %v3150
      %v3152 = vpop.xlane.xlu0 %3151
      %v3161 = vlaneseq
      %v3162 = vshrl.u32 %v3161, 7
      %v3163 = vsub.s32 %v1153, %v3162
      %v3164 = vrot.slane %v3131, %v3163
      %v3165 = vlaneseq
      %v3166 = vshrl.u32 %v3165, 7
      %v3167 = vsub.s32 %v1153, %v3166
      %v3168 = vrot.slane %v3134, %v3167
      %v3169 = vlaneseq
      %v3170 = vshrl.u32 %v3169, 7
      %v3171 = vsub.s32 %v1153, %v3170
      %v3172 = vrot.slane %v3137, %v3171
      %v3173 = vlaneseq
      %v3174 = vshrl.u32 %v3173, 7
      %v3175 = vsub.s32 %v1153, %v3174
      %v3176 = vrot.slane %v3140, %v3175
      %v3177 = vlaneseq
      %v3178 = vshrl.u32 %v3177, 7
      %v3179 = vsub.s32 %v1153, %v3178
      %v3180 = vrot.slane %v3143, %v3179
      %v3181 = vlaneseq
      %v3182 = vshrl.u32 %v3181, 7
      %v3183 = vsub.s32 %v1153, %v3182
      %v3184 = vrot.slane %v3146, %v3183
      %v3185 = vlaneseq
      %v3186 = vshrl.u32 %v3185, 7
      %v3187 = vsub.s32 %v1153, %v3186
      %v3188 = vrot.slane %v3149, %v3187
      %v3189 = vlaneseq
      %v3190 = vshrl.u32 %v3189, 7
      %v3191 = vsub.s32 %v1153, %v3190
      %v3192 = vrot.slane %v3152, %v3191
      %v3193 = vsel %vm1186, %v3168, %v3164
      %v3194 = vsel %vm1188, %v3172, %v3193
      %v3195 = vsel %vm1190, %v3176, %v3194
      %v3196 = vsel %vm1192, %v3180, %v3195
      %v3197 = vsel %vm1194, %v3184, %v3196
      %v3198 = vsel %vm1196, %v3188, %v3197
      %v3199 = vsel %vm1198, %v3192, %v3198
      %v3201 = vadd.f32 %v3047, %v3199
      %v3203 = vsel %vm945, %v2725, 0
      %3205 = vmatprep.subr.mxu0 0.0
      %3206 = vmatpush1.xpose.msra.mxu0 %v2978
      %3207 = vmatprep.subr.mxu0 0.0
      %3208 = vmatpush1.xpose.msra.mxu0 0.0
      %3209 = vmatprep.subr.mxu0 0.0
      %3210 = vmatpush1.xpose.msra.mxu0 0.0
      %3211 = vmatprep.subr.mxu0 0.0
      %3212 = vmatpush1.xpose.msra.mxu0 0.0
      %3213 = vmatprep.subr.mxu0 0.0
      %3214 = vmatpush1.xpose.msra.mxu0 0.0
      %3215 = vmatprep.subr.mxu0 0.0
      %3216 = vmatpush1.xpose.msra.mxu0 0.0
      %3217 = vmatprep.subr.mxu0 0.0
      %3218 = vmatpush1.xpose.msra.mxu0 0.0
      %3219 = vmatprep.subr.mxu0 0.0
      %3220 = vmatpush1.xpose.msra.mxu0 0.0
      %3221 = vmatprep.subr.mxu0 0.0
      %3222 = vmatpush1.xpose.msra.mxu0 0.0
      %3223 = vmatprep.subr.mxu0 0.0
      %3224 = vmatpush1.xpose.msra.mxu0 0.0
      %3225 = vmatprep.subr.mxu0 0.0
      %3226 = vmatpush1.xpose.msra.mxu0 0.0
      %3227 = vmatprep.subr.mxu0 0.0
      %3228 = vmatpush1.xpose.msra.mxu0 0.0
      %3229 = vmatprep.subr.mxu0 0.0
      %3230 = vmatpush1.xpose.msra.mxu0 0.0
      %3231 = vmatprep.subr.mxu0 0.0
      %3232 = vmatpush1.xpose.msra.mxu0 0.0
      %3233 = vmatprep.subr.mxu0 0.0
      %3234 = vmatpush1.xpose.msra.mxu0 0.0
      %3235 = vmatprep.subr.mxu0 0.0
      %3236 = vmatpush1.xpose.msra.mxu0 0.0
      %3237 = vmatprep.subr.mxu0 0.0
      %3238 = vmatpush1.xpose.msra.mxu0 0.0
      %3239 = vmatprep.subr.mxu0 0.0
      %3240 = vmatpush1.xpose.msra.mxu0 0.0
      %3241 = vmatprep.subr.mxu0 0.0
      %3242 = vmatpush1.xpose.msra.mxu0 0.0
      %3243 = vmatprep.subr.mxu0 0.0
      %3244 = vmatpush1.xpose.msra.mxu0 0.0
      %3245 = vmatprep.subr.mxu0 0.0
      %3246 = vmatpush1.xpose.msra.mxu0 0.0
      %3247 = vmatprep.subr.mxu0 0.0
      %3248 = vmatpush1.xpose.msra.mxu0 0.0
      %3249 = vmatprep.subr.mxu0 0.0
      %3250 = vmatpush1.xpose.msra.mxu0 0.0
      %3251 = vmatprep.subr.mxu0 0.0
      %3252 = vmatpush1.xpose.msra.mxu0 0.0
      %3253 = vmatprep.subr.mxu0 0.0
      %3254 = vmatpush1.xpose.msra.mxu0 0.0
      %3255 = vmatprep.subr.mxu0 0.0
      %3256 = vmatpush1.xpose.msra.mxu0 0.0
      %3257 = vmatprep.subr.mxu0 0.0
      %3258 = vmatpush1.xpose.msra.mxu0 0.0
      %3259 = vmatprep.subr.mxu0 0.0
      %3260 = vmatpush1.xpose.msra.mxu0 0.0
      %3261 = vmatprep.subr.mxu0 0.0
      %3262 = vmatpush1.xpose.msra.mxu0 0.0
      %3263 = vmatprep.subr.mxu0 0.0
      %3264 = vmatpush1.xpose.msra.mxu0 0.0
      %3265 = vmatprep.subr.mxu0 0.0
      %3266 = vmatpush1.xpose.msra.mxu0 0.0
      %3267 = vmatprep.subr.mxu0 0.0
      %3268 = vmatpush1.xpose.msra.mxu0 0.0
      %3269 = vmatprep.mubr.f32.mxu0 0.0
      %3270 = vmatmul.mubr.f32.gmra.mrb[0].mxu0 %v3203
      %v3271 = vpop.f32.mrb[0].mxu0
      %v3272 = vadd.f32 0.0, %v3271
      %v3273 = vpop.f32.mrb[0].mxu0
      %3274 = vdwg.mxu0
      %v3275 = vmul.f32 %v3272, 0.14433756
      %v3276 = vlaneseq
      %v3277 = vshrl.u32 %v3276, 7
      %v3278 = vsub.s32 0, %v3277
      %v3279 = vrot.slane %v3275, %v3278
      %v3280 = vadd.f32 %v3201, %v3279
      %v3281 = vsel %vm811, %v3280, -1e+09
      %v3282 = vsel %vm1505, %v3281, -inf
      %3283 = vmax.xlane.f32.xlu0 %v3282
      %v3284 = vpop.xlane.xlu0 %3283
      %v3285 = vsub.f32 %v3281, %v3284
      %v3286 = vmul.f32 %v3285, 1.442695
      %v3287 = vpow.pop %v3286
      %v3288 = vsel %vm1505, %v3287, 0.0
      %3289 = vadd.xlane.f32.xlu0 %v3288
      %v3290 = vpop.xlane.xlu0 %3289
      %v3291 = vrcp.pop %v3290
      %v3292 = vmul.f32 %v3287, %v3291
      %v3293 = vsel %vm811, %v3292, 0.0
      %3294 = vrot.lane.b32.xlu0 %v2712, 64
      %v3295 = vpop.permute.xlu0 %3294
      %v3298 = vsel %vm1505, %v3293, 0
      %3300 = vmatprep.subr.mxu0 0.0
      %3301 = vmatpush1.msra.mxu0 %v3295
      %3302 = vmatprep.subr.mxu0 0.0
      %3303 = vmatpush1.msra.mxu0 0.0
      %3304 = vmatprep.subr.mxu0 0.0
      %3305 = vmatpush1.msra.mxu0 0.0
      %3306 = vmatprep.subr.mxu0 0.0
      %3307 = vmatpush1.msra.mxu0 0.0
      %3308 = vmatprep.subr.mxu0 0.0
      %3309 = vmatpush1.msra.mxu0 0.0
      %3310 = vmatprep.subr.mxu0 0.0
      %3311 = vmatpush1.msra.mxu0 0.0
      %3312 = vmatprep.subr.mxu0 0.0
      %3313 = vmatpush1.msra.mxu0 0.0
      %3314 = vmatprep.subr.mxu0 0.0
      %3315 = vmatpush1.msra.mxu0 0.0
      %3316 = vmatprep.subr.mxu0 0.0
      %3317 = vmatpush1.msra.mxu0 0.0
      %3318 = vmatprep.subr.mxu0 0.0
      %3319 = vmatpush1.msra.mxu0 0.0
      %3320 = vmatprep.subr.mxu0 0.0
      %3321 = vmatpush1.msra.mxu0 0.0
      %3322 = vmatprep.subr.mxu0 0.0
      %3323 = vmatpush1.msra.mxu0 0.0
      %3324 = vmatprep.subr.mxu0 0.0
      %3325 = vmatpush1.msra.mxu0 0.0
      %3326 = vmatprep.subr.mxu0 0.0
      %3327 = vmatpush1.msra.mxu0 0.0
      %3328 = vmatprep.subr.mxu0 0.0
      %3329 = vmatpush1.msra.mxu0 0.0
      %3330 = vmatprep.subr.mxu0 0.0
      %3331 = vmatpush1.msra.mxu0 0.0
      %3332 = vmatprep.subr.mxu0 0.0
      %3333 = vmatpush1.msra.mxu0 0.0
      %3334 = vmatprep.subr.mxu0 0.0
      %3335 = vmatpush1.msra.mxu0 0.0
      %3336 = vmatprep.subr.mxu0 0.0
      %3337 = vmatpush1.msra.mxu0 0.0
      %3338 = vmatprep.subr.mxu0 0.0
      %3339 = vmatpush1.msra.mxu0 0.0
      %3340 = vmatprep.subr.mxu0 0.0
      %3341 = vmatpush1.msra.mxu0 0.0
      %3342 = vmatprep.subr.mxu0 0.0
      %3343 = vmatpush1.msra.mxu0 0.0
      %3344 = vmatprep.subr.mxu0 0.0
      %3345 = vmatpush1.msra.mxu0 0.0
      %3346 = vmatprep.subr.mxu0 0.0
      %3347 = vmatpush1.msra.mxu0 0.0
      %3348 = vmatprep.subr.mxu0 0.0
      %3349 = vmatpush1.msra.mxu0 0.0
      %3350 = vmatprep.subr.mxu0 0.0
      %3351 = vmatpush1.msra.mxu0 0.0
      %3352 = vmatprep.subr.mxu0 0.0
      %3353 = vmatpush1.msra.mxu0 0.0
      %3354 = vmatprep.subr.mxu0 0.0
      %3355 = vmatpush1.msra.mxu0 0.0
      %3356 = vmatprep.subr.mxu0 0.0
      %3357 = vmatpush1.msra.mxu0 0.0
      %3358 = vmatprep.subr.mxu0 0.0
      %3359 = vmatpush1.msra.mxu0 0.0
      %3360 = vmatprep.subr.mxu0 0.0
      %3361 = vmatpush1.msra.mxu0 0.0
      %3362 = vmatprep.subr.mxu0 0.0
      %3363 = vmatpush1.msra.mxu0 0.0
      %3364 = vmatprep.mubr.f32.mxu0 0.0
      %3365 = vmatmul.mubr.f32.gmra.mrb[0].mxu0 %v3298
      %v3366 = vpop.f32.mrb[0].mxu0
      %v3367 = vadd.f32 0.0, %v3366
      %v3368 = vpop.f32.mrb[0].mxu0
      %3369 = vdwg.mxu0
      %3370 = vrot.lane.b32.xlu0 %v2731, 112
      %v3371 = vpop.permute.xlu0 %3370
      %v3372 = vsel %vm945, %v3371, 0
      %3374 = vmatprep.subr.mxu0 0.0
      %3375 = vmatpush1.msra.mxu0 %v2718
      %3376 = vmatprep.subr.mxu0 0.0
      %3377 = vmatpush1.msra.mxu0 %v2719
      %3378 = vmatprep.subr.mxu0 0.0
      %3379 = vmatpush1.msra.mxu0 0.0
      %3380 = vmatprep.subr.mxu0 0.0
      %3381 = vmatpush1.msra.mxu0 0.0
      %3382 = vmatprep.subr.mxu0 0.0
      %3383 = vmatpush1.msra.mxu0 0.0
      %3384 = vmatprep.subr.mxu0 0.0
      %3385 = vmatpush1.msra.mxu0 0.0
      %3386 = vmatprep.subr.mxu0 0.0
      %3387 = vmatpush1.msra.mxu0 0.0
      %3388 = vmatprep.subr.mxu0 0.0
      %3389 = vmatpush1.msra.mxu0 0.0
      %3390 = vmatprep.subr.mxu0 0.0
      %3391 = vmatpush1.msra.mxu0 0.0
      %3392 = vmatprep.subr.mxu0 0.0
      %3393 = vmatpush1.msra.mxu0 0.0
      %3394 = vmatprep.subr.mxu0 0.0
      %3395 = vmatpush1.msra.mxu0 0.0
      %3396 = vmatprep.subr.mxu0 0.0
      %3397 = vmatpush1.msra.mxu0 0.0
      %3398 = vmatprep.subr.mxu0 0.0
      %3399 = vmatpush1.msra.mxu0 0.0
      %3400 = vmatprep.subr.mxu0 0.0
      %3401 = vmatpush1.msra.mxu0 0.0
      %3402 = vmatprep.subr.mxu0 0.0
      %3403 = vmatpush1.msra.mxu0 0.0
      %3404 = vmatprep.subr.mxu0 0.0
      %3405 = vmatpush1.msra.mxu0 0.0
      %3406 = vmatprep.subr.mxu0 0.0
      %3407 = vmatpush1.msra.mxu0 0.0
      %3408 = vmatprep.subr.mxu0 0.0
      %3409 = vmatpush1.msra.mxu0 0.0
      %3410 = vmatprep.subr.mxu0 0.0
      %3411 = vmatpush1.msra.mxu0 0.0
      %3412 = vmatprep.subr.mxu0 0.0
      %3413 = vmatpush1.msra.mxu0 0.0
      %3414 = vmatprep.subr.mxu0 0.0
      %3415 = vmatpush1.msra.mxu0 0.0
      %3416 = vmatprep.subr.mxu0 0.0
      %3417 = vmatpush1.msra.mxu0 0.0
      %3418 = vmatprep.subr.mxu0 0.0
      %3419 = vmatpush1.msra.mxu0 0.0
      %3420 = vmatprep.subr.mxu0 0.0
      %3421 = vmatpush1.msra.mxu0 0.0
      %3422 = vmatprep.subr.mxu0 0.0
      %3423 = vmatpush1.msra.mxu0 0.0
      %3424 = vmatprep.subr.mxu0 0.0
      %3425 = vmatpush1.msra.mxu0 0.0
      %3426 = vmatprep.subr.mxu0 0.0
      %3427 = vmatpush1.msra.mxu0 0.0
      %3428 = vmatprep.subr.mxu0 0.0
      %3429 = vmatpush1.msra.mxu0 0.0
      %3430 = vmatprep.subr.mxu0 0.0
      %3431 = vmatpush1.msra.mxu0 0.0
      %3432 = vmatprep.subr.mxu0 0.0
      %3433 = vmatpush1.msra.mxu0 0.0
      %3434 = vmatprep.subr.mxu0 0.0
      %3435 = vmatpush1.msra.mxu0 0.0
      %3436 = vmatprep.subr.mxu0 0.0
      %3437 = vmatpush1.msra.mxu0 0.0
      %3438 = vmatprep.mubr.f32.mxu0 0.0
      %3439 = vmatmul.mubr.f32.gmra.mrb[0].mxu0 %v3372
      %v3440 = vpop.f32.mrb[0].mxu0
      %v3441 = vadd.f32 0.0, %v3440
      %v3442 = vpop.f32.mrb[0].mxu0
      %3443 = vdwg.mxu0
      %v3445 = vcombine.high %v3441, %v3441
      %v3447 = vunpack.c.l.s4 1966171168
      %v3448 = vunpack.c.0.s8 %v3447
      %v3449 = vlaneseq
      %v3450 = vshrl.u32 %v3449, 7
      %v3451 = vsub.s32 %v3448, %v3450
      %v3452 = vrot.slane %v3441, %v3451
      %v3454 = vunpack.c.l.s4 1966171168
      %v3455 = vunpack.c.0.s8 %v3454
      %v3456 = vlaneseq
      %v3457 = vshrl.u32 %v3456, 7
      %v3458 = vsub.s32 %v3455, %v3457
      %v3459 = vrot.slane %v3445, %v3458
      %v3460 = vcombine.high %v3452, %v3452
      %v3461 = vcombine.high %v3459, %v3459
      %v3463 = vunpack.c.l.s4 1966171168
      %v3464 = vunpack.c.0.s8 %v3463
      %v3465 = vlaneseq
      %v3466 = vshrl.u32 %v3465, 7
      %v3467 = vsub.s32 %v3464, %v3466
      %v3468 = vrot.slane %v3452, %v3467
      %v3470 = vunpack.c.l.s4 1966171168
      %v3471 = vunpack.c.0.s8 %v3470
      %v3472 = vlaneseq
      %v3473 = vshrl.u32 %v3472, 7
      %v3474 = vsub.s32 %v3471, %v3473
      %v3475 = vrot.slane %v3459, %v3474
      %v3477 = vunpack.c.l.s4 1966171168
      %v3478 = vunpack.c.0.s8 %v3477
      %v3479 = vlaneseq
      %v3480 = vshrl.u32 %v3479, 7
      %v3481 = vsub.s32 %v3478, %v3480
      %v3482 = vrot.slane %v3460, %v3481
      %v3484 = vunpack.c.l.s4 1966171168
      %v3485 = vunpack.c.0.s8 %v3484
      %v3486 = vlaneseq
      %v3487 = vshrl.u32 %v3486, 7
      %v3488 = vsub.s32 %v3485, %v3487
      %v3489 = vrot.slane %v3461, %v3488
      %v3490 = vcombine.high %v3468, %v3468
      %v3491 = vcombine.high %v3475, %v3475
      %v3492 = vcombine.high %v3482, %v3482
      %v3493 = vcombine.high %v3489, %v3489
      %v3494 = vlaneseq
      %v3495 = vshrl.u32 %v3494, 7
      %v3496 = vsub.s32 0, %v3495
      %v3497 = vrot.slane %v3468, %v3496
      %v3498 = vlaneseq
      %v3499 = vshrl.u32 %v3498, 7
      %v3500 = vsub.s32 0, %v3499
      %v3501 = vrot.slane %v3482, %v3500
      %v3502 = vlaneseq
      %v3503 = vshrl.u32 %v3502, 7
      %v3504 = vsub.s32 0, %v3503
      %v3505 = vrot.slane %v3490, %v3504
      %v3506 = vlaneseq
      %v3507 = vshrl.u32 %v3506, 7
      %v3508 = vsub.s32 0, %v3507
      %v3509 = vrot.slane %v3492, %v3508
      %v3510 = vlaneseq
      %v3511 = vshrl.u32 %v3510, 7
      %v3512 = vsub.s32 0, %v3511
      %v3513 = vrot.slane %v3475, %v3512
      %v3514 = vlaneseq
      %v3515 = vshrl.u32 %v3514, 7
      %v3516 = vsub.s32 0, %v3515
      %v3517 = vrot.slane %v3489, %v3516
      %v3518 = vlaneseq
      %v3519 = vshrl.u32 %v3518, 7
      %v3520 = vsub.s32 0, %v3519
      %v3521 = vrot.slane %v3491, %v3520
      %v3522 = vlaneseq
      %v3523 = vshrl.u32 %v3522, 7
      %v3524 = vsub.s32 0, %v3523
      %v3525 = vrot.slane %v3493, %v3524
      %v3534 = vmul.f32 %v3497, %v789
      %v3535 = vmul.f32 %v3501, %v790
      %v3536 = vmul.f32 %v3505, %v791
      %v3537 = vmul.f32 %v3509, %v792
      %v3538 = vmul.f32 %v3513, %v793
      %v3539 = vmul.f32 %v3517, %v794
      %v3540 = vmul.f32 %v3521, %v795
      %v3541 = vmul.f32 %v3525, %v796
      %v3542 = vsel %vm817, %v3534, 0.0
      %3543 = vadd.xlane.f32.xlu0 %v3542
      %v3544 = vpop.xlane.xlu0 %3543
      %v3545 = vsel %vm817, %v3535, 0.0
      %3546 = vadd.xlane.f32.xlu0 %v3545
      %v3547 = vpop.xlane.xlu0 %3546
      %v3548 = vsel %vm817, %v3536, 0.0
      %3549 = vadd.xlane.f32.xlu0 %v3548
      %v3550 = vpop.xlane.xlu0 %3549
      %v3551 = vsel %vm817, %v3537, 0.0
      %3552 = vadd.xlane.f32.xlu0 %v3551
      %v3553 = vpop.xlane.xlu0 %3552
      %v3554 = vsel %vm817, %v3538, 0.0
      %3555 = vadd.xlane.f32.xlu0 %v3554
      %v3556 = vpop.xlane.xlu0 %3555
      %v3557 = vsel %vm817, %v3539, 0.0
      %3558 = vadd.xlane.f32.xlu0 %v3557
      %v3559 = vpop.xlane.xlu0 %3558
      %v3560 = vsel %vm817, %v3540, 0.0
      %3561 = vadd.xlane.f32.xlu0 %v3560
      %v3562 = vpop.xlane.xlu0 %3561
      %v3563 = vsel %vm817, %v3541, 0.0
      %3564 = vadd.xlane.f32.xlu0 %v3563
      %v3565 = vpop.xlane.xlu0 %3564
      %3566 = vrot.lane.b32.xlu0 %v2712, 80
      %v3567 = vpop.permute.xlu0 %3566
      %v3576 = vlaneseq
      %v3577 = vshrl.u32 %v3576, 7
      %v3578 = vsub.s32 %v1153, %v3577
      %v3579 = vrot.slane %v3544, %v3578
      %v3580 = vlaneseq
      %v3581 = vshrl.u32 %v3580, 7
      %v3582 = vsub.s32 %v1153, %v3581
      %v3583 = vrot.slane %v3547, %v3582
      %v3584 = vlaneseq
      %v3585 = vshrl.u32 %v3584, 7
      %v3586 = vsub.s32 %v1153, %v3585
      %v3587 = vrot.slane %v3550, %v3586
      %v3588 = vlaneseq
      %v3589 = vshrl.u32 %v3588, 7
      %v3590 = vsub.s32 %v1153, %v3589
      %v3591 = vrot.slane %v3553, %v3590
      %v3592 = vlaneseq
      %v3593 = vshrl.u32 %v3592, 7
      %v3594 = vsub.s32 %v1153, %v3593
      %v3595 = vrot.slane %v3556, %v3594
      %v3596 = vlaneseq
      %v3597 = vshrl.u32 %v3596, 7
      %v3598 = vsub.s32 %v1153, %v3597
      %v3599 = vrot.slane %v3559, %v3598
      %v3600 = vlaneseq
      %v3601 = vshrl.u32 %v3600, 7
      %v3602 = vsub.s32 %v1153, %v3601
      %v3603 = vrot.slane %v3562, %v3602
      %v3604 = vlaneseq
      %v3605 = vshrl.u32 %v3604, 7
      %v3606 = vsub.s32 %v1153, %v3605
      %v3607 = vrot.slane %v3565, %v3606
      %v3608 = vsel %vm1186, %v3583, %v3579
      %v3609 = vsel %vm1188, %v3587, %v3608
      %v3610 = vsel %vm1190, %v3591, %v3609
      %v3611 = vsel %vm1192, %v3595, %v3610
      %v3612 = vsel %vm1194, %v3599, %v3611
      %v3613 = vsel %vm1196, %v3603, %v3612
      %v3614 = vsel %vm1198, %v3607, %v3613
      %v3616 = vsel %vm945, %v3567, 0
      %3618 = vmatprep.subr.mxu0 0.0
      %3619 = vmatpush1.xpose.msra.mxu0 %v3616
      %3620 = vmatprep.subr.mxu0 0.0
      %3621 = vmatpush1.xpose.msra.mxu0 0.0
      %3622 = vmatprep.subr.mxu0 0.0
      %3623 = vmatpush1.xpose.msra.mxu0 0.0
      %3624 = vmatprep.subr.mxu0 0.0
      %3625 = vmatpush1.xpose.msra.mxu0 0.0
      %3626 = vmatprep.subr.mxu0 0.0
      %3627 = vmatpush1.xpose.msra.mxu0 0.0
      %3628 = vmatprep.subr.mxu0 0.0
      %3629 = vmatpush1.xpose.msra.mxu0 0.0
      %3630 = vmatprep.subr.mxu0 0.0
      %3631 = vmatpush1.xpose.msra.mxu0 0.0
      %3632 = vmatprep.subr.mxu0 0.0
      %3633 = vmatpush1.xpose.msra.mxu0 0.0
      %3634 = vmatprep.subr.mxu0 0.0
      %3635 = vmatpush1.xpose.msra.mxu0 0.0
      %3636 = vmatprep.subr.mxu0 0.0
      %3637 = vmatpush1.xpose.msra.mxu0 0.0
      %3638 = vmatprep.subr.mxu0 0.0
      %3639 = vmatpush1.xpose.msra.mxu0 0.0
      %3640 = vmatprep.subr.mxu0 0.0
      %3641 = vmatpush1.xpose.msra.mxu0 0.0
      %3642 = vmatprep.subr.mxu0 0.0
      %3643 = vmatpush1.xpose.msra.mxu0 0.0
      %3644 = vmatprep.subr.mxu0 0.0
      %3645 = vmatpush1.xpose.msra.mxu0 0.0
      %3646 = vmatprep.subr.mxu0 0.0
      %3647 = vmatpush1.xpose.msra.mxu0 0.0
      %3648 = vmatprep.subr.mxu0 0.0
      %3649 = vmatpush1.xpose.msra.mxu0 0.0
      %3650 = vmatprep.subr.mxu0 0.0
      %3651 = vmatpush1.xpose.msra.mxu0 0.0
      %3652 = vmatprep.subr.mxu0 0.0
      %3653 = vmatpush1.xpose.msra.mxu0 0.0
      %3654 = vmatprep.subr.mxu0 0.0
      %3655 = vmatpush1.xpose.msra.mxu0 0.0
      %3656 = vmatprep.subr.mxu0 0.0
      %3657 = vmatpush1.xpose.msra.mxu0 0.0
      %3658 = vmatprep.subr.mxu0 0.0
      %3659 = vmatpush1.xpose.msra.mxu0 0.0
      %3660 = vmatprep.subr.mxu0 0.0
      %3661 = vmatpush1.xpose.msra.mxu0 0.0
      %3662 = vmatprep.subr.mxu0 0.0
      %3663 = vmatpush1.xpose.msra.mxu0 0.0
      %3664 = vmatprep.subr.mxu0 0.0
      %3665 = vmatpush1.xpose.msra.mxu0 0.0
      %3666 = vmatprep.subr.mxu0 0.0
      %3667 = vmatpush1.xpose.msra.mxu0 0.0
      %3668 = vmatprep.subr.mxu0 0.0
      %3669 = vmatpush1.xpose.msra.mxu0 0.0
      %3670 = vmatprep.subr.mxu0 0.0
      %3671 = vmatpush1.xpose.msra.mxu0 0.0
      %3672 = vmatprep.subr.mxu0 0.0
      %3673 = vmatpush1.xpose.msra.mxu0 0.0
      %3674 = vmatprep.subr.mxu0 0.0
      %3675 = vmatpush1.xpose.msra.mxu0 0.0
      %3676 = vmatprep.subr.mxu0 0.0
      %3677 = vmatpush1.xpose.msra.mxu0 0.0
      %3678 = vmatprep.subr.mxu0 0.0
      %3679 = vmatpush1.xpose.msra.mxu0 0.0
      %3680 = vmatprep.subr.mxu0 0.0
      %3681 = vmatpush1.xpose.msra.mxu0 0.0
      %3682 = vmatprep.mubr.f32.mxu0 0.0
      %3683 = vmatmul.mubr.f32.gmra.mrb[0].mxu0 %v3372
      %v3684 = vpop.f32.mrb[0].mxu0
      %v3685 = vadd.f32 %v3614, %v3684
      %v3686 = vpop.f32.mrb[0].mxu0
      %3687 = vdwg.mxu0
      %3688 = vmatprep.subr.mxu0 0.0
      %3689 = vmatpush1.msra.mxu0 %v2722
      %3690 = vmatprep.subr.mxu0 0.0
      %3691 = vmatpush1.msra.mxu0 %v2723
      %3692 = vmatprep.subr.mxu0 0.0
      %3693 = vmatpush1.msra.mxu0 0.0
      %3694 = vmatprep.subr.mxu0 0.0
      %3695 = vmatpush1.msra.mxu0 0.0
      %3696 = vmatprep.subr.mxu0 0.0
      %3697 = vmatpush1.msra.mxu0 0.0
      %3698 = vmatprep.subr.mxu0 0.0
      %3699 = vmatpush1.msra.mxu0 0.0
      %3700 = vmatprep.subr.mxu0 0.0
      %3701 = vmatpush1.msra.mxu0 0.0
      %3702 = vmatprep.subr.mxu0 0.0
      %3703 = vmatpush1.msra.mxu0 0.0
      %3704 = vmatprep.subr.mxu0 0.0
      %3705 = vmatpush1.msra.mxu0 0.0
      %3706 = vmatprep.subr.mxu0 0.0
      %3707 = vmatpush1.msra.mxu0 0.0
      %3708 = vmatprep.subr.mxu0 0.0
      %3709 = vmatpush1.msra.mxu0 0.0
      %3710 = vmatprep.subr.mxu0 0.0
      %3711 = vmatpush1.msra.mxu0 0.0
      %3712 = vmatprep.subr.mxu0 0.0
      %3713 = vmatpush1.msra.mxu0 0.0
      %3714 = vmatprep.subr.mxu0 0.0
      %3715 = vmatpush1.msra.mxu0 0.0
      %3716 = vmatprep.subr.mxu0 0.0
      %3717 = vmatpush1.msra.mxu0 0.0
      %3718 = vmatprep.subr.mxu0 0.0
      %3719 = vmatpush1.msra.mxu0 0.0
      %3720 = vmatprep.subr.mxu0 0.0
      %3721 = vmatpush1.msra.mxu0 0.0
      %3722 = vmatprep.subr.mxu0 0.0
      %3723 = vmatpush1.msra.mxu0 0.0
      %3724 = vmatprep.subr.mxu0 0.0
      %3725 = vmatpush1.msra.mxu0 0.0
      %3726 = vmatprep.subr.mxu0 0.0
      %3727 = vmatpush1.msra.mxu0 0.0
      %3728 = vmatprep.subr.mxu0 0.0
      %3729 = vmatpush1.msra.mxu0 0.0
      %3730 = vmatprep.subr.mxu0 0.0
      %3731 = vmatpush1.msra.mxu0 0.0
      %3732 = vmatprep.subr.mxu0 0.0
      %3733 = vmatpush1.msra.mxu0 0.0
      %3734 = vmatprep.subr.mxu0 0.0
      %3735 = vmatpush1.msra.mxu0 0.0
      %3736 = vmatprep.subr.mxu0 0.0
      %3737 = vmatpush1.msra.mxu0 0.0
      %3738 = vmatprep.subr.mxu0 0.0
      %3739 = vmatpush1.msra.mxu0 0.0
      %3740 = vmatprep.subr.mxu0 0.0
      %3741 = vmatpush1.msra.mxu0 0.0
      %3742 = vmatprep.subr.mxu0 0.0
      %3743 = vmatpush1.msra.mxu0 0.0
      %3744 = vmatprep.subr.mxu0 0.0
      %3745 = vmatpush1.msra.mxu0 0.0
      %3746 = vmatprep.subr.mxu0 0.0
      %3747 = vmatpush1.msra.mxu0 0.0
      %3748 = vmatprep.subr.mxu0 0.0
      %3749 = vmatpush1.msra.mxu0 0.0
      %3750 = vmatprep.subr.mxu0 0.0
      %3751 = vmatpush1.msra.mxu0 0.0
      %3752 = vmatprep.mubr.f32.mxu0 0.0
      %3753 = vmatmul.mubr.f32.gmra.mrb[0].mxu0 %v3616
      %v3754 = vpop.f32.mrb[0].mxu0
      %v3755 = vadd.f32 0.0, %v3754
      %v3756 = vpop.f32.mrb[0].mxu0
      %3757 = vdwg.mxu0
      %v3758 = vmul.f32 %v3755, 0.14433756
      %v3759 = vmul.f32 %v3758, %v789
      %v3760 = vmul.f32 %v3758, %v790
      %v3761 = vmul.f32 %v3758, %v791
      %v3762 = vmul.f32 %v3758, %v792
      %v3763 = vmul.f32 %v3758, %v793
      %v3764 = vmul.f32 %v3758, %v794
      %v3765 = vmul.f32 %v3758, %v795
      %v3766 = vmul.f32 %v3758, %v796
      %v3767 = vsel %vm817, %v3759, 0.0
      %3768 = vadd.xlane.f32.xlu0 %v3767
      %v3769 = vpop.xlane.xlu0 %3768
      %v3770 = vsel %vm817, %v3760, 0.0
      %3771 = vadd.xlane.f32.xlu0 %v3770
      %v3772 = vpop.xlane.xlu0 %3771
      %v3773 = vsel %vm817, %v3761, 0.0
      %3774 = vadd.xlane.f32.xlu0 %v3773
      %v3775 = vpop.xlane.xlu0 %3774
      %v3776 = vsel %vm817, %v3762, 0.0
      %3777 = vadd.xlane.f32.xlu0 %v3776
      %v3778 = vpop.xlane.xlu0 %3777
      %v3779 = vsel %vm817, %v3763, 0.0
      %3780 = vadd.xlane.f32.xlu0 %v3779
      %v3781 = vpop.xlane.xlu0 %3780
      %v3782 = vsel %vm817, %v3764, 0.0
      %3783 = vadd.xlane.f32.xlu0 %v3782
      %v3784 = vpop.xlane.xlu0 %3783
      %v3785 = vsel %vm817, %v3765, 0.0
      %3786 = vadd.xlane.f32.xlu0 %v3785
      %v3787 = vpop.xlane.xlu0 %3786
      %v3788 = vsel %vm817, %v3766, 0.0
      %3789 = vadd.xlane.f32.xlu0 %v3788
      %v3790 = vpop.xlane.xlu0 %3789
      %v3799 = vlaneseq
      %v3800 = vshrl.u32 %v3799, 7
      %v3801 = vsub.s32 %v1153, %v3800
      %v3802 = vrot.slane %v3769, %v3801
      %v3803 = vlaneseq
      %v3804 = vshrl.u32 %v3803, 7
      %v3805 = vsub.s32 %v1153, %v3804
      %v3806 = vrot.slane %v3772, %v3805
      %v3807 = vlaneseq
      %v3808 = vshrl.u32 %v3807, 7
      %v3809 = vsub.s32 %v1153, %v3808
      %v3810 = vrot.slane %v3775, %v3809
      %v3811 = vlaneseq
      %v3812 = vshrl.u32 %v3811, 7
      %v3813 = vsub.s32 %v1153, %v3812
      %v3814 = vrot.slane %v3778, %v3813
      %v3815 = vlaneseq
      %v3816 = vshrl.u32 %v3815, 7
      %v3817 = vsub.s32 %v1153, %v3816
      %v3818 = vrot.slane %v3781, %v3817
      %v3819 = vlaneseq
      %v3820 = vshrl.u32 %v3819, 7
      %v3821 = vsub.s32 %v1153, %v3820
      %v3822 = vrot.slane %v3784, %v3821
      %v3823 = vlaneseq
      %v3824 = vshrl.u32 %v3823, 7
      %v3825 = vsub.s32 %v1153, %v3824
      %v3826 = vrot.slane %v3787, %v3825
      %v3827 = vlaneseq
      %v3828 = vshrl.u32 %v3827, 7
      %v3829 = vsub.s32 %v1153, %v3828
      %v3830 = vrot.slane %v3790, %v3829
      %v3831 = vsel %vm1186, %v3806, %v3802
      %v3832 = vsel %vm1188, %v3810, %v3831
      %v3833 = vsel %vm1190, %v3814, %v3832
      %v3834 = vsel %vm1192, %v3818, %v3833
      %v3835 = vsel %vm1194, %v3822, %v3834
      %v3836 = vsel %vm1196, %v3826, %v3835
      %v3837 = vsel %vm1198, %v3830, %v3836
      %v3839 = vadd.f32 %v3685, %v3837
      %v3840 = vlaneseq
      %v3841 = vshrl.u32 %v3840, 7
      %v3842 = vsub.s32 0, %v3841
      %v3843 = vrot.slane %v2725, %v3842
      %3844 = vrot.lane.b32.xlu0 %v3843, 112
      %v3845 = vpop.permute.xlu0 %3844
      %v3846 = vsel %vm945, %v3845, 0
      %3848 = vmatprep.subr.mxu0 0.0
      %3849 = vmatpush1.xpose.msra.mxu0 %v3616
      %3850 = vmatprep.subr.mxu0 0.0
      %3851 = vmatpush1.xpose.msra.mxu0 0.0
      %3852 = vmatprep.subr.mxu0 0.0
      %3853 = vmatpush1.xpose.msra.mxu0 0.0
      %3854 = vmatprep.subr.mxu0 0.0
      %3855 = vmatpush1.xpose.msra.mxu0 0.0
      %3856 = vmatprep.subr.mxu0 0.0
      %3857 = vmatpush1.xpose.msra.mxu0 0.0
      %3858 = vmatprep.subr.mxu0 0.0
      %3859 = vmatpush1.xpose.msra.mxu0 0.0
      %3860 = vmatprep.subr.mxu0 0.0
      %3861 = vmatpush1.xpose.msra.mxu0 0.0
      %3862 = vmatprep.subr.mxu0 0.0
      %3863 = vmatpush1.xpose.msra.mxu0 0.0
      %3864 = vmatprep.subr.mxu0 0.0
      %3865 = vmatpush1.xpose.msra.mxu0 0.0
      %3866 = vmatprep.subr.mxu0 0.0
      %3867 = vmatpush1.xpose.msra.mxu0 0.0
      %3868 = vmatprep.subr.mxu0 0.0
      %3869 = vmatpush1.xpose.msra.mxu0 0.0
      %3870 = vmatprep.subr.mxu0 0.0
      %3871 = vmatpush1.xpose.msra.mxu0 0.0
      %3872 = vmatprep.subr.mxu0 0.0
      %3873 = vmatpush1.xpose.msra.mxu0 0.0
      %3874 = vmatprep.subr.mxu0 0.0
      %3875 = vmatpush1.xpose.msra.mxu0 0.0
      %3876 = vmatprep.subr.mxu0 0.0
      %3877 = vmatpush1.xpose.msra.mxu0 0.0
      %3878 = vmatprep.subr.mxu0 0.0
      %3879 = vmatpush1.xpose.msra.mxu0 0.0
      %3880 = vmatprep.subr.mxu0 0.0
      %3881 = vmatpush1.xpose.msra.mxu0 0.0
      %3882 = vmatprep.subr.mxu0 0.0
      %3883 = vmatpush1.xpose.msra.mxu0 0.0
      %3884 = vmatprep.subr.mxu0 0.0
      %3885 = vmatpush1.xpose.msra.mxu0 0.0
      %3886 = vmatprep.subr.mxu0 0.0
      %3887 = vmatpush1.xpose.msra.mxu0 0.0
      %3888 = vmatprep.subr.mxu0 0.0
      %3889 = vmatpush1.xpose.msra.mxu0 0.0
      %3890 = vmatprep.subr.mxu0 0.0
      %3891 = vmatpush1.xpose.msra.mxu0 0.0
      %3892 = vmatprep.subr.mxu0 0.0
      %3893 = vmatpush1.xpose.msra.mxu0 0.0
      %3894 = vmatprep.subr.mxu0 0.0
      %3895 = vmatpush1.xpose.msra.mxu0 0.0
      %3896 = vmatprep.subr.mxu0 0.0
      %3897 = vmatpush1.xpose.msra.mxu0 0.0
      %3898 = vmatprep.subr.mxu0 0.0
      %3899 = vmatpush1.xpose.msra.mxu0 0.0
      %3900 = vmatprep.subr.mxu0 0.0
      %3901 = vmatpush1.xpose.msra.mxu0 0.0
      %3902 = vmatprep.subr.mxu0 0.0
      %3903 = vmatpush1.xpose.msra.mxu0 0.0
      %3904 = vmatprep.subr.mxu0 0.0
      %3905 = vmatpush1.xpose.msra.mxu0 0.0
      %3906 = vmatprep.subr.mxu0 0.0
      %3907 = vmatpush1.xpose.msra.mxu0 0.0
      %3908 = vmatprep.subr.mxu0 0.0
      %3909 = vmatpush1.xpose.msra.mxu0 0.0
      %3910 = vmatprep.subr.mxu0 0.0
      %3911 = vmatpush1.xpose.msra.mxu0 0.0
      %3912 = vmatprep.mubr.f32.mxu0 0.0
      %3913 = vmatmul.mubr.f32.gmra.mrb[0].mxu0 %v3846
      %v3914 = vpop.f32.mrb[0].mxu0
      %v3915 = vadd.f32 0.0, %v3914
      %v3916 = vpop.f32.mrb[0].mxu0
      %3917 = vdwg.mxu0
      %v3918 = vmul.f32 %v3915, 0.14433756
      %v3919 = vlaneseq
      %v3920 = vshrl.u32 %v3919, 7
      %v3921 = vsub.s32 0, %v3920
      %v3922 = vrot.slane %v3918, %v3921
      %v3923 = vadd.f32 %v3839, %v3922
      %v3924 = vsel %vm811, %v3923, -1e+09
      %v3925 = vsel %vm1505, %v3924, -inf
      %3926 = vmax.xlane.f32.xlu0 %v3925
      %v3927 = vpop.xlane.xlu0 %3926
      %v3928 = vsub.f32 %v3924, %v3927
      %v3929 = vmul.f32 %v3928, 1.442695
      %v3930 = vpow.pop %v3929
      %v3931 = vsel %vm1505, %v3930, 0.0
      %3932 = vadd.xlane.f32.xlu0 %v3931
      %v3933 = vpop.xlane.xlu0 %3932
      %v3934 = vrcp.pop %v3933
      %v3935 = vmul.f32 %v3930, %v3934
      %v3936 = vsel %vm811, %v3935, 0.0
      %3937 = vrot.lane.b32.xlu0 %v2712, 48
      %v3938 = vpop.permute.xlu0 %3937
      %v3941 = vsel %vm1505, %v3936, 0
      %3943 = vmatprep.subr.mxu0 0.0
      %3944 = vmatpush1.msra.mxu0 %v3938
      %3945 = vmatprep.subr.mxu0 0.0
      %3946 = vmatpush1.msra.mxu0 0.0
      %3947 = vmatprep.subr.mxu0 0.0
      %3948 = vmatpush1.msra.mxu0 0.0
      %3949 = vmatprep.subr.mxu0 0.0
      %3950 = vmatpush1.msra.mxu0 0.0
      %3951 = vmatprep.subr.mxu0 0.0
      %3952 = vmatpush1.msra.mxu0 0.0
      %3953 = vmatprep.subr.mxu0 0.0
      %3954 = vmatpush1.msra.mxu0 0.0
      %3955 = vmatprep.subr.mxu0 0.0
      %3956 = vmatpush1.msra.mxu0 0.0
      %3957 = vmatprep.subr.mxu0 0.0
      %3958 = vmatpush1.msra.mxu0 0.0
      %3959 = vmatprep.subr.mxu0 0.0
      %3960 = vmatpush1.msra.mxu0 0.0
      %3961 = vmatprep.subr.mxu0 0.0
      %3962 = vmatpush1.msra.mxu0 0.0
      %3963 = vmatprep.subr.mxu0 0.0
      %3964 = vmatpush1.msra.mxu0 0.0
      %3965 = vmatprep.subr.mxu0 0.0
      %3966 = vmatpush1.msra.mxu0 0.0
      %3967 = vmatprep.subr.mxu0 0.0
      %3968 = vmatpush1.msra.mxu0 0.0
      %3969 = vmatprep.subr.mxu0 0.0
      %3970 = vmatpush1.msra.mxu0 0.0
      %3971 = vmatprep.subr.mxu0 0.0
      %3972 = vmatpush1.msra.mxu0 0.0
      %3973 = vmatprep.subr.mxu0 0.0
      %3974 = vmatpush1.msra.mxu0 0.0
      %3975 = vmatprep.subr.mxu0 0.0
      %3976 = vmatpush1.msra.mxu0 0.0
      %3977 = vmatprep.subr.mxu0 0.0
      %3978 = vmatpush1.msra.mxu0 0.0
      %3979 = vmatprep.subr.mxu0 0.0
      %3980 = vmatpush1.msra.mxu0 0.0
      %3981 = vmatprep.subr.mxu0 0.0
      %3982 = vmatpush1.msra.mxu0 0.0
      %3983 = vmatprep.subr.mxu0 0.0
      %3984 = vmatpush1.msra.mxu0 0.0
      %3985 = vmatprep.subr.mxu0 0.0
      %3986 = vmatpush1.msra.mxu0 0.0
      %3987 = vmatprep.subr.mxu0 0.0
      %3988 = vmatpush1.msra.mxu0 0.0
      %3989 = vmatprep.subr.mxu0 0.0
      %3990 = vmatpush1.msra.mxu0 0.0
      %3991 = vmatprep.subr.mxu0 0.0
      %3992 = vmatpush1.msra.mxu0 0.0
      %3993 = vmatprep.subr.mxu0 0.0
      %3994 = vmatpush1.msra.mxu0 0.0
      %3995 = vmatprep.subr.mxu0 0.0
      %3996 = vmatpush1.msra.mxu0 0.0
      %3997 = vmatprep.subr.mxu0 0.0
      %3998 = vmatpush1.msra.mxu0 0.0
      %3999 = vmatprep.subr.mxu0 0.0
      %4000 = vmatpush1.msra.mxu0 0.0
      %4001 = vmatprep.subr.mxu0 0.0
      %4002 = vmatpush1.msra.mxu0 0.0
      %4003 = vmatprep.subr.mxu0 0.0
      %4004 = vmatpush1.msra.mxu0 0.0
      %4005 = vmatprep.subr.mxu0 0.0
      %4006 = vmatpush1.msra.mxu0 0.0
      %4007 = vmatprep.mubr.f32.mxu0 0.0
      %4008 = vmatmul.mubr.f32.gmra.mrb[0].mxu0 %v3941
      %v4009 = vpop.f32.mrb[0].mxu0
      %v4010 = vadd.f32 0.0, %v4009
      %v4011 = vpop.f32.mrb[0].mxu0
      %4012 = vdwg.mxu0
      %v4014 = vsel %vm945, %v4010, 0
      %4016 = vmatprep.subr.mxu0 0.0
      %4017 = vmatpush1.msra.mxu0 %v2729
      %4018 = vmatprep.subr.mxu0 0.0
      %4019 = vmatpush1.msra.mxu0 %v2730
      %4020 = vmatprep.subr.mxu0 0.0
      %4021 = vmatpush1.msra.mxu0 0.0
      %4022 = vmatprep.subr.mxu0 0.0
      %4023 = vmatpush1.msra.mxu0 0.0
      %4024 = vmatprep.subr.mxu0 0.0
      %4025 = vmatpush1.msra.mxu0 0.0
      %4026 = vmatprep.subr.mxu0 0.0
      %4027 = vmatpush1.msra.mxu0 0.0
      %4028 = vmatprep.subr.mxu0 0.0
      %4029 = vmatpush1.msra.mxu0 0.0
      %4030 = vmatprep.subr.mxu0 0.0
      %4031 = vmatpush1.msra.mxu0 0.0
      %4032 = vmatprep.subr.mxu0 0.0
      %4033 = vmatpush1.msra.mxu0 0.0
      %4034 = vmatprep.subr.mxu0 0.0
      %4035 = vmatpush1.msra.mxu0 0.0
      %4036 = vmatprep.subr.mxu0 0.0
      %4037 = vmatpush1.msra.mxu0 0.0
      %4038 = vmatprep.subr.mxu0 0.0
      %4039 = vmatpush1.msra.mxu0 0.0
      %4040 = vmatprep.subr.mxu0 0.0
      %4041 = vmatpush1.msra.mxu0 0.0
      %4042 = vmatprep.subr.mxu0 0.0
      %4043 = vmatpush1.msra.mxu0 0.0
      %4044 = vmatprep.subr.mxu0 0.0
      %4045 = vmatpush1.msra.mxu0 0.0
      %4046 = vmatprep.subr.mxu0 0.0
      %4047 = vmatpush1.msra.mxu0 0.0
      %4048 = vmatprep.subr.mxu0 0.0
      %4049 = vmatpush1.msra.mxu0 0.0
      %4050 = vmatprep.subr.mxu0 0.0
      %4051 = vmatpush1.msra.mxu0 0.0
      %4052 = vmatprep.subr.mxu0 0.0
      %4053 = vmatpush1.msra.mxu0 0.0
      %4054 = vmatprep.subr.mxu0 0.0
      %4055 = vmatpush1.msra.mxu0 0.0
      %4056 = vmatprep.subr.mxu0 0.0
      %4057 = vmatpush1.msra.mxu0 0.0
      %4058 = vmatprep.subr.mxu0 0.0
      %4059 = vmatpush1.msra.mxu0 0.0
      %4060 = vmatprep.subr.mxu0 0.0
      %4061 = vmatpush1.msra.mxu0 0.0
      %4062 = vmatprep.subr.mxu0 0.0
      %4063 = vmatpush1.msra.mxu0 0.0
      %4064 = vmatprep.subr.mxu0 0.0
      %4065 = vmatpush1.msra.mxu0 0.0
      %4066 = vmatprep.subr.mxu0 0.0
      %4067 = vmatpush1.msra.mxu0 0.0
      %4068 = vmatprep.subr.mxu0 0.0
      %4069 = vmatpush1.msra.mxu0 0.0
      %4070 = vmatprep.subr.mxu0 0.0
      %4071 = vmatpush1.msra.mxu0 0.0
      %4072 = vmatprep.subr.mxu0 0.0
      %4073 = vmatpush1.msra.mxu0 0.0
      %4074 = vmatprep.subr.mxu0 0.0
      %4075 = vmatpush1.msra.mxu0 0.0
      %4076 = vmatprep.subr.mxu0 0.0
      %4077 = vmatpush1.msra.mxu0 0.0
      %4078 = vmatprep.subr.mxu0 0.0
      %4079 = vmatpush1.msra.mxu0 0.0
      %4080 = vmatprep.mubr.f32.mxu0 0.0
      %4081 = vmatmul.mubr.f32.gmra.mrb[0].mxu0 %v4014
      %v4082 = vpop.f32.mrb[0].mxu0
      %v4083 = vadd.f32 0.0, %v4082
      %v4084 = vpop.f32.mrb[0].mxu0
      %4085 = vdwg.mxu0
      %v4087 = vsel %vm945, %v3367, 0
      %4089 = vmatprep.subr.mxu0 0.0
      %4090 = vmatpush1.msra.mxu0 %v2727
      %4091 = vmatprep.subr.mxu0 0.0
      %4092 = vmatpush1.msra.mxu0 %v2728
      %4093 = vmatprep.subr.mxu0 0.0
      %4094 = vmatpush1.msra.mxu0 0.0
      %4095 = vmatprep.subr.mxu0 0.0
      %4096 = vmatpush1.msra.mxu0 0.0
      %4097 = vmatprep.subr.mxu0 0.0
      %4098 = vmatpush1.msra.mxu0 0.0
      %4099 = vmatprep.subr.mxu0 0.0
      %4100 = vmatpush1.msra.mxu0 0.0
      %4101 = vmatprep.subr.mxu0 0.0
      %4102 = vmatpush1.msra.mxu0 0.0
      %4103 = vmatprep.subr.mxu0 0.0
      %4104 = vmatpush1.msra.mxu0 0.0
      %4105 = vmatprep.subr.mxu0 0.0
      %4106 = vmatpush1.msra.mxu0 0.0
      %4107 = vmatprep.subr.mxu0 0.0
      %4108 = vmatpush1.msra.mxu0 0.0
      %4109 = vmatprep.subr.mxu0 0.0
      %4110 = vmatpush1.msra.mxu0 0.0
      %4111 = vmatprep.subr.mxu0 0.0
      %4112 = vmatpush1.msra.mxu0 0.0
      %4113 = vmatprep.subr.mxu0 0.0
      %4114 = vmatpush1.msra.mxu0 0.0
      %4115 = vmatprep.subr.mxu0 0.0
      %4116 = vmatpush1.msra.mxu0 0.0
      %4117 = vmatprep.subr.mxu0 0.0
      %4118 = vmatpush1.msra.mxu0 0.0
      %4119 = vmatprep.subr.mxu0 0.0
      %4120 = vmatpush1.msra.mxu0 0.0
      %4121 = vmatprep.subr.mxu0 0.0
      %4122 = vmatpush1.msra.mxu0 0.0
      %4123 = vmatprep.subr.mxu0 0.0
      %4124 = vmatpush1.msra.mxu0 0.0
      %4125 = vmatprep.subr.mxu0 0.0
      %4126 = vmatpush1.msra.mxu0 0.0
      %4127 = vmatprep.subr.mxu0 0.0
      %4128 = vmatpush1.msra.mxu0 0.0
      %4129 = vmatprep.subr.mxu0 0.0
      %4130 = vmatpush1.msra.mxu0 0.0
      %4131 = vmatprep.subr.mxu0 0.0
      %4132 = vmatpush1.msra.mxu0 0.0
      %4133 = vmatprep.subr.mxu0 0.0
      %4134 = vmatpush1.msra.mxu0 0.0
      %4135 = vmatprep.subr.mxu0 0.0
      %4136 = vmatpush1.msra.mxu0 0.0
      %4137 = vmatprep.subr.mxu0 0.0
      %4138 = vmatpush1.msra.mxu0 0.0
      %4139 = vmatprep.subr.mxu0 0.0
      %4140 = vmatpush1.msra.mxu0 0.0
      %4141 = vmatprep.subr.mxu0 0.0
      %4142 = vmatpush1.msra.mxu0 0.0
      %4143 = vmatprep.subr.mxu0 0.0
      %4144 = vmatpush1.msra.mxu0 0.0
      %4145 = vmatprep.subr.mxu0 0.0
      %4146 = vmatpush1.msra.mxu0 0.0
      %4147 = vmatprep.subr.mxu0 0.0
      %4148 = vmatpush1.msra.mxu0 0.0
      %4149 = vmatprep.subr.mxu0 0.0
      %4150 = vmatpush1.msra.mxu0 0.0
      %4151 = vmatprep.subr.mxu0 0.0
      %4152 = vmatpush1.msra.mxu0 0.0
      %4153 = vmatprep.mubr.f32.mxu0 0.0
      %4154 = vmatmul.mubr.f32.gmra.mrb[0].mxu0 %v4087
      %v4155 = vpop.f32.mrb[0].mxu0
      %v4156 = vadd.f32 %v4083, %v4155
      %v4157 = vpop.f32.mrb[0].mxu0
      %4158 = vdwg.mxu0
      %s4159 = scalar_lea.vmem %s12, 1
      %v4160 = vld [vmem:[%s4159] sm:$0x1]
      %v4162 = vlaneseq
      %v4163 = vshrl.u32 %v4162, 7
      %v4164 = vsub.s32 0, %v4163
      %v4165 = vrot.slane %v4160, %v4164
      %v4167 = vadd.f32 %v4156, %v4165
      %v4168 = vadd.f32 %v4167, %v2628
      %s4169 = scalar_lea.vmem %s13, 1
      %v4170 = vld [vmem:[%s4169] sm:$0x1]
      %s4171 = scalar_lea.vmem %s14, 1
      %v4172 = vld [vmem:[%s4171] sm:$0x1]
      %v4173 = vsel %vm817, %v4168, 0.0
      %4174 = vadd.xlane.f32.xlu0 %v4173
      %v4175 = vpop.xlane.xlu0 %4174
      %v4176 = vmul.f32 %v4175, %v821
      %v4177 = vsub.f32 %v4168, %v4176
      %v4178 = vmul.f32 %v4177, %v4177
      %v4179 = vsel %vm817, %v4178, 0.0
      %4180 = vadd.xlane.f32.xlu0 %v4179
      %v4181 = vpop.xlane.xlu0 %4180
      %v4182 = vmul.f32 %v4181, %v821
      %v4183 = vadd.f32 %v4182, 1e-07
      %v4184 = vrsqrt.pop %v4183
      %v4185 = vmul.f32 %v4177, %v4184
      %v4187 = vlaneseq
      %v4188 = vshrl.u32 %v4187, 7
      %v4189 = vsub.s32 0, %v4188
      %v4190 = vrot.slane %v4170, %v4189
      %v4192 = vmul.f32 %v4185, %v4190
      %v4194 = vlaneseq
      %v4195 = vshrl.u32 %v4194, 7
      %v4196 = vsub.s32 0, %v4195
      %v4197 = vrot.slane %v4172, %v4196
      %v4199 = vadd.f32 %v4192, %v4197
      %s4200 = scalar_lea.vmem %s15, 32
      %v4201 = vld [vmem:[%s4200] sm:$0xff]
      %v4202 = vld [vmem:[%s4200 + $0x8] sm:$0xff]
      %v4203 = vld [vmem:[%s4200 + $0x10] sm:$0xff]
      %v4204 = vld [vmem:[%s4200 + $0x18] sm:$0xff]
      %s4205 = scalar_lea.vmem %s16, 1
      %v4206 = vld [vmem:[%s4205] sm:$0x1]
      %v4208 = vlaneseq
      %v4209 = vshrl.u32 %v4208, 7
      %v4210 = vsub.s32 0, %v4209
      %v4211 = vrot.slane %v4206, %v4210
      %v4214 = vsel %vm817, %v4199, 0
      %4216 = vmatprep.subr.mxu0 0.0
      %4217 = vmatpush1.msra.mxu0 %v4201
      %4218 = vmatprep.subr.mxu0 0.0
      %4219 = vmatpush1.msra.mxu0 %v4202
      %4220 = vmatprep.subr.mxu0 0.0
      %4221 = vmatpush1.msra.mxu0 %v4203
      %4222 = vmatprep.subr.mxu0 0.0
      %4223 = vmatpush1.msra.mxu0 %v4204
      %4224 = vmatprep.subr.mxu0 0.0
      %4225 = vmatpush1.msra.mxu0 0.0
      %4226 = vmatprep.subr.mxu0 0.0
      %4227 = vmatpush1.msra.mxu0 0.0
      %4228 = vmatprep.subr.mxu0 0.0
      %4229 = vmatpush1.msra.mxu0 0.0
      %4230 = vmatprep.subr.mxu0 0.0
      %4231 = vmatpush1.msra.mxu0 0.0
      %4232 = vmatprep.subr.mxu0 0.0
      %4233 = vmatpush1.msra.mxu0 0.0
      %4234 = vmatprep.subr.mxu0 0.0
      %4235 = vmatpush1.msra.mxu0 0.0
      %4236 = vmatprep.subr.mxu0 0.0
      %4237 = vmatpush1.msra.mxu0 0.0
      %4238 = vmatprep.subr.mxu0 0.0
      %4239 = vmatpush1.msra.mxu0 0.0
      %4240 = vmatprep.subr.mxu0 0.0
      %4241 = vmatpush1.msra.mxu0 0.0
      %4242 = vmatprep.subr.mxu0 0.0
      %4243 = vmatpush1.msra.mxu0 0.0
      %4244 = vmatprep.subr.mxu0 0.0
      %4245 = vmatpush1.msra.mxu0 0.0
      %4246 = vmatprep.subr.mxu0 0.0
      %4247 = vmatpush1.msra.mxu0 0.0
      %4248 = vmatprep.subr.mxu0 0.0
      %4249 = vmatpush1.msra.mxu0 0.0
      %4250 = vmatprep.subr.mxu0 0.0
      %4251 = vmatpush1.msra.mxu0 0.0
      %4252 = vmatprep.subr.mxu0 0.0
      %4253 = vmatpush1.msra.mxu0 0.0
      %4254 = vmatprep.subr.mxu0 0.0
      %4255 = vmatpush1.msra.mxu0 0.0
      %4256 = vmatprep.subr.mxu0 0.0
      %4257 = vmatpush1.msra.mxu0 0.0
      %4258 = vmatprep.subr.mxu0 0.0
      %4259 = vmatpush1.msra.mxu0 0.0
      %4260 = vmatprep.subr.mxu0 0.0
      %4261 = vmatpush1.msra.mxu0 0.0
      %4262 = vmatprep.subr.mxu0 0.0
      %4263 = vmatpush1.msra.mxu0 0.0
      %4264 = vmatprep.subr.mxu0 0.0
      %4265 = vmatpush1.msra.mxu0 0.0
      %4266 = vmatprep.subr.mxu0 0.0
      %4267 = vmatpush1.msra.mxu0 0.0
      %4268 = vmatprep.subr.mxu0 0.0
      %4269 = vmatpush1.msra.mxu0 0.0
      %4270 = vmatprep.subr.mxu0 0.0
      %4271 = vmatpush1.msra.mxu0 0.0
      %4272 = vmatprep.subr.mxu0 0.0
      %4273 = vmatpush1.msra.mxu0 0.0
      %4274 = vmatprep.subr.mxu0 0.0
      %4275 = vmatpush1.msra.mxu0 0.0
      %4276 = vmatprep.subr.mxu0 0.0
      %4277 = vmatpush1.msra.mxu0 0.0
      %4278 = vmatprep.subr.mxu0 0.0
      %4279 = vmatpush1.msra.mxu0 0.0
      %4280 = vmatprep.mubr.f32.mxu0 0.0
      %4281 = vmatmul.mubr.f32.gmra.mrb[0].mxu0 %v4214
      %v4282 = vpop.f32.mrb[0].mxu0
      %v4283 = vadd.f32 %v4211, %v4282
      %v4284 = vpop.f32.mrb[0].mxu0
      %4285 = vdwg.mxu0
      %v4286 = vmul.f32 %v4283, 0.5
      %v4287 = vmul.f32 %v4283, 0.70710677
      %v4288 = verf.f32.pop %v4287
      %v4289 = vadd.f32 %v4288, 1.0
      %v4290 = vmul.f32 %v4286, %v4289
      %s4291 = scalar_lea.vmem %s17, 64
      %v4292 = vld [vmem:[%s4291] sm:$0xff]
      %v4293 = vld [vmem:[%s4291 + $0x8] sm:$0xff]
      %v4294 = vld [vmem:[%s4291 + $0x10] sm:$0xff]
      %v4295 = vld [vmem:[%s4291 + $0x18] sm:$0xff]
      %v4296 = vld [vmem:[%s4291 + $0x20] sm:$0xff]
      %v4297 = vld [vmem:[%s4291 + $0x28] sm:$0xff]
      %v4298 = vld [vmem:[%s4291 + $0x30] sm:$0xff]
      %v4299 = vld [vmem:[%s4291 + $0x38] sm:$0xff]
      %s4300 = scalar_lea.vmem %s18, 1
      %v4301 = vld [vmem:[%s4300] sm:$0x1]
      %v4303 = vlaneseq
      %v4304 = vshrl.u32 %v4303, 7
      %v4305 = vsub.s32 0, %v4304
      %v4306 = vrot.slane %v4301, %v4305
      %v4309 = vsel %vm2525, %v4290, 0
      %4311 = vmatprep.subr.mxu0 0.0
      %4312 = vmatpush1.msra.mxu0 %v4292
      %4313 = vmatprep.subr.mxu0 0.0
      %4314 = vmatpush1.msra.mxu0 %v4293
      %4315 = vmatprep.subr.mxu0 0.0
      %4316 = vmatpush1.msra.mxu0 %v4294
      %4317 = vmatprep.subr.mxu0 0.0
      %4318 = vmatpush1.msra.mxu0 %v4295
      %4319 = vmatprep.subr.mxu0 0.0
      %4320 = vmatpush1.msra.mxu0 %v4296
      %4321 = vmatprep.subr.mxu0 0.0
      %4322 = vmatpush1.msra.mxu0 %v4297
      %4323 = vmatprep.subr.mxu0 0.0
      %4324 = vmatpush1.msra.mxu0 %v4298
      %4325 = vmatprep.subr.mxu0 0.0
      %4326 = vmatpush1.msra.mxu0 %v4299
      %4327 = vmatprep.subr.mxu0 0.0
      %4328 = vmatpush1.msra.mxu0 0.0
      %4329 = vmatprep.subr.mxu0 0.0
      %4330 = vmatpush1.msra.mxu0 0.0
      %4331 = vmatprep.subr.mxu0 0.0
      %4332 = vmatpush1.msra.mxu0 0.0
      %4333 = vmatprep.subr.mxu0 0.0
      %4334 = vmatpush1.msra.mxu0 0.0
      %4335 = vmatprep.subr.mxu0 0.0
      %4336 = vmatpush1.msra.mxu0 0.0
      %4337 = vmatprep.subr.mxu0 0.0
      %4338 = vmatpush1.msra.mxu0 0.0
      %4339 = vmatprep.subr.mxu0 0.0
      %4340 = vmatpush1.msra.mxu0 0.0
      %4341 = vmatprep.subr.mxu0 0.0
      %4342 = vmatpush1.msra.mxu0 0.0
      %4343 = vmatprep.subr.mxu0 0.0
      %4344 = vmatpush1.msra.mxu0 0.0
      %4345 = vmatprep.subr.mxu0 0.0
      %4346 = vmatpush1.msra.mxu0 0.0
      %4347 = vmatprep.subr.mxu0 0.0
      %4348 = vmatpush1.msra.mxu0 0.0
      %4349 = vmatprep.subr.mxu0 0.0
      %4350 = vmatpush1.msra.mxu0 0.0
      %4351 = vmatprep.subr.mxu0 0.0
      %4352 = vmatpush1.msra.mxu0 0.0
      %4353 = vmatprep.subr.mxu0 0.0
      %4354 = vmatpush1.msra.mxu0 0.0
      %4355 = vmatprep.subr.mxu0 0.0
      %4356 = vmatpush1.msra.mxu0 0.0
      %4357 = vmatprep.subr.mxu0 0.0
      %4358 = vmatpush1.msra.mxu0 0.0
      %4359 = vmatprep.subr.mxu0 0.0
      %4360 = vmatpush1.msra.mxu0 0.0
      %4361 = vmatprep.subr.mxu0 0.0
      %4362 = vmatpush1.msra.mxu0 0.0
      %4363 = vmatprep.subr.mxu0 0.0
      %4364 = vmatpush1.msra.mxu0 0.0
      %4365 = vmatprep.subr.mxu0 0.0
      %4366 = vmatpush1.msra.mxu0 0.0
      %4367 = vmatprep.subr.mxu0 0.0
      %4368 = vmatpush1.msra.mxu0 0.0
      %4369 = vmatprep.subr.mxu0 0.0
      %4370 = vmatpush1.msra.mxu0 0.0
      %4371 = vmatprep.subr.mxu0 0.0
      %4372 = vmatpush1.msra.mxu0 0.0
      %4373 = vmatprep.subr.mxu0 0.0
      %4374 = vmatpush1.msra.mxu0 0.0
      %4375 = vmatprep.mubr.f32.mxu0 0.0
      %4376 = vmatmul.mubr.f32.gmra.mrb[0].mxu0 %v4309
      %v4377 = vpop.f32.mrb[0].mxu0
      %v4378 = vadd.f32 %v4306, %v4377
      %v4379 = vpop.f32.mrb[0].mxu0
      %4380 = vdwg.mxu0
      %v4381 = vadd.f32 %v4378, %v4199
      %s4382 = scalar_lea.vmem %s19, 1
      %v4383 = vld [vmem:[%s4382] sm:$0x1]
      %s4384 = scalar_lea.vmem %s20, 1
      %v4385 = vld [vmem:[%s4384] sm:$0x1]
      %v4386 = vsel %vm817, %v4381, 0.0
      %4387 = vadd.xlane.f32.xlu0 %v4386
      %v4388 = vpop.xlane.xlu0 %4387
      %v4389 = vmul.f32 %v4388, %v821
      %v4390 = vsub.f32 %v4381, %v4389
      %v4391 = vmul.f32 %v4390, %v4390
      %v4392 = vsel %vm817, %v4391, 0.0
      %4393 = vadd.xlane.f32.xlu0 %v4392
      %v4394 = vpop.xlane.xlu0 %4393
      %v4395 = vmul.f32 %v4394, %v821
      %v4396 = vadd.f32 %v4395, 1e-07
      %v4397 = vrsqrt.pop %v4396
      %v4398 = vmul.f32 %v4390, %v4397
      %v4400 = vlaneseq
      %v4401 = vshrl.u32 %v4400, 7
      %v4402 = vsub.s32 0, %v4401
      %v4403 = vrot.slane %v4383, %v4402
      %v4405 = vmul.f32 %v4398, %v4403
      %v4407 = vlaneseq
      %v4408 = vshrl.u32 %v4407, 7
      %v4409 = vsub.s32 0, %v4408
      %v4410 = vrot.slane %v4385, %v4409
      %v4412 = vadd.f32 %v4405, %v4410
      %v4413 = vld [vmem:[%s21] sm:$0xff]
      %v4414 = vld [vmem:[%s21 + $0x8] sm:$0xff]
      %v4415 = vld [vmem:[%s21 + $0x10] sm:$0xff]
      %v4416 = vld [vmem:[%s21 + $0x18] sm:$0xff]
      %v4417 = vld [vmem:[%s22] sm:$0x1]
      %v4419 = vsel %vm817, %v4412, 0
      %4421 = vmatprep.subr.mxu0 0.0
      %4422 = vmatpush1.msra.mxu0 %v4413
      %4423 = vmatprep.subr.mxu0 0.0
      %4424 = vmatpush1.msra.mxu0 %v4414
      %4425 = vmatprep.subr.mxu0 0.0
      %4426 = vmatpush1.msra.mxu0 %v4415
      %4427 = vmatprep.subr.mxu0 0.0
      %4428 = vmatpush1.msra.mxu0 %v4416
      %4429 = vmatprep.subr.mxu0 0.0
      %4430 = vmatpush1.msra.mxu0 0.0
      %4431 = vmatprep.subr.mxu0 0.0
      %4432 = vmatpush1.msra.mxu0 0.0
      %4433 = vmatprep.subr.mxu0 0.0
      %4434 = vmatpush1.msra.mxu0 0.0
      %4435 = vmatprep.subr.mxu0 0.0
      %4436 = vmatpush1.msra.mxu0 0.0
      %4437 = vmatprep.subr.mxu0 0.0
      %4438 = vmatpush1.msra.mxu0 0.0
      %4439 = vmatprep.subr.mxu0 0.0
      %4440 = vmatpush1.msra.mxu0 0.0
      %4441 = vmatprep.subr.mxu0 0.0
      %4442 = vmatpush1.msra.mxu0 0.0
      %4443 = vmatprep.subr.mxu0 0.0
      %4444 = vmatpush1.msra.mxu0 0.0
      %4445 = vmatprep.subr.mxu0 0.0
      %4446 = vmatpush1.msra.mxu0 0.0
      %4447 = vmatprep.subr.mxu0 0.0
      %4448 = vmatpush1.msra.mxu0 0.0
      %4449 = vmatprep.subr.mxu0 0.0
      %4450 = vmatpush1.msra.mxu0 0.0
      %4451 = vmatprep.subr.mxu0 0.0
      %4452 = vmatpush1.msra.mxu0 0.0
      %4453 = vmatprep.subr.mxu0 0.0
      %4454 = vmatpush1.msra.mxu0 0.0
      %4455 = vmatprep.subr.mxu0 0.0
      %4456 = vmatpush1.msra.mxu0 0.0
      %4457 = vmatprep.subr.mxu0 0.0
      %4458 = vmatpush1.msra.mxu0 0.0
      %4459 = vmatprep.subr.mxu0 0.0
      %4460 = vmatpush1.msra.mxu0 0.0
      %4461 = vmatprep.subr.mxu0 0.0
      %4462 = vmatpush1.msra.mxu0 0.0
      %4463 = vmatprep.subr.mxu0 0.0
      %4464 = vmatpush1.msra.mxu0 0.0
      %4465 = vmatprep.subr.mxu0 0.0
      %4466 = vmatpush1.msra.mxu0 0.0
      %4467 = vmatprep.subr.mxu0 0.0
      %4468 = vmatpush1.msra.mxu0 0.0
      %4469 = vmatprep.subr.mxu0 0.0
      %4470 = vmatpush1.msra.mxu0 0.0
      %4471 = vmatprep.subr.mxu0 0.0
      %4472 = vmatpush1.msra.mxu0 0.0
      %4473 = vmatprep.subr.mxu0 0.0
      %4474 = vmatpush1.msra.mxu0 0.0
      %4475 = vmatprep.subr.mxu0 0.0
      %4476 = vmatpush1.msra.mxu0 0.0
      %4477 = vmatprep.subr.mxu0 0.0
      %4478 = vmatpush1.msra.mxu0 0.0
      %4479 = vmatprep.subr.mxu0 0.0
      %4480 = vmatpush1.msra.mxu0 0.0
      %4481 = vmatprep.subr.mxu0 0.0
      %4482 = vmatpush1.msra.mxu0 0.0
      %4483 = vmatprep.subr.mxu0 0.0
      %4484 = vmatpush1.msra.mxu0 0.0
      %4485 = vmatprep.mubr.f32.mxu0 0.0
      %4486 = vmatmul.mubr.f32.gmra.mrb[0].mxu0 %v4419
      %v4487 = vpop.f32.mrb[0].mxu0
      %v4488 = vadd.f32 %v4417, %v4487
      %v4489 = vpop.f32.mrb[0].mxu0
      %4490 = vdwg.mxu0
      %v4491 = vmul.f32 %v4488, 0.5
      %v4492 = vmul.f32 %v4488, 0.70710677
      %v4493 = verf.f32.pop %v4492
      %v4494 = vadd.f32 %v4493, 1.0
      %v4495 = vmul.f32 %v4491, %v4494
      %v4496 = vld [vmem:[%s23] sm:$0xff]
      %v4497 = vld [vmem:[%s23 + $0x8] sm:$0xff]
      %v4498 = vld [vmem:[%s23 + $0x10] sm:$0xff]
      %v4499 = vld [vmem:[%s23 + $0x18] sm:$0xff]
      %v4500 = vld [vmem:[%s24] sm:$0x1]
      %v4502 = vsel %vm817, %v4495, 0
      %4504 = vmatprep.subr.mxu0 0.0
      %4505 = vmatpush1.msra.mxu0 %v4496
      %4506 = vmatprep.subr.mxu0 0.0
      %4507 = vmatpush1.msra.mxu0 %v4497
      %4508 = vmatprep.subr.mxu0 0.0
      %4509 = vmatpush1.msra.mxu0 %v4498
      %4510 = vmatprep.subr.mxu0 0.0
      %4511 = vmatpush1.msra.mxu0 %v4499
      %4512 = vmatprep.subr.mxu0 0.0
      %4513 = vmatpush1.msra.mxu0 0.0
      %4514 = vmatprep.subr.mxu0 0.0
      %4515 = vmatpush1.msra.mxu0 0.0
      %4516 = vmatprep.subr.mxu0 0.0
      %4517 = vmatpush1.msra.mxu0 0.0
      %4518 = vmatprep.subr.mxu0 0.0
      %4519 = vmatpush1.msra.mxu0 0.0
      %4520 = vmatprep.subr.mxu0 0.0
      %4521 = vmatpush1.msra.mxu0 0.0
      %4522 = vmatprep.subr.mxu0 0.0
      %4523 = vmatpush1.msra.mxu0 0.0
      %4524 = vmatprep.subr.mxu0 0.0
      %4525 = vmatpush1.msra.mxu0 0.0
      %4526 = vmatprep.subr.mxu0 0.0
      %4527 = vmatpush1.msra.mxu0 0.0
      %4528 = vmatprep.subr.mxu0 0.0
      %4529 = vmatpush1.msra.mxu0 0.0
      %4530 = vmatprep.subr.mxu0 0.0
      %4531 = vmatpush1.msra.mxu0 0.0
      %4532 = vmatprep.subr.mxu0 0.0
      %4533 = vmatpush1.msra.mxu0 0.0
      %4534 = vmatprep.subr.mxu0 0.0
      %4535 = vmatpush1.msra.mxu0 0.0
      %4536 = vmatprep.subr.mxu0 0.0
      %4537 = vmatpush1.msra.mxu0 0.0
      %4538 = vmatprep.subr.mxu0 0.0
      %4539 = vmatpush1.msra.mxu0 0.0
      %4540 = vmatprep.subr.mxu0 0.0
      %4541 = vmatpush1.msra.mxu0 0.0
      %4542 = vmatprep.subr.mxu0 0.0
      %4543 = vmatpush1.msra.mxu0 0.0
      %4544 = vmatprep.subr.mxu0 0.0
      %4545 = vmatpush1.msra.mxu0 0.0
      %4546 = vmatprep.subr.mxu0 0.0
      %4547 = vmatpush1.msra.mxu0 0.0
      %4548 = vmatprep.subr.mxu0 0.0
      %4549 = vmatpush1.msra.mxu0 0.0
      %4550 = vmatprep.subr.mxu0 0.0
      %4551 = vmatpush1.msra.mxu0 0.0
      %4552 = vmatprep.subr.mxu0 0.0
      %4553 = vmatpush1.msra.mxu0 0.0
      %4554 = vmatprep.subr.mxu0 0.0
      %4555 = vmatpush1.msra.mxu0 0.0
      %4556 = vmatprep.subr.mxu0 0.0
      %4557 = vmatpush1.msra.mxu0 0.0
      %4558 = vmatprep.subr.mxu0 0.0
      %4559 = vmatpush1.msra.mxu0 0.0
      %4560 = vmatprep.subr.mxu0 0.0
      %4561 = vmatpush1.msra.mxu0 0.0
      %4562 = vmatprep.subr.mxu0 0.0
      %4563 = vmatpush1.msra.mxu0 0.0
      %4564 = vmatprep.subr.mxu0 0.0
      %4565 = vmatpush1.msra.mxu0 0.0
      %4566 = vmatprep.subr.mxu0 0.0
      %4567 = vmatpush1.msra.mxu0 0.0
      %4568 = vmatprep.mubr.f32.mxu0 0.0
      %4569 = vmatmul.mubr.f32.gmra.mrb[0].mxu0 %v4502
      %v4570 = vpop.f32.mrb[0].mxu0
      %v4571 = vadd.f32 %v4500, %v4570
      %v4572 = vpop.f32.mrb[0].mxu0
      %4573 = vdwg.mxu0
      %vm4574 = vcmask 8192
      %4575 = vst.msk [vmem:[%s788] sm:$0x1] %vm4574, %v4571
      %p4576 = scmp.lt.s32.totalorder %s36, 1
      %s4577 = scalar_select %p4576, %s36, 1
      %s4578 = scalar_lea.vmem %s25, %s4577
      // Predicated region
      $region121: #{_loss_fn.1} parent=119 // pred_check
        %p4579 = pneg %p594
      $region122: #{_loss_fn.1} parent=119 // pred_check_branch
        %4581 = sbr.rel (%p4579) target = $region124
      $region123: #{_loss_fn.1} parent=119 // pred_region
        _
      $region124: #{_loss_fn.1} parent=119 // pred_fallthru
        _
    $region120: #{_loss_fn.1} parent=5 // pred_fallthru
      _
    %p4582 = scmp.le.s32.totalorder 2, %s31
    // Predicated region
    $region125: #{_loss_fn.1} parent=5 // pred_check
      %p4583 = pneg %p4582
    $region126: #{_loss_fn.1} parent=5 // pred_check_branch
      %4585 = sbr.rel (%p4583) target = $region128
    $region127: #{_loss_fn.1} parent=5 // pred_region
      %s4586 = ssub.s32 %s31, 2
      // Predicated region
      $region129: #{_loss_fn.1} parent=127 // pred_check
        %p4587 = pneg %p600
      $region130: #{_loss_fn.1} parent=127 // pred_check_branch
        %4589 = sbr.rel (%p4587) target = $region132
      $region131: #{_loss_fn.1} parent=127 // pred_region
        %p4590 = scmp.lt.s32.totalorder %s37, 1
        %s4591 = scalar_select %p4590, %s37, 1
        %s4592 = scalar_lea.vmem %s25, %s4591
      $region132: #{_loss_fn.1} parent=127 // pred_fallthru
        _
    $region128: #{_loss_fn.1} parent=5 // pred_fallthru
      _
  $region6: #{_loss_fn.1} parent=0 // loop_footer
    %s35 = sadd.s32 1, %s31
  $region7: #{_loss_fn.1} parent=0 // loop_footer_branch
    %30 = sbr.rel target = $region3
  $region8: #{_loss_fn.1} parent=0 // loop_exit
    _

</llo_original>
